<compile_context>
chip_gen: v6e
topology: v6e:2x2x1
jax: 0.10.0
libtpu: 0.0.40
codegen_flags: <defaults>
</compile_context>

<pallas_src>
import jax
import jax.numpy as jnp
import numpy as np
from jax.experimental import pallas as pl
from jax.experimental.pallas import tpu as pltpu


def attention_kernel(src_ref, trg_ref, w_ref, b_ref, score_ref, value_ref):
    src = src_ref[...]            # [Bb, S]
    trg = trg_ref[...]            # [Bb, N, T]
    w = w_ref[...]                # [S, T]  (shared block)
    b = b_ref[0]                  # scalar bias from SMEM (scalar path, no vreg)

    # Bilinear raw scores: raw[i, n] = src[i] @ W @ trg[i, n] + b
    # u = src @ W runs on the MXU with M = Bb (>= 8, typically 128).
    u = jnp.dot(src, w, preferred_element_type=jnp.float32)       # [Bb, T]
    # Per-batch dot over T: VPU mul + XLU lane-reduce (N is tiny).
    raw = jnp.sum(trg * u[:, None, :], axis=-1) + b                # [Bb, N]

    # nn.Softmax(dim=-1) over the size-1 out_features axis: the stable softmax
    # specialized to length 1 is exp(x - max(x)) / sum == exp(0) == 1.0, so we
    # keep only the exp (EUP, free slot) and drop the dead sum / reciprocal.
    # Bit-identical to the generic path, incl. NaN propagation for +-inf raw.
    score = jnp.exp(raw - raw)                                     # [Bb, N] == 1.0

    # value[i] = score[i]^T @ trg[i]  (weighted sum over the N node axis).
    # N is at most one vreg of sublanes, so the sublane-reduce is cheap.
    value = jnp.sum(score[:, :, None] * trg, axis=1)               # [Bb, T]

    score_ref[...] = score
    value_ref[...] = value


def _round_up(x, m):
    return (x + m - 1) // m * m


def attention_forward_batched(src, trg, W, b, *, max_block_b=128):
    """Batched forward over B independent attention instances.

    src: [B, S], trg: [B, N, T], W: [S, T] (Bilinear weight[0]), b: [1].
    Returns (score [B, N], value [B, T]).
    """
    src = jnp.asarray(src, jnp.float32)
    trg = jnp.asarray(trg, jnp.float32)
    W = jnp.asarray(W, jnp.float32)
    b = jnp.asarray(b, jnp.float32).reshape(1)

    B, S = src.shape
    _, N, T = trg.shape

    # Batch block: multiple of 8 (sublane), capped at max_block_b; pad B to it.
    block_b = min(max_block_b, _round_up(B, 8))
    B_pad = _round_up(B, block_b)
    if B_pad != B:
        src = jnp.pad(src, ((0, B_pad - B), (0, 0)))
        trg = jnp.pad(trg, ((0, B_pad - B), (0, 0), (0, 0)))

    grid = (B_pad // block_b,)

    score, value = pl.pallas_call(
        attention_kernel,
        out_shape=(
            jax.ShapeDtypeStruct((B_pad, N), jnp.float32),   # scores, feature-last
            jax.ShapeDtypeStruct((B_pad, T), jnp.float32),   # stacked values
        ),
        grid=grid,
        in_specs=[
            pl.BlockSpec((block_b, S), lambda i: (i, 0)),          # src tile
            pl.BlockSpec((block_b, N, T), lambda i: (i, 0, 0)),    # trg tile
            pl.BlockSpec((S, T), lambda i: (0, 0)),                # shared W
            pl.BlockSpec(memory_space=pltpu.MemorySpace.SMEM),     # bias scalar
        ],
        out_specs=(
            pl.BlockSpec((block_b, N), lambda i: (i, 0)),
            pl.BlockSpec((block_b, T), lambda i: (i, 0)),
        ),
        compiler_params=pltpu.CompilerParams(
            dimension_semantics=("parallel",),   # shard batch across TCs (v7x)
        ),
    )(src, trg, W, b)

    return score[:B], value[:B]


def attention_forward(src, trg, W, b):
    """Single-instance interface matching the torch module.

    src: [S], trg: [N, T] -> (score [N, 1], value [T]).
    (For throughput, prefer attention_forward_batched.)
    """
    N = trg.shape[0]
    score, value = attention_forward_batched(src[None, :], trg[None, ...], W, b)
    return score[0].reshape(N, 1), value[0]


def attention_reference_batched(src, trg, W, b):
    """Pure-JAX reference mirroring the torch module exactly."""
    u = src.astype(jnp.float32) @ W                               # [B, T]
    raw = jnp.einsum("bnt,bt->bn", trg, u) + b[0]                 # [B, N]
    score = jax.nn.softmax(raw[..., None], axis=-1)[..., 0]       # softmax over size-1 axis
    value = jnp.einsum("bn,bnt->bt", score, trg)                  # [B, T]
    return score, value


if __name__ == "__main__":
    key = jax.random.PRNGKey(0)
    k_src, k_trg, k_w, k_b = jax.random.split(key, 4)

    src_size = 32     # S
    trg_size = 32     # T
    middle_node = 8   # N
    batch = 256       # independent attention instances batched into one call

    # nn.Bilinear(src_size, trg_size, 1): weight [1, S, T] -> W = weight[0]; bias [1]
    W = 0.1 * jax.random.normal(k_w, (src_size, trg_size), dtype=jnp.float32)
    b = 0.1 * jax.random.normal(k_b, (1,), dtype=jnp.float32)

    src = jax.random.normal(k_src, (batch, src_size), dtype=jnp.float32)
    trg = jax.random.normal(k_trg, (batch, middle_node, trg_size), dtype=jnp.float32)

    # Batched kernel run
    score, value = attention_forward_batched(src, trg, W, b)
    score, value = jax.block_until_ready((score, value))

    score_ref, value_ref = attention_reference_batched(src, trg, W, b)
    np.testing.assert_allclose(np.asarray(score), np.asarray(score_ref),
                               rtol=1e-5, atol=1e-5)
    np.testing.assert_allclose(np.asarray(value), np.asarray(value_ref),
                               rtol=1e-5, atol=1e-5)

    # Single-instance path matching the torch module's (score [N,1], value [T])
    s1, v1 = attention_forward(src[0], trg[0], W, b)
    s1, v1 = jax.block_until_ready((s1, v1))
    np.testing.assert_allclose(np.asarray(s1[:, 0]), np.asarray(score_ref[0]),
                               rtol=1e-5, atol=1e-5)
    np.testing.assert_allclose(np.asarray(v1), np.asarray(value_ref[0]),
                               rtol=1e-5, atol=1e-5)

    print("KERNEL_OK")
</pallas_src>

<mosaic_0001>
module attributes {stable_mosaic.version = 11 : i64} {
  func.func @attention_kernel(%arg0: i32, %arg1: memref<128x32xf32, #tpu.memory_space<vmem>>, %arg2: memref<128x8x32xf32, #tpu.memory_space<vmem>>, %arg3: memref<32x32xf32, #tpu.memory_space<vmem>>, %arg4: memref<1xf32, #tpu.memory_space<smem>>, %arg5: memref<128x8xf32, #tpu.memory_space<vmem>>, %arg6: memref<128x32xf32, #tpu.memory_space<vmem>>) attributes {dimension_semantics = [#tpu.dimension_semantics<parallel>], iteration_bounds = array<i64: 2>, scalar_prefetch = 0 : i64, scratch_operands = 0 : i64, tpu.core_type = #tpu.core_type<tc>, window_params = [{transform_indices = @transform_0, window_bounds = array<i64: 128, 32>}, {transform_indices = @transform_1, window_bounds = array<i64: 128, 8, 32>}, {pipeline_mode = #tpu.pipeline_mode<synchronous>, transform_indices = @transform_2, window_bounds = array<i64: 32, 32>}, {transform_indices = @transform_3, window_bounds = array<i64: 1>}, {transform_indices = @transform_4, window_bounds = array<i64: 128, 8>}, {transform_indices = @transform_5, window_bounds = array<i64: 128, 32>}]} {
    %c0 = arith.constant 0 : index
    %c0_0 = arith.constant 0 : index
    %0 = vector.load %arg1[%c0, %c0_0] : memref<128x32xf32, #tpu.memory_space<vmem>>, vector<128x32xf32>
    %c0_1 = arith.constant 0 : index
    %c0_2 = arith.constant 0 : index
    %c0_3 = arith.constant 0 : index
    %1 = vector.load %arg2[%c0_1, %c0_2, %c0_3] : memref<128x8x32xf32, #tpu.memory_space<vmem>>, vector<128x8x32xf32>
    %c0_4 = arith.constant 0 : index
    %c0_5 = arith.constant 0 : index
    %2 = vector.load %arg3[%c0_4, %c0_5] : memref<32x32xf32, #tpu.memory_space<vmem>>, vector<32x32xf32>
    %c0_6 = arith.constant 0 : index
    %3 = memref.load %arg4[%c0_6] : memref<1xf32, #tpu.memory_space<smem>>
    %cst = arith.constant dense<0.000000e+00> : vector<128x32xf32>
    %4 = tpu.matmul %0, %2, %cst {dimension_numbers = #tpu.dot_dimension_numbers<[1], [0], [0], [1], [0, 0, 1, 1], [], []>} : vector<128x32xf32>, vector<32x32xf32>, vector<128x32xf32> -> vector<128x32xf32>
    %5 = vector.shape_cast %4 : vector<128x32xf32> to vector<128x1x32xf32>
    %6 = vector.broadcast %5 : vector<128x1x32xf32> to vector<128x8x32xf32>
    %7 = arith.mulf %1, %6 : vector<128x8x32xf32>
    %cst_7 = arith.constant dense<0.000000e+00> : vector<128x8xf32>
    %8 = vector.multi_reduction <add>, %7, %cst_7 [2] : vector<128x8x32xf32> to vector<128x8xf32>
    %9 = vector.broadcast %3 : f32 to vector<128x8xf32>
    %10 = arith.addf %8, %9 : vector<128x8xf32>
    %11 = arith.subf %10, %10 : vector<128x8xf32>
    %12 = math.exp %11 : vector<128x8xf32>
    %13 = vector.shape_cast %12 : vector<128x8xf32> to vector<128x8x1xf32>
    %14 = vector.broadcast %13 : vector<128x8x1xf32> to vector<128x8x32xf32>
    %15 = arith.mulf %14, %1 : vector<128x8x32xf32>
    %cst_8 = arith.constant dense<0.000000e+00> : vector<128x32xf32>
    %16 = vector.multi_reduction <add>, %15, %cst_8 [1] : vector<128x8x32xf32> to vector<128x32xf32>
    %c0_9 = arith.constant 0 : index
    %c0_10 = arith.constant 0 : index
    %17 = vector.load %arg5[%c0_9, %c0_10] : memref<128x8xf32, #tpu.memory_space<vmem>>, vector<128x8xf32>
    tpu.vector_store %arg5[%c0_9, %c0_10], %12 {strides = array<i32>} : memref<128x8xf32, #tpu.memory_space<vmem>>, vector<128x8xf32>,
    %c0_11 = arith.constant 0 : index
    %c0_12 = arith.constant 0 : index
    %18 = vector.load %arg6[%c0_11, %c0_12] : memref<128x32xf32, #tpu.memory_space<vmem>>, vector<128x32xf32>
    tpu.vector_store %arg6[%c0_11, %c0_12], %16 {strides = array<i32>} : memref<128x32xf32, #tpu.memory_space<vmem>>, vector<128x32xf32>,
    return
  }
  func.func @transform_0(%arg0: i32) -> (i32, i32) {
    %c0_i32 = arith.constant 0 : i32
    %c0_i32_0 = arith.constant 0 : i32
    return %arg0, %c0_i32 : i32, i32
  }
  func.func @transform_1(%arg0: i32) -> (i32, i32, i32) {
    %c0_i32 = arith.constant 0 : i32
    %c0_i32_0 = arith.constant 0 : i32
    %c0_i32_1 = arith.constant 0 : i32
    return %arg0, %c0_i32, %c0_i32_0 : i32, i32, i32
  }
  func.func @transform_2(%arg0: i32) -> (i32, i32) {
    %c0_i32 = arith.constant 0 : i32
    %c0_i32_0 = arith.constant 0 : i32
    %c0_i32_1 = arith.constant 0 : i32
    return %c0_i32, %c0_i32_0 : i32, i32
  }
  func.func @transform_3(%arg0: i32) -> i32 {
    %c0_i32 = arith.constant 0 : i32
    %c0_i32_0 = arith.constant 0 : i32
    return %c0_i32 : i32
  }
  func.func @transform_4(%arg0: i32) -> (i32, i32) {
    %c0_i32 = arith.constant 0 : i32
    %c0_i32_0 = arith.constant 0 : i32
    return %arg0, %c0_i32 : i32, i32
  }
  func.func @transform_5(%arg0: i32) -> (i32, i32) {
    %c0_i32 = arith.constant 0 : i32
    %c0_i32_0 = arith.constant 0 : i32
    return %arg0, %c0_i32 : i32, i32
  }
}

</mosaic_0001>

<llo_original>
// kernel: tpu_custom_call.1
$region0: #{tpu_custom_call.1}
  #allocation0 [shape = 'u32[]', space=smem, size = 0x4, offset = 0x4, fixed_abs, tag = 'smem constant byte address 0x4 - core index']
  #allocation1 [shape = 'u32[144,128]{1,0:T(1,128)}', space=vmem, size = 0x12000, scoped, tag = 'internal scratch']
  #allocation2 [shape = 'f32[1]{0:T(128)S(6)}', space=smem, size = 0x200, scoped, tag = 'scoped memory for tpu_custom_call.1']
  %s0 = inlined_call_operand.vmem [shape: f32[256,32], index: 0, kind: input, shape index: {}]
  %s1 = inlined_call_operand.vmem [shape: f32[256,8,32], index: 1, kind: input, shape index: {}]
  %s2 = inlined_call_operand.vmem [shape: f32[32,32], index: 2, kind: input, shape index: {}]
  %s3 = inlined_call_operand.<no memory space> [shape: f32[1], index: 3, kind: input, shape index: {}]
  %s4 = inlined_call_operand.vmem [shape: f32[256,8], index: 4, kind: output, shape index: {0}]
  %s5 = inlined_call_operand.vmem [shape: f32[256,32], index: 5, kind: output, shape index: {1}]
  %6 = xla_tuple %s4, %s5
  %s7 = sld [smem:[#allocation0]]
  $region57: #{tpu_custom_call.1} parent=0
    _
  %s9 = ssub.s32 1, %s7
  %s10 = scalar_select 0, %s9, %s7
  %11 = sst [smem:[#allocation2]] %s3
  loop: start=0, step=1, limit=4
  $region2: #{tpu_custom_call.1} parent=0 // loop_pre_header
    _
  $region3: #{tpu_custom_call.1} parent=0 // loop_header
    %s13 = sphi 0, %s17
    %p14 = scmp.ge.s32.totalorder %s13, 4
    %s23 = sphi 0, %s25
    %s26 = sphi 0, %s23
    %s27 = sphi 0, %s26
    %s43 = sphi 0, %s27
    %s49 = sphi 0, %s51
    %s52 = sphi 0, %s49
    %s53 = sphi 0, %s52
    %s69 = sphi 0, %s53
    %s73 = sphi 0, %s73
    %s75 = sphi 0, %s73
    %s76 = sphi 0, %s75
    %s90 = sphi 0, %s76
    %s94 = sphi 0, %s94
    %s96 = sphi 0, %s94
    %s97 = sphi 0, %s96
    %s111 = sphi 0, %s97
    %s117 = sphi 0, %s119
    %s120 = sphi 0, %s117
    %s121 = sphi 0, %s120
    %s137 = sphi 0, %s121
    %s143 = sphi 0, %s145
    %s146 = sphi 0, %s143
    %s147 = sphi 0, %s146
    %s163 = sphi 0, %s147
  $region4: #{tpu_custom_call.1} parent=0 // loop_header_branch
    %16 = sbr.rel (%p14) target = $region8
  $region5: #{tpu_custom_call.1} parent=0 // loop_body
    %s18 = ssub.s32 %s13, 1
    %s19 = ssub.s32 %s13, 2
    %s20 = sadd.s32 %s13, 1
    %s21 = ssub.s32 %s13, %s20
    %p22 = scmp.eq.s32.totalorder %s21, 0
    %s24 = sadd.s32 %s23, 1
    %s25 = scalar_select %p22, %s23, %s24
    %p28 = pneg %p22
    %p29 = scmp.eq.s32.totalorder %s13, 1
    %p30 = por %p28, %p29
    %p31 = scmp.ne.s32.totalorder %s23, %s26
    %p32 = scmp.eq.s32.totalorder %s13, 0
    %p33 = por %p31, %p32
    %p34 = scmp.ne.s32.totalorder %s23, %s26
    %p35 = scmp.eq.s32.totalorder %s18, 1
    %p36 = por %p34, %p35
    %p37 = scmp.ne.s32.totalorder %s26, %s27
    %p38 = scmp.eq.s32.totalorder %s18, 0
    %p39 = por %p37, %p38
    %p40 = scmp.ne.s32.totalorder %s26, %s27
    %p41 = scmp.eq.s32.totalorder %s19, 1
    %p42 = por %p40, %p41
    %p44 = scmp.ne.s32.totalorder %s27, %s43
    %p45 = scmp.eq.s32.totalorder %s19, 0
    %p46 = por %p44, %p45
    %s47 = ssub.s32 %s13, %s20
    %p48 = scmp.eq.s32.totalorder %s47, 0
    %s50 = sadd.s32 %s49, 1
    %s51 = scalar_select %p48, %s49, %s50
    %p54 = pneg %p48
    %p55 = scmp.eq.s32.totalorder %s13, 1
    %p56 = por %p54, %p55
    %p57 = scmp.ne.s32.totalorder %s49, %s52
    %p58 = scmp.eq.s32.totalorder %s13, 0
    %p59 = por %p57, %p58
    %p60 = scmp.ne.s32.totalorder %s49, %s52
    %p61 = scmp.eq.s32.totalorder %s18, 1
    %p62 = por %p60, %p61
    %p63 = scmp.ne.s32.totalorder %s52, %s53
    %p64 = scmp.eq.s32.totalorder %s18, 0
    %p65 = por %p63, %p64
    %p66 = scmp.ne.s32.totalorder %s52, %s53
    %p67 = scmp.eq.s32.totalorder %s19, 1
    %p68 = por %p66, %p67
    %p70 = scmp.ne.s32.totalorder %s53, %s69
    %p71 = scmp.eq.s32.totalorder %s19, 0
    %p72 = por %p70, %p71
    %s74 = sadd.s32 %s73, 1
    %p77 = scmp.eq.s32.totalorder %s13, 1
    %p78 = scmp.ne.s32.totalorder %s73, %s75
    %p79 = scmp.eq.s32.totalorder %s13, 0
    %p80 = por %p78, %p79
    %p81 = scmp.ne.s32.totalorder %s73, %s75
    %p82 = scmp.eq.s32.totalorder %s18, 1
    %p83 = por %p81, %p82
    %p84 = scmp.ne.s32.totalorder %s75, %s76
    %p85 = scmp.eq.s32.totalorder %s18, 0
    %p86 = por %p84, %p85
    %p87 = scmp.ne.s32.totalorder %s75, %s76
    %p88 = scmp.eq.s32.totalorder %s19, 1
    %p89 = por %p87, %p88
    %p91 = scmp.ne.s32.totalorder %s76, %s90
    %p92 = scmp.eq.s32.totalorder %s19, 0
    %p93 = por %p91, %p92
    %s95 = sadd.s32 %s94, 1
    %p98 = scmp.eq.s32.totalorder %s13, 1
    %p99 = scmp.ne.s32.totalorder %s94, %s96
    %p100 = scmp.eq.s32.totalorder %s13, 0
    %p101 = por %p99, %p100
    %p102 = scmp.ne.s32.totalorder %s94, %s96
    %p103 = scmp.eq.s32.totalorder %s18, 1
    %p104 = por %p102, %p103
    %p105 = scmp.ne.s32.totalorder %s96, %s97
    %p106 = scmp.eq.s32.totalorder %s18, 0
    %p107 = por %p105, %p106
    %p108 = scmp.ne.s32.totalorder %s96, %s97
    %p109 = scmp.eq.s32.totalorder %s19, 1
    %p110 = por %p108, %p109
    %p112 = scmp.ne.s32.totalorder %s97, %s111
    %p113 = scmp.eq.s32.totalorder %s19, 0
    %p114 = por %p112, %p113
    %s115 = ssub.s32 %s13, %s20
    %p116 = scmp.eq.s32.totalorder %s115, 0
    %s118 = sadd.s32 %s117, 1
    %s119 = scalar_select %p116, %s117, %s118
    %p122 = pneg %p116
    %p123 = scmp.eq.s32.totalorder %s13, 1
    %p124 = por %p122, %p123
    %p125 = scmp.ne.s32.totalorder %s117, %s120
    %p126 = scmp.eq.s32.totalorder %s13, 0
    %p127 = por %p125, %p126
    %p128 = scmp.ne.s32.totalorder %s117, %s120
    %p129 = scmp.eq.s32.totalorder %s18, 1
    %p130 = por %p128, %p129
    %p131 = scmp.ne.s32.totalorder %s120, %s121
    %p132 = scmp.eq.s32.totalorder %s18, 0
    %p133 = por %p131, %p132
    %p134 = scmp.ne.s32.totalorder %s120, %s121
    %p135 = scmp.eq.s32.totalorder %s19, 1
    %p136 = por %p134, %p135
    %p138 = scmp.ne.s32.totalorder %s121, %s137
    %p139 = scmp.eq.s32.totalorder %s19, 0
    %p140 = por %p138, %p139
    %s141 = ssub.s32 %s13, %s20
    %p142 = scmp.eq.s32.totalorder %s141, 0
    %s144 = sadd.s32 %s143, 1
    %s145 = scalar_select %p142, %s143, %s144
    %p148 = pneg %p142
    %p149 = scmp.eq.s32.totalorder %s13, 1
    %p150 = por %p148, %p149
    %p151 = scmp.ne.s32.totalorder %s143, %s146
    %p152 = scmp.eq.s32.totalorder %s13, 0
    %p153 = por %p151, %p152
    %p154 = scmp.ne.s32.totalorder %s143, %s146
    %p155 = scmp.eq.s32.totalorder %s18, 1
    %p156 = por %p154, %p155
    %p157 = scmp.ne.s32.totalorder %s146, %s147
    %p158 = scmp.eq.s32.totalorder %s18, 0
    %p159 = por %p157, %p158
    %p160 = scmp.ne.s32.totalorder %s146, %s147
    %p161 = scmp.eq.s32.totalorder %s19, 1
    %p162 = por %p160, %p161
    %p164 = scmp.ne.s32.totalorder %s147, %s163
    %p165 = scmp.eq.s32.totalorder %s19, 0
    %p166 = por %p164, %p165
    %p167 = scmp.le.s32.totalorder 1, %s13
    %p168 = scmp.lt.s32.totalorder %s13, 3
    %p169 = pnand %p167, %p168
    %p170 = pneg %p169
    // Predicated region
    $region9: #{tpu_custom_call.1} parent=5 // pred_check
      _
    $region10: #{tpu_custom_call.1} parent=5 // pred_check_branch
      %172 = sbr.rel (%p169) target = $region12
    $region11: #{tpu_custom_call.1} parent=5 // pred_region
      %s173 = ssub.s32 %s13, 1
      // Predicated region
      $region13: #{tpu_custom_call.1} parent=11 // pred_check
        %p174 = pneg %p86
      $region14: #{tpu_custom_call.1} parent=11 // pred_check_branch
        %176 = sbr.rel (%p174) target = $region16
      $region15: #{tpu_custom_call.1} parent=11 // pred_region
        _
      $region16: #{tpu_custom_call.1} parent=11 // pred_fallthru
        _
      // Predicated region
      $region17: #{tpu_custom_call.1} parent=11 // pred_check
        %p177 = pneg %p107
      $region18: #{tpu_custom_call.1} parent=11 // pred_check_branch
        %179 = sbr.rel (%p177) target = $region20
      $region19: #{tpu_custom_call.1} parent=11 // pred_region
        _
      $region20: #{tpu_custom_call.1} parent=11 // pred_fallthru
        _
    $region12: #{tpu_custom_call.1} parent=5 // pred_fallthru
      _
    %p180 = scmp.lt.s32.totalorder %s13, 2
    // Predicated region
    $region21: #{tpu_custom_call.1} parent=5 // pred_check
      %p181 = pneg %p180
    $region22: #{tpu_custom_call.1} parent=5 // pred_check_branch
      %183 = sbr.rel (%p181) target = $region24
    $region23: #{tpu_custom_call.1} parent=5 // pred_region
      // Predicated region
      $region25: #{tpu_custom_call.1} parent=23 // pred_check
        %p184 = pneg %p33
      $region26: #{tpu_custom_call.1} parent=23 // pred_check_branch
        %186 = sbr.rel (%p184) target = $region28
      $region27: #{tpu_custom_call.1} parent=23 // pred_region
        %s187 = smul.u32 16, %s13
        %p188 = scmp.lt.s32.totalorder %s187, 31
        %s189 = scalar_select %p188, %s187, 31
        %s190 = smul.addr %s189, 8
        %s191 = scalar_lea.vmem %s0, %s190
        %s192 = smul.u32 16, %s13
      $region28: #{tpu_custom_call.1} parent=23 // pred_fallthru
        _
      // Predicated region
      $region29: #{tpu_custom_call.1} parent=23 // pred_check
        %p193 = pneg %p59
      $region30: #{tpu_custom_call.1} parent=23 // pred_check_branch
        %195 = sbr.rel (%p193) target = $region32
      $region31: #{tpu_custom_call.1} parent=23 // pred_region
        %s196 = smul.u32 128, %s13
        %p197 = scmp.lt.s32.totalorder %s196, 255
        %s198 = scalar_select %p197, %s196, 255
        %s199 = smul.addr %s198, 8
        %s200 = scalar_lea.vmem %s1, %s199
        %s201 = smul.u32 128, %s13
      $region32: #{tpu_custom_call.1} parent=23 // pred_fallthru
        _
    $region24: #{tpu_custom_call.1} parent=5 // pred_fallthru
      _
    %p202 = scmp.le.s32.totalorder 1, %s13
    %p203 = scmp.lt.s32.totalorder %s13, 3
    %p204 = pnand %p202, %p203
    %p205 = pneg %p204
    // Predicated region
    $region33: #{tpu_custom_call.1} parent=5 // pred_check
      _
    $region34: #{tpu_custom_call.1} parent=5 // pred_check_branch
      %207 = sbr.rel (%p204) target = $region36
    $region35: #{tpu_custom_call.1} parent=5 // pred_region
      %s208 = ssub.s32 %s13, 1
      %s209 = smul.u32 16, %s18
      %p210 = scmp.lt.s32.totalorder %s209, 31
      %s211 = scalar_select %p210, %s209, 31
      %s212 = smul.addr %s211, 8
      %s213 = scalar_lea.vmem %s0, %s212
      %p214 = pneg %p39
      %p215 = pneg %p36
      %s216 = smul.u32 128, %s18
      %p217 = scmp.lt.s32.totalorder %s216, 255
      %s218 = scalar_select %p217, %s216, 255
      %s219 = smul.addr %s218, 8
      %s220 = scalar_lea.vmem %s1, %s219
      %p221 = pneg %p65
      %p222 = pneg %p62
      %p223 = pneg %p86
      %p224 = pneg %p83
      %p225 = pneg %p107
      %p226 = pneg %p104
      %p227 = pneg %p133
      %p228 = pneg %p130
      %s229 = smul.u32 16, %s18
      %p230 = scmp.lt.s32.totalorder %s229, 31
      %s231 = scalar_select %p230, %s229, 31
      %s232 = smul.addr %s231, 8
      %s233 = scalar_lea.vmem %s4, %s232
      %p234 = pneg %p159
      %p235 = pneg %p156
      %s236 = smul.u32 16, %s18
      %p237 = scmp.lt.s32.totalorder %s236, 31
      %s238 = scalar_select %p237, %s236, 31
      %s239 = smul.addr %s238, 8
      %s240 = scalar_lea.vmem %s5, %s239
      %s241 = smul.u32 16, %s18
      %p242 = scmp.lt.s32.totalorder %s241, 31
      %s243 = scalar_select %p242, %s241, 31
      %s244 = smul.addr %s243, 8
      %s245 = scalar_lea.vmem %s0, %s244
      %s246 = smul.u32 16, %s18
      %s247 = smul.u32 128, %s18
      %p248 = scmp.lt.s32.totalorder %s247, 255
      %s249 = scalar_select %p248, %s247, 255
      %s250 = smul.addr %s249, 8
      %s251 = scalar_lea.vmem %s1, %s250
      %s252 = smul.u32 128, %s18
      %s253 = smul.u32 16, %s18
      %p254 = scmp.lt.s32.totalorder %s253, 31
      %s255 = scalar_select %p254, %s253, 31
      %s256 = smul.addr %s255, 8
      %s257 = scalar_lea.vmem %s4, %s256
      %s258 = smul.u32 16, %s18
      %s259 = smul.u32 16, %s18
      %p260 = scmp.lt.s32.totalorder %s259, 31
      %s261 = scalar_select %p260, %s259, 31
      %s262 = smul.addr %s261, 8
      %s263 = scalar_lea.vmem %s5, %s262
      %s264 = smul.u32 16, %s18
      %v265 = vld [vmem:[%s245] sm:$0xff]
      %v266 = vld [vmem:[%s245 + $0x8] sm:$0xff]
      %v267 = vld [vmem:[%s245 + $0x10] sm:$0xff]
      %v268 = vld [vmem:[%s245 + $0x18] sm:$0xff]
      %v269 = vld [vmem:[%s245 + $0x20] sm:$0xff]
      %v270 = vld [vmem:[%s245 + $0x28] sm:$0xff]
      %v271 = vld [vmem:[%s245 + $0x30] sm:$0xff]
      %v272 = vld [vmem:[%s245 + $0x38] sm:$0xff]
      %v273 = vld [vmem:[%s245 + $0x40] sm:$0xff]
      %v274 = vld [vmem:[%s245 + $0x48] sm:$0xff]
      %v275 = vld [vmem:[%s245 + $0x50] sm:$0xff]
      %v276 = vld [vmem:[%s245 + $0x58] sm:$0xff]
      %v277 = vld [vmem:[%s245 + $0x60] sm:$0xff]
      %v278 = vld [vmem:[%s245 + $0x68] sm:$0xff]
      %v279 = vld [vmem:[%s245 + $0x70] sm:$0xff]
      %v280 = vld [vmem:[%s245 + $0x78] sm:$0xff]
      %v281 = vld [vmem:[%s251] sm:$0xff]
      %v282 = vld [vmem:[%s251 + $0x8] sm:$0xff]
      %v283 = vld [vmem:[%s251 + $0x10] sm:$0xff]
      %v284 = vld [vmem:[%s251 + $0x18] sm:$0xff]
      %v285 = vld [vmem:[%s251 + $0x20] sm:$0xff]
      %v286 = vld [vmem:[%s251 + $0x28] sm:$0xff]
      %v287 = vld [vmem:[%s251 + $0x30] sm:$0xff]
      %v288 = vld [vmem:[%s251 + $0x38] sm:$0xff]
      %v289 = vld [vmem:[%s251 + $0x40] sm:$0xff]
      %v290 = vld [vmem:[%s251 + $0x48] sm:$0xff]
      %v291 = vld [vmem:[%s251 + $0x50] sm:$0xff]
      %v292 = vld [vmem:[%s251 + $0x58] sm:$0xff]
      %v293 = vld [vmem:[%s251 + $0x60] sm:$0xff]
      %v294 = vld [vmem:[%s251 + $0x68] sm:$0xff]
      %v295 = vld [vmem:[%s251 + $0x70] sm:$0xff]
      %v296 = vld [vmem:[%s251 + $0x78] sm:$0xff]
      %v297 = vld [vmem:[%s251 + $0x80] sm:$0xff]
      %v298 = vld [vmem:[%s251 + $0x88] sm:$0xff]
      %v299 = vld [vmem:[%s251 + $0x90] sm:$0xff]
      %v300 = vld [vmem:[%s251 + $0x98] sm:$0xff]
      %v301 = vld [vmem:[%s251 + $0xa0] sm:$0xff]
      %v302 = vld [vmem:[%s251 + $0xa8] sm:$0xff]
      %v303 = vld [vmem:[%s251 + $0xb0] sm:$0xff]
      %v304 = vld [vmem:[%s251 + $0xb8] sm:$0xff]
      %v305 = vld [vmem:[%s251 + $0xc0] sm:$0xff]
      %v306 = vld [vmem:[%s251 + $0xc8] sm:$0xff]
      %v307 = vld [vmem:[%s251 + $0xd0] sm:$0xff]
      %v308 = vld [vmem:[%s251 + $0xd8] sm:$0xff]
      %v309 = vld [vmem:[%s251 + $0xe0] sm:$0xff]
      %v310 = vld [vmem:[%s251 + $0xe8] sm:$0xff]
      %v311 = vld [vmem:[%s251 + $0xf0] sm:$0xff]
      %v312 = vld [vmem:[%s251 + $0xf8] sm:$0xff]
      %v313 = vld [vmem:[%s251 + $0x100] sm:$0xff]
      %v314 = vld [vmem:[%s251 + $0x108] sm:$0xff]
      %v315 = vld [vmem:[%s251 + $0x110] sm:$0xff]
      %v316 = vld [vmem:[%s251 + $0x118] sm:$0xff]
      %v317 = vld [vmem:[%s251 + $0x120] sm:$0xff]
      %v318 = vld [vmem:[%s251 + $0x128] sm:$0xff]
      %v319 = vld [vmem:[%s251 + $0x130] sm:$0xff]
      %v320 = vld [vmem:[%s251 + $0x138] sm:$0xff]
      %v321 = vld [vmem:[%s251 + $0x140] sm:$0xff]
      %v322 = vld [vmem:[%s251 + $0x148] sm:$0xff]
      %v323 = vld [vmem:[%s251 + $0x150] sm:$0xff]
      %v324 = vld [vmem:[%s251 + $0x158] sm:$0xff]
      %v325 = vld [vmem:[%s251 + $0x160] sm:$0xff]
      %v326 = vld [vmem:[%s251 + $0x168] sm:$0xff]
      %v327 = vld [vmem:[%s251 + $0x170] sm:$0xff]
      %v328 = vld [vmem:[%s251 + $0x178] sm:$0xff]
      %v329 = vld [vmem:[%s251 + $0x180] sm:$0xff]
      %v330 = vld [vmem:[%s251 + $0x188] sm:$0xff]
      %v331 = vld [vmem:[%s251 + $0x190] sm:$0xff]
      %v332 = vld [vmem:[%s251 + $0x198] sm:$0xff]
      %v333 = vld [vmem:[%s251 + $0x1a0] sm:$0xff]
      %v334 = vld [vmem:[%s251 + $0x1a8] sm:$0xff]
      %v335 = vld [vmem:[%s251 + $0x1b0] sm:$0xff]
      %v336 = vld [vmem:[%s251 + $0x1b8] sm:$0xff]
      %v337 = vld [vmem:[%s251 + $0x1c0] sm:$0xff]
      %v338 = vld [vmem:[%s251 + $0x1c8] sm:$0xff]
      %v339 = vld [vmem:[%s251 + $0x1d0] sm:$0xff]
      %v340 = vld [vmem:[%s251 + $0x1d8] sm:$0xff]
      %v341 = vld [vmem:[%s251 + $0x1e0] sm:$0xff]
      %v342 = vld [vmem:[%s251 + $0x1e8] sm:$0xff]
      %v343 = vld [vmem:[%s251 + $0x1f0] sm:$0xff]
      %v344 = vld [vmem:[%s251 + $0x1f8] sm:$0xff]
      %v345 = vld [vmem:[%s251 + $0x200] sm:$0xff]
      %v346 = vld [vmem:[%s251 + $0x208] sm:$0xff]
      %v347 = vld [vmem:[%s251 + $0x210] sm:$0xff]
      %v348 = vld [vmem:[%s251 + $0x218] sm:$0xff]
      %v349 = vld [vmem:[%s251 + $0x220] sm:$0xff]
      %v350 = vld [vmem:[%s251 + $0x228] sm:$0xff]
      %v351 = vld [vmem:[%s251 + $0x230] sm:$0xff]
      %v352 = vld [vmem:[%s251 + $0x238] sm:$0xff]
      %v353 = vld [vmem:[%s251 + $0x240] sm:$0xff]
      %v354 = vld [vmem:[%s251 + $0x248] sm:$0xff]
      %v355 = vld [vmem:[%s251 + $0x250] sm:$0xff]
      %v356 = vld [vmem:[%s251 + $0x258] sm:$0xff]
      %v357 = vld [vmem:[%s251 + $0x260] sm:$0xff]
      %v358 = vld [vmem:[%s251 + $0x268] sm:$0xff]
      %v359 = vld [vmem:[%s251 + $0x270] sm:$0xff]
      %v360 = vld [vmem:[%s251 + $0x278] sm:$0xff]
      %v361 = vld [vmem:[%s251 + $0x280] sm:$0xff]
      %v362 = vld [vmem:[%s251 + $0x288] sm:$0xff]
      %v363 = vld [vmem:[%s251 + $0x290] sm:$0xff]
      %v364 = vld [vmem:[%s251 + $0x298] sm:$0xff]
      %v365 = vld [vmem:[%s251 + $0x2a0] sm:$0xff]
      %v366 = vld [vmem:[%s251 + $0x2a8] sm:$0xff]
      %v367 = vld [vmem:[%s251 + $0x2b0] sm:$0xff]
      %v368 = vld [vmem:[%s251 + $0x2b8] sm:$0xff]
      %v369 = vld [vmem:[%s251 + $0x2c0] sm:$0xff]
      %v370 = vld [vmem:[%s251 + $0x2c8] sm:$0xff]
      %v371 = vld [vmem:[%s251 + $0x2d0] sm:$0xff]
      %v372 = vld [vmem:[%s251 + $0x2d8] sm:$0xff]
      %v373 = vld [vmem:[%s251 + $0x2e0] sm:$0xff]
      %v374 = vld [vmem:[%s251 + $0x2e8] sm:$0xff]
      %v375 = vld [vmem:[%s251 + $0x2f0] sm:$0xff]
      %v376 = vld [vmem:[%s251 + $0x2f8] sm:$0xff]
      %v377 = vld [vmem:[%s251 + $0x300] sm:$0xff]
      %v378 = vld [vmem:[%s251 + $0x308] sm:$0xff]
      %v379 = vld [vmem:[%s251 + $0x310] sm:$0xff]
      %v380 = vld [vmem:[%s251 + $0x318] sm:$0xff]
      %v381 = vld [vmem:[%s251 + $0x320] sm:$0xff]
      %v382 = vld [vmem:[%s251 + $0x328] sm:$0xff]
      %v383 = vld [vmem:[%s251 + $0x330] sm:$0xff]
      %v384 = vld [vmem:[%s251 + $0x338] sm:$0xff]
      %v385 = vld [vmem:[%s251 + $0x340] sm:$0xff]
      %v386 = vld [vmem:[%s251 + $0x348] sm:$0xff]
      %v387 = vld [vmem:[%s251 + $0x350] sm:$0xff]
      %v388 = vld [vmem:[%s251 + $0x358] sm:$0xff]
      %v389 = vld [vmem:[%s251 + $0x360] sm:$0xff]
      %v390 = vld [vmem:[%s251 + $0x368] sm:$0xff]
      %v391 = vld [vmem:[%s251 + $0x370] sm:$0xff]
      %v392 = vld [vmem:[%s251 + $0x378] sm:$0xff]
      %v393 = vld [vmem:[%s251 + $0x380] sm:$0xff]
      %v394 = vld [vmem:[%s251 + $0x388] sm:$0xff]
      %v395 = vld [vmem:[%s251 + $0x390] sm:$0xff]
      %v396 = vld [vmem:[%s251 + $0x398] sm:$0xff]
      %v397 = vld [vmem:[%s251 + $0x3a0] sm:$0xff]
      %v398 = vld [vmem:[%s251 + $0x3a8] sm:$0xff]
      %v399 = vld [vmem:[%s251 + $0x3b0] sm:$0xff]
      %v400 = vld [vmem:[%s251 + $0x3b8] sm:$0xff]
      %v401 = vld [vmem:[%s251 + $0x3c0] sm:$0xff]
      %v402 = vld [vmem:[%s251 + $0x3c8] sm:$0xff]
      %v403 = vld [vmem:[%s251 + $0x3d0] sm:$0xff]
      %v404 = vld [vmem:[%s251 + $0x3d8] sm:$0xff]
      %v405 = vld [vmem:[%s251 + $0x3e0] sm:$0xff]
      %v406 = vld [vmem:[%s251 + $0x3e8] sm:$0xff]
      %v407 = vld [vmem:[%s251 + $0x3f0] sm:$0xff]
      %v408 = vld [vmem:[%s251 + $0x3f8] sm:$0xff]
      %v409 = vld [vmem:[%s2] sm:$0xff]
      %v410 = vld [vmem:[%s2 + $0x8] sm:$0xff]
      %v411 = vld [vmem:[%s2 + $0x10] sm:$0xff]
      %v412 = vld [vmem:[%s2 + $0x18] sm:$0xff]
      %s413 = sld [smem:[#allocation2]]
      %vm414 = vcmask 261120
      %v416 = vsel %vm414, %v265, 0
      %v419 = vsel %vm414, %v266, 0
      %v422 = vsel %vm414, %v267, 0
      %v425 = vsel %vm414, %v268, 0
      %v428 = vsel %vm414, %v269, 0
      %v431 = vsel %vm414, %v270, 0
      %v434 = vsel %vm414, %v271, 0
      %v437 = vsel %vm414, %v272, 0
      %v440 = vsel %vm414, %v273, 0
      %v443 = vsel %vm414, %v274, 0
      %v446 = vsel %vm414, %v275, 0
      %v449 = vsel %vm414, %v276, 0
      %v452 = vsel %vm414, %v277, 0
      %v455 = vsel %vm414, %v278, 0
      %v458 = vsel %vm414, %v279, 0
      %v461 = vsel %vm414, %v280, 0
      %463 = vmatprep.subr.mxu0 0.0
      %464 = vmatpush1.msra.mxu0 0.0
      %465 = vmatprep.subr.mxu0 0.0
      %466 = vmatpush1.msra.mxu0 0.0
      %467 = vmatprep.subr.mxu0 0.0
      %468 = vmatpush1.msra.mxu0 0.0
      %469 = vmatprep.subr.mxu0 0.0
      %470 = vmatpush1.msra.mxu0 0.0
      %471 = vmatprep.subr.mxu0 0.0
      %472 = vmatpush1.msra.mxu0 0.0
      %473 = vmatprep.subr.mxu0 0.0
      %474 = vmatpush1.msra.mxu0 0.0
      %475 = vmatprep.subr.mxu0 0.0
      %476 = vmatpush1.msra.mxu0 0.0
      %477 = vmatprep.subr.mxu0 0.0
      %478 = vmatpush1.msra.mxu0 0.0
      %479 = vmatprep.subr.mxu0 0.0
      %480 = vmatpush1.msra.mxu0 0.0
      %481 = vmatprep.subr.mxu0 0.0
      %482 = vmatpush1.msra.mxu0 0.0
      %483 = vmatprep.subr.mxu0 0.0
      %484 = vmatpush1.msra.mxu0 0.0
      %485 = vmatprep.subr.mxu0 0.0
      %486 = vmatpush1.msra.mxu0 0.0
      %487 = vmatprep.subr.mxu0 0.0
      %488 = vmatpush1.msra.mxu0 %v412
      %489 = vmatprep.subr.mxu0 0.0
      %490 = vmatpush1.msra.mxu0 %v411
      %491 = vmatprep.subr.mxu0 0.0
      %492 = vmatpush1.msra.mxu0 %v410
      %493 = vmatprep.subr.mxu0 0.0
      %494 = vmatpush1.msra.mxu0 %v409
      %495 = vmatprep.subr.mxu0 0.0
      %496 = vmatpush2.msra.mxu0 0.0
      %497 = vmatprep.subr.mxu0 0.0
      %498 = vmatpush2.msra.mxu0 0.0
      %499 = vmatprep.subr.mxu0 0.0
      %500 = vmatpush2.msra.mxu0 0.0
      %501 = vmatprep.subr.mxu0 0.0
      %502 = vmatpush2.msra.mxu0 0.0
      %503 = vmatprep.subr.mxu0 0.0
      %504 = vmatpush2.msra.mxu0 0.0
      %505 = vmatprep.subr.mxu0 0.0
      %506 = vmatpush2.msra.mxu0 0.0
      %507 = vmatprep.subr.mxu0 0.0
      %508 = vmatpush2.msra.mxu0 0.0
      %509 = vmatprep.subr.mxu0 0.0
      %510 = vmatpush2.msra.mxu0 0.0
      %511 = vmatprep.subr.mxu0 0.0
      %512 = vmatpush2.msra.mxu0 0.0
      %513 = vmatprep.subr.mxu0 0.0
      %514 = vmatpush2.msra.mxu0 0.0
      %515 = vmatprep.subr.mxu0 0.0
      %516 = vmatpush2.msra.mxu0 0.0
      %517 = vmatprep.subr.mxu0 0.0
      %518 = vmatpush2.msra.mxu0 0.0
      %519 = vmatprep.subr.mxu0 0.0
      %520 = vmatpush2.msra.mxu0 0.0
      %521 = vmatprep.subr.mxu0 0.0
      %522 = vmatpush2.msra.mxu0 0.0
      %523 = vmatprep.subr.mxu0 0.0
      %524 = vmatpush2.msra.mxu0 0.0
      %525 = vmatprep.subr.mxu0 0.0
      %526 = vmatpush2.msra.mxu0 0.0
      %527 = vmatprep.mubr.f32.mxu0 0.0
      %528 = vmatmul.mubr.f32.gmra.mxu0 %v416
      %v529 = vpop.f32.mrf.mxu0
      %v530 = vadd.f32 0.0, %v529
      %v531 = vpop.f32.mrf.mxu0
      %532 = vmatprep.mubr.f32.mxu0 0.0
      %533 = vmatmul.mubr.f32.gmra.mxu0 %v419
      %v534 = vpop.f32.mrf.mxu0
      %v535 = vadd.f32 0.0, %v534
      %v536 = vpop.f32.mrf.mxu0
      %537 = vmatprep.mubr.f32.mxu0 0.0
      %538 = vmatmul.mubr.f32.gmra.mxu0 %v422
      %v539 = vpop.f32.mrf.mxu0
      %v540 = vadd.f32 0.0, %v539
      %v541 = vpop.f32.mrf.mxu0
      %542 = vmatprep.mubr.f32.mxu0 0.0
      %543 = vmatmul.mubr.f32.gmra.mxu0 %v425
      %v544 = vpop.f32.mrf.mxu0
      %v545 = vadd.f32 0.0, %v544
      %v546 = vpop.f32.mrf.mxu0
      %547 = vmatprep.mubr.f32.mxu0 0.0
      %548 = vmatmul.mubr.f32.gmra.mxu0 %v428
      %v549 = vpop.f32.mrf.mxu0
      %v550 = vadd.f32 0.0, %v549
      %v551 = vpop.f32.mrf.mxu0
      %552 = vmatprep.mubr.f32.mxu0 0.0
      %553 = vmatmul.mubr.f32.gmra.mxu0 %v431
      %v554 = vpop.f32.mrf.mxu0
      %v555 = vadd.f32 0.0, %v554
      %v556 = vpop.f32.mrf.mxu0
      %557 = vmatprep.mubr.f32.mxu0 0.0
      %558 = vmatmul.mubr.f32.gmra.mxu0 %v434
      %v559 = vpop.f32.mrf.mxu0
      %v560 = vadd.f32 0.0, %v559
      %v561 = vpop.f32.mrf.mxu0
      %562 = vmatprep.mubr.f32.mxu0 0.0
      %563 = vmatmul.mubr.f32.gmra.mxu0 %v437
      %v564 = vpop.f32.mrf.mxu0
      %v565 = vadd.f32 0.0, %v564
      %v566 = vpop.f32.mrf.mxu0
      %567 = vmatprep.mubr.f32.mxu0 0.0
      %568 = vmatmul.mubr.f32.gmra.mxu0 %v440
      %v569 = vpop.f32.mrf.mxu0
      %v570 = vadd.f32 0.0, %v569
      %v571 = vpop.f32.mrf.mxu0
      %572 = vmatprep.mubr.f32.mxu0 0.0
      %573 = vmatmul.mubr.f32.gmra.mxu0 %v443
      %v574 = vpop.f32.mrf.mxu0
      %v575 = vadd.f32 0.0, %v574
      %v576 = vpop.f32.mrf.mxu0
      %577 = vmatprep.mubr.f32.mxu0 0.0
      %578 = vmatmul.mubr.f32.gmra.mxu0 %v446
      %v579 = vpop.f32.mrf.mxu0
      %v580 = vadd.f32 0.0, %v579
      %v581 = vpop.f32.mrf.mxu0
      %582 = vmatprep.mubr.f32.mxu0 0.0
      %583 = vmatmul.mubr.f32.gmra.mxu0 %v449
      %v584 = vpop.f32.mrf.mxu0
      %v585 = vadd.f32 0.0, %v584
      %v586 = vpop.f32.mrf.mxu0
      %587 = vmatprep.mubr.f32.mxu0 0.0
      %588 = vmatmul.mubr.f32.gmra.mxu0 %v452
      %v589 = vpop.f32.mrf.mxu0
      %v590 = vadd.f32 0.0, %v589
      %v591 = vpop.f32.mrf.mxu0
      %592 = vmatprep.mubr.f32.mxu0 0.0
      %593 = vmatmul.mubr.f32.gmra.mxu0 %v455
      %v594 = vpop.f32.mrf.mxu0
      %v595 = vadd.f32 0.0, %v594
      %v596 = vpop.f32.mrf.mxu0
      %597 = vmatprep.mubr.f32.mxu0 0.0
      %598 = vmatmul.mubr.f32.gmra.mxu0 %v458
      %v599 = vpop.f32.mrf.mxu0
      %v600 = vadd.f32 0.0, %v599
      %v601 = vpop.f32.mrf.mxu0
      %602 = vmatprep.mubr.f32.mxu0 0.0
      %603 = vmatmul.mubr.f32.gmra.mxu0 %v461
      %v604 = vpop.f32.mrf.mxu0
      %v605 = vadd.f32 0.0, %v604
      %v606 = vpop.f32.mrf.mxu0
      %607 = vdwg.mxu0
      %v624 = vcombine.high %v530, %v530
      %v626 = vunpack.c.l.s4 1966171168
      %v627 = vunpack.c.0.s8 %v626
      %v628 = vlaneseq
      %v629 = vshrl.u32 %v628, 7
      %v630 = vsub.s32 %v627, %v629
      %v631 = vrot.slane %v530, %v630
      %v633 = vunpack.c.l.s4 1966171168
      %v634 = vunpack.c.0.s8 %v633
      %v635 = vlaneseq
      %v636 = vshrl.u32 %v635, 7
      %v637 = vsub.s32 %v634, %v636
      %v638 = vrot.slane %v624, %v637
      %v639 = vcombine.high %v631, %v631
      %v640 = vcombine.high %v638, %v638
      %v642 = vunpack.c.l.s4 1966171168
      %v643 = vunpack.c.0.s8 %v642
      %v644 = vlaneseq
      %v645 = vshrl.u32 %v644, 7
      %v646 = vsub.s32 %v643, %v645
      %v647 = vrot.slane %v631, %v646
      %v649 = vunpack.c.l.s4 1966171168
      %v650 = vunpack.c.0.s8 %v649
      %v651 = vlaneseq
      %v652 = vshrl.u32 %v651, 7
      %v653 = vsub.s32 %v650, %v652
      %v654 = vrot.slane %v638, %v653
      %v656 = vunpack.c.l.s4 1966171168
      %v657 = vunpack.c.0.s8 %v656
      %v658 = vlaneseq
      %v659 = vshrl.u32 %v658, 7
      %v660 = vsub.s32 %v657, %v659
      %v661 = vrot.slane %v639, %v660
      %v663 = vunpack.c.l.s4 1966171168
      %v664 = vunpack.c.0.s8 %v663
      %v665 = vlaneseq
      %v666 = vshrl.u32 %v665, 7
      %v667 = vsub.s32 %v664, %v666
      %v668 = vrot.slane %v640, %v667
      %v669 = vcombine.high %v647, %v647
      %v670 = vcombine.high %v654, %v654
      %v671 = vcombine.high %v661, %v661
      %v672 = vcombine.high %v668, %v668
      %v673 = vcombine.high %v535, %v535
      %v675 = vunpack.c.l.s4 1966171168
      %v676 = vunpack.c.0.s8 %v675
      %v677 = vlaneseq
      %v678 = vshrl.u32 %v677, 7
      %v679 = vsub.s32 %v676, %v678
      %v680 = vrot.slane %v535, %v679
      %v682 = vunpack.c.l.s4 1966171168
      %v683 = vunpack.c.0.s8 %v682
      %v684 = vlaneseq
      %v685 = vshrl.u32 %v684, 7
      %v686 = vsub.s32 %v683, %v685
      %v687 = vrot.slane %v673, %v686
      %v688 = vcombine.high %v680, %v680
      %v689 = vcombine.high %v687, %v687
      %v691 = vunpack.c.l.s4 1966171168
      %v692 = vunpack.c.0.s8 %v691
      %v693 = vlaneseq
      %v694 = vshrl.u32 %v693, 7
      %v695 = vsub.s32 %v692, %v694
      %v696 = vrot.slane %v680, %v695
      %v698 = vunpack.c.l.s4 1966171168
      %v699 = vunpack.c.0.s8 %v698
      %v700 = vlaneseq
      %v701 = vshrl.u32 %v700, 7
      %v702 = vsub.s32 %v699, %v701
      %v703 = vrot.slane %v687, %v702
      %v705 = vunpack.c.l.s4 1966171168
      %v706 = vunpack.c.0.s8 %v705
      %v707 = vlaneseq
      %v708 = vshrl.u32 %v707, 7
      %v709 = vsub.s32 %v706, %v708
      %v710 = vrot.slane %v688, %v709
      %v712 = vunpack.c.l.s4 1966171168
      %v713 = vunpack.c.0.s8 %v712
      %v714 = vlaneseq
      %v715 = vshrl.u32 %v714, 7
      %v716 = vsub.s32 %v713, %v715
      %v717 = vrot.slane %v689, %v716
      %v718 = vcombine.high %v696, %v696
      %v719 = vcombine.high %v703, %v703
      %v720 = vcombine.high %v710, %v710
      %v721 = vcombine.high %v717, %v717
      %v722 = vcombine.high %v540, %v540
      %v724 = vunpack.c.l.s4 1966171168
      %v725 = vunpack.c.0.s8 %v724
      %v726 = vlaneseq
      %v727 = vshrl.u32 %v726, 7
      %v728 = vsub.s32 %v725, %v727
      %v729 = vrot.slane %v540, %v728
      %v731 = vunpack.c.l.s4 1966171168
      %v732 = vunpack.c.0.s8 %v731
      %v733 = vlaneseq
      %v734 = vshrl.u32 %v733, 7
      %v735 = vsub.s32 %v732, %v734
      %v736 = vrot.slane %v722, %v735
      %v737 = vcombine.high %v729, %v729
      %v738 = vcombine.high %v736, %v736
      %v740 = vunpack.c.l.s4 1966171168
      %v741 = vunpack.c.0.s8 %v740
      %v742 = vlaneseq
      %v743 = vshrl.u32 %v742, 7
      %v744 = vsub.s32 %v741, %v743
      %v745 = vrot.slane %v729, %v744
      %v747 = vunpack.c.l.s4 1966171168
      %v748 = vunpack.c.0.s8 %v747
      %v749 = vlaneseq
      %v750 = vshrl.u32 %v749, 7
      %v751 = vsub.s32 %v748, %v750
      %v752 = vrot.slane %v736, %v751
      %v754 = vunpack.c.l.s4 1966171168
      %v755 = vunpack.c.0.s8 %v754
      %v756 = vlaneseq
      %v757 = vshrl.u32 %v756, 7
      %v758 = vsub.s32 %v755, %v757
      %v759 = vrot.slane %v737, %v758
      %v761 = vunpack.c.l.s4 1966171168
      %v762 = vunpack.c.0.s8 %v761
      %v763 = vlaneseq
      %v764 = vshrl.u32 %v763, 7
      %v765 = vsub.s32 %v762, %v764
      %v766 = vrot.slane %v738, %v765
      %v767 = vcombine.high %v745, %v745
      %v768 = vcombine.high %v752, %v752
      %v769 = vcombine.high %v759, %v759
      %v770 = vcombine.high %v766, %v766
      %v771 = vcombine.high %v545, %v545
      %v773 = vunpack.c.l.s4 1966171168
      %v774 = vunpack.c.0.s8 %v773
      %v775 = vlaneseq
      %v776 = vshrl.u32 %v775, 7
      %v777 = vsub.s32 %v774, %v776
      %v778 = vrot.slane %v545, %v777
      %v780 = vunpack.c.l.s4 1966171168
      %v781 = vunpack.c.0.s8 %v780
      %v782 = vlaneseq
      %v783 = vshrl.u32 %v782, 7
      %v784 = vsub.s32 %v781, %v783
      %v785 = vrot.slane %v771, %v784
      %v786 = vcombine.high %v778, %v778
      %v787 = vcombine.high %v785, %v785
      %v789 = vunpack.c.l.s4 1966171168
      %v790 = vunpack.c.0.s8 %v789
      %v791 = vlaneseq
      %v792 = vshrl.u32 %v791, 7
      %v793 = vsub.s32 %v790, %v792
      %v794 = vrot.slane %v778, %v793
      %v796 = vunpack.c.l.s4 1966171168
      %v797 = vunpack.c.0.s8 %v796
      %v798 = vlaneseq
      %v799 = vshrl.u32 %v798, 7
      %v800 = vsub.s32 %v797, %v799
      %v801 = vrot.slane %v785, %v800
      %v803 = vunpack.c.l.s4 1966171168
      %v804 = vunpack.c.0.s8 %v803
      %v805 = vlaneseq
      %v806 = vshrl.u32 %v805, 7
      %v807 = vsub.s32 %v804, %v806
      %v808 = vrot.slane %v786, %v807
      %v810 = vunpack.c.l.s4 1966171168
      %v811 = vunpack.c.0.s8 %v810
      %v812 = vlaneseq
      %v813 = vshrl.u32 %v812, 7
      %v814 = vsub.s32 %v811, %v813
      %v815 = vrot.slane %v787, %v814
      %v816 = vcombine.high %v794, %v794
      %v817 = vcombine.high %v801, %v801
      %v818 = vcombine.high %v808, %v808
      %v819 = vcombine.high %v815, %v815
      %v820 = vcombine.high %v550, %v550
      %v822 = vunpack.c.l.s4 1966171168
      %v823 = vunpack.c.0.s8 %v822
      %v824 = vlaneseq
      %v825 = vshrl.u32 %v824, 7
      %v826 = vsub.s32 %v823, %v825
      %v827 = vrot.slane %v550, %v826
      %v829 = vunpack.c.l.s4 1966171168
      %v830 = vunpack.c.0.s8 %v829
      %v831 = vlaneseq
      %v832 = vshrl.u32 %v831, 7
      %v833 = vsub.s32 %v830, %v832
      %v834 = vrot.slane %v820, %v833
      %v835 = vcombine.high %v827, %v827
      %v836 = vcombine.high %v834, %v834
      %v838 = vunpack.c.l.s4 1966171168
      %v839 = vunpack.c.0.s8 %v838
      %v840 = vlaneseq
      %v841 = vshrl.u32 %v840, 7
      %v842 = vsub.s32 %v839, %v841
      %v843 = vrot.slane %v827, %v842
      %v845 = vunpack.c.l.s4 1966171168
      %v846 = vunpack.c.0.s8 %v845
      %v847 = vlaneseq
      %v848 = vshrl.u32 %v847, 7
      %v849 = vsub.s32 %v846, %v848
      %v850 = vrot.slane %v834, %v849
      %v852 = vunpack.c.l.s4 1966171168
      %v853 = vunpack.c.0.s8 %v852
      %v854 = vlaneseq
      %v855 = vshrl.u32 %v854, 7
      %v856 = vsub.s32 %v853, %v855
      %v857 = vrot.slane %v835, %v856
      %v859 = vunpack.c.l.s4 1966171168
      %v860 = vunpack.c.0.s8 %v859
      %v861 = vlaneseq
      %v862 = vshrl.u32 %v861, 7
      %v863 = vsub.s32 %v860, %v862
      %v864 = vrot.slane %v836, %v863
      %v865 = vcombine.high %v843, %v843
      %v866 = vcombine.high %v850, %v850
      %v867 = vcombine.high %v857, %v857
      %v868 = vcombine.high %v864, %v864
      %v869 = vcombine.high %v555, %v555
      %v871 = vunpack.c.l.s4 1966171168
      %v872 = vunpack.c.0.s8 %v871
      %v873 = vlaneseq
      %v874 = vshrl.u32 %v873, 7
      %v875 = vsub.s32 %v872, %v874
      %v876 = vrot.slane %v555, %v875
      %v878 = vunpack.c.l.s4 1966171168
      %v879 = vunpack.c.0.s8 %v878
      %v880 = vlaneseq
      %v881 = vshrl.u32 %v880, 7
      %v882 = vsub.s32 %v879, %v881
      %v883 = vrot.slane %v869, %v882
      %v884 = vcombine.high %v876, %v876
      %v885 = vcombine.high %v883, %v883
      %v887 = vunpack.c.l.s4 1966171168
      %v888 = vunpack.c.0.s8 %v887
      %v889 = vlaneseq
      %v890 = vshrl.u32 %v889, 7
      %v891 = vsub.s32 %v888, %v890
      %v892 = vrot.slane %v876, %v891
      %v894 = vunpack.c.l.s4 1966171168
      %v895 = vunpack.c.0.s8 %v894
      %v896 = vlaneseq
      %v897 = vshrl.u32 %v896, 7
      %v898 = vsub.s32 %v895, %v897
      %v899 = vrot.slane %v883, %v898
      %v901 = vunpack.c.l.s4 1966171168
      %v902 = vunpack.c.0.s8 %v901
      %v903 = vlaneseq
      %v904 = vshrl.u32 %v903, 7
      %v905 = vsub.s32 %v902, %v904
      %v906 = vrot.slane %v884, %v905
      %v908 = vunpack.c.l.s4 1966171168
      %v909 = vunpack.c.0.s8 %v908
      %v910 = vlaneseq
      %v911 = vshrl.u32 %v910, 7
      %v912 = vsub.s32 %v909, %v911
      %v913 = vrot.slane %v885, %v912
      %v914 = vcombine.high %v892, %v892
      %v915 = vcombine.high %v899, %v899
      %v916 = vcombine.high %v906, %v906
      %v917 = vcombine.high %v913, %v913
      %v918 = vcombine.high %v560, %v560
      %v920 = vunpack.c.l.s4 1966171168
      %v921 = vunpack.c.0.s8 %v920
      %v922 = vlaneseq
      %v923 = vshrl.u32 %v922, 7
      %v924 = vsub.s32 %v921, %v923
      %v925 = vrot.slane %v560, %v924
      %v927 = vunpack.c.l.s4 1966171168
      %v928 = vunpack.c.0.s8 %v927
      %v929 = vlaneseq
      %v930 = vshrl.u32 %v929, 7
      %v931 = vsub.s32 %v928, %v930
      %v932 = vrot.slane %v918, %v931
      %v933 = vcombine.high %v925, %v925
      %v934 = vcombine.high %v932, %v932
      %v936 = vunpack.c.l.s4 1966171168
      %v937 = vunpack.c.0.s8 %v936
      %v938 = vlaneseq
      %v939 = vshrl.u32 %v938, 7
      %v940 = vsub.s32 %v937, %v939
      %v941 = vrot.slane %v925, %v940
      %v943 = vunpack.c.l.s4 1966171168
      %v944 = vunpack.c.0.s8 %v943
      %v945 = vlaneseq
      %v946 = vshrl.u32 %v945, 7
      %v947 = vsub.s32 %v944, %v946
      %v948 = vrot.slane %v932, %v947
      %v950 = vunpack.c.l.s4 1966171168
      %v951 = vunpack.c.0.s8 %v950
      %v952 = vlaneseq
      %v953 = vshrl.u32 %v952, 7
      %v954 = vsub.s32 %v951, %v953
      %v955 = vrot.slane %v933, %v954
      %v957 = vunpack.c.l.s4 1966171168
      %v958 = vunpack.c.0.s8 %v957
      %v959 = vlaneseq
      %v960 = vshrl.u32 %v959, 7
      %v961 = vsub.s32 %v958, %v960
      %v962 = vrot.slane %v934, %v961
      %v963 = vcombine.high %v941, %v941
      %v964 = vcombine.high %v948, %v948
      %v965 = vcombine.high %v955, %v955
      %v966 = vcombine.high %v962, %v962
      %v967 = vcombine.high %v565, %v565
      %v969 = vunpack.c.l.s4 1966171168
      %v970 = vunpack.c.0.s8 %v969
      %v971 = vlaneseq
      %v972 = vshrl.u32 %v971, 7
      %v973 = vsub.s32 %v970, %v972
      %v974 = vrot.slane %v565, %v973
      %v976 = vunpack.c.l.s4 1966171168
      %v977 = vunpack.c.0.s8 %v976
      %v978 = vlaneseq
      %v979 = vshrl.u32 %v978, 7
      %v980 = vsub.s32 %v977, %v979
      %v981 = vrot.slane %v967, %v980
      %v982 = vcombine.high %v974, %v974
      %v983 = vcombine.high %v981, %v981
      %v985 = vunpack.c.l.s4 1966171168
      %v986 = vunpack.c.0.s8 %v985
      %v987 = vlaneseq
      %v988 = vshrl.u32 %v987, 7
      %v989 = vsub.s32 %v986, %v988
      %v990 = vrot.slane %v974, %v989
      %v992 = vunpack.c.l.s4 1966171168
      %v993 = vunpack.c.0.s8 %v992
      %v994 = vlaneseq
      %v995 = vshrl.u32 %v994, 7
      %v996 = vsub.s32 %v993, %v995
      %v997 = vrot.slane %v981, %v996
      %v999 = vunpack.c.l.s4 1966171168
      %v1000 = vunpack.c.0.s8 %v999
      %v1001 = vlaneseq
      %v1002 = vshrl.u32 %v1001, 7
      %v1003 = vsub.s32 %v1000, %v1002
      %v1004 = vrot.slane %v982, %v1003
      %v1006 = vunpack.c.l.s4 1966171168
      %v1007 = vunpack.c.0.s8 %v1006
      %v1008 = vlaneseq
      %v1009 = vshrl.u32 %v1008, 7
      %v1010 = vsub.s32 %v1007, %v1009
      %v1011 = vrot.slane %v983, %v1010
      %v1012 = vcombine.high %v990, %v990
      %v1013 = vcombine.high %v997, %v997
      %v1014 = vcombine.high %v1004, %v1004
      %v1015 = vcombine.high %v1011, %v1011
      %v1016 = vcombine.high %v570, %v570
      %v1018 = vunpack.c.l.s4 1966171168
      %v1019 = vunpack.c.0.s8 %v1018
      %v1020 = vlaneseq
      %v1021 = vshrl.u32 %v1020, 7
      %v1022 = vsub.s32 %v1019, %v1021
      %v1023 = vrot.slane %v570, %v1022
      %v1025 = vunpack.c.l.s4 1966171168
      %v1026 = vunpack.c.0.s8 %v1025
      %v1027 = vlaneseq
      %v1028 = vshrl.u32 %v1027, 7
      %v1029 = vsub.s32 %v1026, %v1028
      %v1030 = vrot.slane %v1016, %v1029
      %v1031 = vcombine.high %v1023, %v1023
      %v1032 = vcombine.high %v1030, %v1030
      %v1034 = vunpack.c.l.s4 1966171168
      %v1035 = vunpack.c.0.s8 %v1034
      %v1036 = vlaneseq
      %v1037 = vshrl.u32 %v1036, 7
      %v1038 = vsub.s32 %v1035, %v1037
      %v1039 = vrot.slane %v1023, %v1038
      %v1041 = vunpack.c.l.s4 1966171168
      %v1042 = vunpack.c.0.s8 %v1041
      %v1043 = vlaneseq
      %v1044 = vshrl.u32 %v1043, 7
      %v1045 = vsub.s32 %v1042, %v1044
      %v1046 = vrot.slane %v1030, %v1045
      %v1048 = vunpack.c.l.s4 1966171168
      %v1049 = vunpack.c.0.s8 %v1048
      %v1050 = vlaneseq
      %v1051 = vshrl.u32 %v1050, 7
      %v1052 = vsub.s32 %v1049, %v1051
      %v1053 = vrot.slane %v1031, %v1052
      %v1055 = vunpack.c.l.s4 1966171168
      %v1056 = vunpack.c.0.s8 %v1055
      %v1057 = vlaneseq
      %v1058 = vshrl.u32 %v1057, 7
      %v1059 = vsub.s32 %v1056, %v1058
      %v1060 = vrot.slane %v1032, %v1059
      %v1061 = vcombine.high %v1039, %v1039
      %v1062 = vcombine.high %v1046, %v1046
      %v1063 = vcombine.high %v1053, %v1053
      %v1064 = vcombine.high %v1060, %v1060
      %v1065 = vcombine.high %v575, %v575
      %v1067 = vunpack.c.l.s4 1966171168
      %v1068 = vunpack.c.0.s8 %v1067
      %v1069 = vlaneseq
      %v1070 = vshrl.u32 %v1069, 7
      %v1071 = vsub.s32 %v1068, %v1070
      %v1072 = vrot.slane %v575, %v1071
      %v1074 = vunpack.c.l.s4 1966171168
      %v1075 = vunpack.c.0.s8 %v1074
      %v1076 = vlaneseq
      %v1077 = vshrl.u32 %v1076, 7
      %v1078 = vsub.s32 %v1075, %v1077
      %v1079 = vrot.slane %v1065, %v1078
      %v1080 = vcombine.high %v1072, %v1072
      %v1081 = vcombine.high %v1079, %v1079
      %v1083 = vunpack.c.l.s4 1966171168
      %v1084 = vunpack.c.0.s8 %v1083
      %v1085 = vlaneseq
      %v1086 = vshrl.u32 %v1085, 7
      %v1087 = vsub.s32 %v1084, %v1086
      %v1088 = vrot.slane %v1072, %v1087
      %v1090 = vunpack.c.l.s4 1966171168
      %v1091 = vunpack.c.0.s8 %v1090
      %v1092 = vlaneseq
      %v1093 = vshrl.u32 %v1092, 7
      %v1094 = vsub.s32 %v1091, %v1093
      %v1095 = vrot.slane %v1079, %v1094
      %v1097 = vunpack.c.l.s4 1966171168
      %v1098 = vunpack.c.0.s8 %v1097
      %v1099 = vlaneseq
      %v1100 = vshrl.u32 %v1099, 7
      %v1101 = vsub.s32 %v1098, %v1100
      %v1102 = vrot.slane %v1080, %v1101
      %v1104 = vunpack.c.l.s4 1966171168
      %v1105 = vunpack.c.0.s8 %v1104
      %v1106 = vlaneseq
      %v1107 = vshrl.u32 %v1106, 7
      %v1108 = vsub.s32 %v1105, %v1107
      %v1109 = vrot.slane %v1081, %v1108
      %v1110 = vcombine.high %v1088, %v1088
      %v1111 = vcombine.high %v1095, %v1095
      %v1112 = vcombine.high %v1102, %v1102
      %v1113 = vcombine.high %v1109, %v1109
      %v1114 = vcombine.high %v580, %v580
      %v1116 = vunpack.c.l.s4 1966171168
      %v1117 = vunpack.c.0.s8 %v1116
      %v1118 = vlaneseq
      %v1119 = vshrl.u32 %v1118, 7
      %v1120 = vsub.s32 %v1117, %v1119
      %v1121 = vrot.slane %v580, %v1120
      %v1123 = vunpack.c.l.s4 1966171168
      %v1124 = vunpack.c.0.s8 %v1123
      %v1125 = vlaneseq
      %v1126 = vshrl.u32 %v1125, 7
      %v1127 = vsub.s32 %v1124, %v1126
      %v1128 = vrot.slane %v1114, %v1127
      %v1129 = vcombine.high %v1121, %v1121
      %v1130 = vcombine.high %v1128, %v1128
      %v1132 = vunpack.c.l.s4 1966171168
      %v1133 = vunpack.c.0.s8 %v1132
      %v1134 = vlaneseq
      %v1135 = vshrl.u32 %v1134, 7
      %v1136 = vsub.s32 %v1133, %v1135
      %v1137 = vrot.slane %v1121, %v1136
      %v1139 = vunpack.c.l.s4 1966171168
      %v1140 = vunpack.c.0.s8 %v1139
      %v1141 = vlaneseq
      %v1142 = vshrl.u32 %v1141, 7
      %v1143 = vsub.s32 %v1140, %v1142
      %v1144 = vrot.slane %v1128, %v1143
      %v1146 = vunpack.c.l.s4 1966171168
      %v1147 = vunpack.c.0.s8 %v1146
      %v1148 = vlaneseq
      %v1149 = vshrl.u32 %v1148, 7
      %v1150 = vsub.s32 %v1147, %v1149
      %v1151 = vrot.slane %v1129, %v1150
      %v1153 = vunpack.c.l.s4 1966171168
      %v1154 = vunpack.c.0.s8 %v1153
      %v1155 = vlaneseq
      %v1156 = vshrl.u32 %v1155, 7
      %v1157 = vsub.s32 %v1154, %v1156
      %v1158 = vrot.slane %v1130, %v1157
      %v1159 = vcombine.high %v1137, %v1137
      %v1160 = vcombine.high %v1144, %v1144
      %v1161 = vcombine.high %v1151, %v1151
      %v1162 = vcombine.high %v1158, %v1158
      %v1163 = vcombine.high %v585, %v585
      %v1165 = vunpack.c.l.s4 1966171168
      %v1166 = vunpack.c.0.s8 %v1165
      %v1167 = vlaneseq
      %v1168 = vshrl.u32 %v1167, 7
      %v1169 = vsub.s32 %v1166, %v1168
      %v1170 = vrot.slane %v585, %v1169
      %v1172 = vunpack.c.l.s4 1966171168
      %v1173 = vunpack.c.0.s8 %v1172
      %v1174 = vlaneseq
      %v1175 = vshrl.u32 %v1174, 7
      %v1176 = vsub.s32 %v1173, %v1175
      %v1177 = vrot.slane %v1163, %v1176
      %v1178 = vcombine.high %v1170, %v1170
      %v1179 = vcombine.high %v1177, %v1177
      %v1181 = vunpack.c.l.s4 1966171168
      %v1182 = vunpack.c.0.s8 %v1181
      %v1183 = vlaneseq
      %v1184 = vshrl.u32 %v1183, 7
      %v1185 = vsub.s32 %v1182, %v1184
      %v1186 = vrot.slane %v1170, %v1185
      %v1188 = vunpack.c.l.s4 1966171168
      %v1189 = vunpack.c.0.s8 %v1188
      %v1190 = vlaneseq
      %v1191 = vshrl.u32 %v1190, 7
      %v1192 = vsub.s32 %v1189, %v1191
      %v1193 = vrot.slane %v1177, %v1192
      %v1195 = vunpack.c.l.s4 1966171168
      %v1196 = vunpack.c.0.s8 %v1195
      %v1197 = vlaneseq
      %v1198 = vshrl.u32 %v1197, 7
      %v1199 = vsub.s32 %v1196, %v1198
      %v1200 = vrot.slane %v1178, %v1199
      %v1202 = vunpack.c.l.s4 1966171168
      %v1203 = vunpack.c.0.s8 %v1202
      %v1204 = vlaneseq
      %v1205 = vshrl.u32 %v1204, 7
      %v1206 = vsub.s32 %v1203, %v1205
      %v1207 = vrot.slane %v1179, %v1206
      %v1208 = vcombine.high %v1186, %v1186
      %v1209 = vcombine.high %v1193, %v1193
      %v1210 = vcombine.high %v1200, %v1200
      %v1211 = vcombine.high %v1207, %v1207
      %v1212 = vcombine.high %v590, %v590
      %v1214 = vunpack.c.l.s4 1966171168
      %v1215 = vunpack.c.0.s8 %v1214
      %v1216 = vlaneseq
      %v1217 = vshrl.u32 %v1216, 7
      %v1218 = vsub.s32 %v1215, %v1217
      %v1219 = vrot.slane %v590, %v1218
      %v1221 = vunpack.c.l.s4 1966171168
      %v1222 = vunpack.c.0.s8 %v1221
      %v1223 = vlaneseq
      %v1224 = vshrl.u32 %v1223, 7
      %v1225 = vsub.s32 %v1222, %v1224
      %v1226 = vrot.slane %v1212, %v1225
      %v1227 = vcombine.high %v1219, %v1219
      %v1228 = vcombine.high %v1226, %v1226
      %v1230 = vunpack.c.l.s4 1966171168
      %v1231 = vunpack.c.0.s8 %v1230
      %v1232 = vlaneseq
      %v1233 = vshrl.u32 %v1232, 7
      %v1234 = vsub.s32 %v1231, %v1233
      %v1235 = vrot.slane %v1219, %v1234
      %v1237 = vunpack.c.l.s4 1966171168
      %v1238 = vunpack.c.0.s8 %v1237
      %v1239 = vlaneseq
      %v1240 = vshrl.u32 %v1239, 7
      %v1241 = vsub.s32 %v1238, %v1240
      %v1242 = vrot.slane %v1226, %v1241
      %v1244 = vunpack.c.l.s4 1966171168
      %v1245 = vunpack.c.0.s8 %v1244
      %v1246 = vlaneseq
      %v1247 = vshrl.u32 %v1246, 7
      %v1248 = vsub.s32 %v1245, %v1247
      %v1249 = vrot.slane %v1227, %v1248
      %v1251 = vunpack.c.l.s4 1966171168
      %v1252 = vunpack.c.0.s8 %v1251
      %v1253 = vlaneseq
      %v1254 = vshrl.u32 %v1253, 7
      %v1255 = vsub.s32 %v1252, %v1254
      %v1256 = vrot.slane %v1228, %v1255
      %v1257 = vcombine.high %v1235, %v1235
      %v1258 = vcombine.high %v1242, %v1242
      %v1259 = vcombine.high %v1249, %v1249
      %v1260 = vcombine.high %v1256, %v1256
      %v1261 = vcombine.high %v595, %v595
      %v1263 = vunpack.c.l.s4 1966171168
      %v1264 = vunpack.c.0.s8 %v1263
      %v1265 = vlaneseq
      %v1266 = vshrl.u32 %v1265, 7
      %v1267 = vsub.s32 %v1264, %v1266
      %v1268 = vrot.slane %v595, %v1267
      %v1270 = vunpack.c.l.s4 1966171168
      %v1271 = vunpack.c.0.s8 %v1270
      %v1272 = vlaneseq
      %v1273 = vshrl.u32 %v1272, 7
      %v1274 = vsub.s32 %v1271, %v1273
      %v1275 = vrot.slane %v1261, %v1274
      %v1276 = vcombine.high %v1268, %v1268
      %v1277 = vcombine.high %v1275, %v1275
      %v1279 = vunpack.c.l.s4 1966171168
      %v1280 = vunpack.c.0.s8 %v1279
      %v1281 = vlaneseq
      %v1282 = vshrl.u32 %v1281, 7
      %v1283 = vsub.s32 %v1280, %v1282
      %v1284 = vrot.slane %v1268, %v1283
      %v1286 = vunpack.c.l.s4 1966171168
      %v1287 = vunpack.c.0.s8 %v1286
      %v1288 = vlaneseq
      %v1289 = vshrl.u32 %v1288, 7
      %v1290 = vsub.s32 %v1287, %v1289
      %v1291 = vrot.slane %v1275, %v1290
      %v1293 = vunpack.c.l.s4 1966171168
      %v1294 = vunpack.c.0.s8 %v1293
      %v1295 = vlaneseq
      %v1296 = vshrl.u32 %v1295, 7
      %v1297 = vsub.s32 %v1294, %v1296
      %v1298 = vrot.slane %v1276, %v1297
      %v1300 = vunpack.c.l.s4 1966171168
      %v1301 = vunpack.c.0.s8 %v1300
      %v1302 = vlaneseq
      %v1303 = vshrl.u32 %v1302, 7
      %v1304 = vsub.s32 %v1301, %v1303
      %v1305 = vrot.slane %v1277, %v1304
      %v1306 = vcombine.high %v1284, %v1284
      %v1307 = vcombine.high %v1291, %v1291
      %v1308 = vcombine.high %v1298, %v1298
      %v1309 = vcombine.high %v1305, %v1305
      %v1310 = vcombine.high %v600, %v600
      %v1312 = vunpack.c.l.s4 1966171168
      %v1313 = vunpack.c.0.s8 %v1312
      %v1314 = vlaneseq
      %v1315 = vshrl.u32 %v1314, 7
      %v1316 = vsub.s32 %v1313, %v1315
      %v1317 = vrot.slane %v600, %v1316
      %v1319 = vunpack.c.l.s4 1966171168
      %v1320 = vunpack.c.0.s8 %v1319
      %v1321 = vlaneseq
      %v1322 = vshrl.u32 %v1321, 7
      %v1323 = vsub.s32 %v1320, %v1322
      %v1324 = vrot.slane %v1310, %v1323
      %v1325 = vcombine.high %v1317, %v1317
      %v1326 = vcombine.high %v1324, %v1324
      %v1328 = vunpack.c.l.s4 1966171168
      %v1329 = vunpack.c.0.s8 %v1328
      %v1330 = vlaneseq
      %v1331 = vshrl.u32 %v1330, 7
      %v1332 = vsub.s32 %v1329, %v1331
      %v1333 = vrot.slane %v1317, %v1332
      %v1335 = vunpack.c.l.s4 1966171168
      %v1336 = vunpack.c.0.s8 %v1335
      %v1337 = vlaneseq
      %v1338 = vshrl.u32 %v1337, 7
      %v1339 = vsub.s32 %v1336, %v1338
      %v1340 = vrot.slane %v1324, %v1339
      %v1342 = vunpack.c.l.s4 1966171168
      %v1343 = vunpack.c.0.s8 %v1342
      %v1344 = vlaneseq
      %v1345 = vshrl.u32 %v1344, 7
      %v1346 = vsub.s32 %v1343, %v1345
      %v1347 = vrot.slane %v1325, %v1346
      %v1349 = vunpack.c.l.s4 1966171168
      %v1350 = vunpack.c.0.s8 %v1349
      %v1351 = vlaneseq
      %v1352 = vshrl.u32 %v1351, 7
      %v1353 = vsub.s32 %v1350, %v1352
      %v1354 = vrot.slane %v1326, %v1353
      %v1355 = vcombine.high %v1333, %v1333
      %v1356 = vcombine.high %v1340, %v1340
      %v1357 = vcombine.high %v1347, %v1347
      %v1358 = vcombine.high %v1354, %v1354
      %v1359 = vcombine.high %v605, %v605
      %v1361 = vunpack.c.l.s4 1966171168
      %v1362 = vunpack.c.0.s8 %v1361
      %v1363 = vlaneseq
      %v1364 = vshrl.u32 %v1363, 7
      %v1365 = vsub.s32 %v1362, %v1364
      %v1366 = vrot.slane %v605, %v1365
      %v1368 = vunpack.c.l.s4 1966171168
      %v1369 = vunpack.c.0.s8 %v1368
      %v1370 = vlaneseq
      %v1371 = vshrl.u32 %v1370, 7
      %v1372 = vsub.s32 %v1369, %v1371
      %v1373 = vrot.slane %v1359, %v1372
      %v1374 = vcombine.high %v1366, %v1366
      %v1375 = vcombine.high %v1373, %v1373
      %v1377 = vunpack.c.l.s4 1966171168
      %v1378 = vunpack.c.0.s8 %v1377
      %v1379 = vlaneseq
      %v1380 = vshrl.u32 %v1379, 7
      %v1381 = vsub.s32 %v1378, %v1380
      %v1382 = vrot.slane %v1366, %v1381
      %v1384 = vunpack.c.l.s4 1966171168
      %v1385 = vunpack.c.0.s8 %v1384
      %v1386 = vlaneseq
      %v1387 = vshrl.u32 %v1386, 7
      %v1388 = vsub.s32 %v1385, %v1387
      %v1389 = vrot.slane %v1373, %v1388
      %v1391 = vunpack.c.l.s4 1966171168
      %v1392 = vunpack.c.0.s8 %v1391
      %v1393 = vlaneseq
      %v1394 = vshrl.u32 %v1393, 7
      %v1395 = vsub.s32 %v1392, %v1394
      %v1396 = vrot.slane %v1374, %v1395
      %v1398 = vunpack.c.l.s4 1966171168
      %v1399 = vunpack.c.0.s8 %v1398
      %v1400 = vlaneseq
      %v1401 = vshrl.u32 %v1400, 7
      %v1402 = vsub.s32 %v1399, %v1401
      %v1403 = vrot.slane %v1375, %v1402
      %v1404 = vcombine.high %v1382, %v1382
      %v1405 = vcombine.high %v1389, %v1389
      %v1406 = vcombine.high %v1396, %v1396
      %v1407 = vcombine.high %v1403, %v1403
      %v1408 = vlaneseq
      %v1409 = vshrl.u32 %v1408, 7
      %v1410 = vsub.s32 0, %v1409
      %v1411 = vrot.slane %v647, %v1410
      %v1412 = vlaneseq
      %v1413 = vshrl.u32 %v1412, 7
      %v1414 = vsub.s32 0, %v1413
      %v1415 = vrot.slane %v661, %v1414
      %v1416 = vlaneseq
      %v1417 = vshrl.u32 %v1416, 7
      %v1418 = vsub.s32 0, %v1417
      %v1419 = vrot.slane %v669, %v1418
      %v1420 = vlaneseq
      %v1421 = vshrl.u32 %v1420, 7
      %v1422 = vsub.s32 0, %v1421
      %v1423 = vrot.slane %v671, %v1422
      %v1424 = vlaneseq
      %v1425 = vshrl.u32 %v1424, 7
      %v1426 = vsub.s32 0, %v1425
      %v1427 = vrot.slane %v654, %v1426
      %v1428 = vlaneseq
      %v1429 = vshrl.u32 %v1428, 7
      %v1430 = vsub.s32 0, %v1429
      %v1431 = vrot.slane %v668, %v1430
      %v1432 = vlaneseq
      %v1433 = vshrl.u32 %v1432, 7
      %v1434 = vsub.s32 0, %v1433
      %v1435 = vrot.slane %v670, %v1434
      %v1436 = vlaneseq
      %v1437 = vshrl.u32 %v1436, 7
      %v1438 = vsub.s32 0, %v1437
      %v1439 = vrot.slane %v672, %v1438
      %v1440 = vlaneseq
      %v1441 = vshrl.u32 %v1440, 7
      %v1442 = vsub.s32 0, %v1441
      %v1443 = vrot.slane %v696, %v1442
      %v1444 = vlaneseq
      %v1445 = vshrl.u32 %v1444, 7
      %v1446 = vsub.s32 0, %v1445
      %v1447 = vrot.slane %v710, %v1446
      %v1448 = vlaneseq
      %v1449 = vshrl.u32 %v1448, 7
      %v1450 = vsub.s32 0, %v1449
      %v1451 = vrot.slane %v718, %v1450
      %v1452 = vlaneseq
      %v1453 = vshrl.u32 %v1452, 7
      %v1454 = vsub.s32 0, %v1453
      %v1455 = vrot.slane %v720, %v1454
      %v1456 = vlaneseq
      %v1457 = vshrl.u32 %v1456, 7
      %v1458 = vsub.s32 0, %v1457
      %v1459 = vrot.slane %v703, %v1458
      %v1460 = vlaneseq
      %v1461 = vshrl.u32 %v1460, 7
      %v1462 = vsub.s32 0, %v1461
      %v1463 = vrot.slane %v717, %v1462
      %v1464 = vlaneseq
      %v1465 = vshrl.u32 %v1464, 7
      %v1466 = vsub.s32 0, %v1465
      %v1467 = vrot.slane %v719, %v1466
      %v1468 = vlaneseq
      %v1469 = vshrl.u32 %v1468, 7
      %v1470 = vsub.s32 0, %v1469
      %v1471 = vrot.slane %v721, %v1470
      %v1472 = vlaneseq
      %v1473 = vshrl.u32 %v1472, 7
      %v1474 = vsub.s32 0, %v1473
      %v1475 = vrot.slane %v745, %v1474
      %v1476 = vlaneseq
      %v1477 = vshrl.u32 %v1476, 7
      %v1478 = vsub.s32 0, %v1477
      %v1479 = vrot.slane %v759, %v1478
      %v1480 = vlaneseq
      %v1481 = vshrl.u32 %v1480, 7
      %v1482 = vsub.s32 0, %v1481
      %v1483 = vrot.slane %v767, %v1482
      %v1484 = vlaneseq
      %v1485 = vshrl.u32 %v1484, 7
      %v1486 = vsub.s32 0, %v1485
      %v1487 = vrot.slane %v769, %v1486
      %v1488 = vlaneseq
      %v1489 = vshrl.u32 %v1488, 7
      %v1490 = vsub.s32 0, %v1489
      %v1491 = vrot.slane %v752, %v1490
      %v1492 = vlaneseq
      %v1493 = vshrl.u32 %v1492, 7
      %v1494 = vsub.s32 0, %v1493
      %v1495 = vrot.slane %v766, %v1494
      %v1496 = vlaneseq
      %v1497 = vshrl.u32 %v1496, 7
      %v1498 = vsub.s32 0, %v1497
      %v1499 = vrot.slane %v768, %v1498
      %v1500 = vlaneseq
      %v1501 = vshrl.u32 %v1500, 7
      %v1502 = vsub.s32 0, %v1501
      %v1503 = vrot.slane %v770, %v1502
      %v1504 = vlaneseq
      %v1505 = vshrl.u32 %v1504, 7
      %v1506 = vsub.s32 0, %v1505
      %v1507 = vrot.slane %v794, %v1506
      %v1508 = vlaneseq
      %v1509 = vshrl.u32 %v1508, 7
      %v1510 = vsub.s32 0, %v1509
      %v1511 = vrot.slane %v808, %v1510
      %v1512 = vlaneseq
      %v1513 = vshrl.u32 %v1512, 7
      %v1514 = vsub.s32 0, %v1513
      %v1515 = vrot.slane %v816, %v1514
      %v1516 = vlaneseq
      %v1517 = vshrl.u32 %v1516, 7
      %v1518 = vsub.s32 0, %v1517
      %v1519 = vrot.slane %v818, %v1518
      %v1520 = vlaneseq
      %v1521 = vshrl.u32 %v1520, 7
      %v1522 = vsub.s32 0, %v1521
      %v1523 = vrot.slane %v801, %v1522
      %v1524 = vlaneseq
      %v1525 = vshrl.u32 %v1524, 7
      %v1526 = vsub.s32 0, %v1525
      %v1527 = vrot.slane %v815, %v1526
      %v1528 = vlaneseq
      %v1529 = vshrl.u32 %v1528, 7
      %v1530 = vsub.s32 0, %v1529
      %v1531 = vrot.slane %v817, %v1530
      %v1532 = vlaneseq
      %v1533 = vshrl.u32 %v1532, 7
      %v1534 = vsub.s32 0, %v1533
      %v1535 = vrot.slane %v819, %v1534
      %v1536 = vlaneseq
      %v1537 = vshrl.u32 %v1536, 7
      %v1538 = vsub.s32 0, %v1537
      %v1539 = vrot.slane %v843, %v1538
      %v1540 = vlaneseq
      %v1541 = vshrl.u32 %v1540, 7
      %v1542 = vsub.s32 0, %v1541
      %v1543 = vrot.slane %v857, %v1542
      %v1544 = vlaneseq
      %v1545 = vshrl.u32 %v1544, 7
      %v1546 = vsub.s32 0, %v1545
      %v1547 = vrot.slane %v865, %v1546
      %v1548 = vlaneseq
      %v1549 = vshrl.u32 %v1548, 7
      %v1550 = vsub.s32 0, %v1549
      %v1551 = vrot.slane %v867, %v1550
      %v1552 = vlaneseq
      %v1553 = vshrl.u32 %v1552, 7
      %v1554 = vsub.s32 0, %v1553
      %v1555 = vrot.slane %v850, %v1554
      %v1556 = vlaneseq
      %v1557 = vshrl.u32 %v1556, 7
      %v1558 = vsub.s32 0, %v1557
      %v1559 = vrot.slane %v864, %v1558
      %v1560 = vlaneseq
      %v1561 = vshrl.u32 %v1560, 7
      %v1562 = vsub.s32 0, %v1561
      %v1563 = vrot.slane %v866, %v1562
      %v1564 = vlaneseq
      %v1565 = vshrl.u32 %v1564, 7
      %v1566 = vsub.s32 0, %v1565
      %v1567 = vrot.slane %v868, %v1566
      %v1568 = vlaneseq
      %v1569 = vshrl.u32 %v1568, 7
      %v1570 = vsub.s32 0, %v1569
      %v1571 = vrot.slane %v892, %v1570
      %v1572 = vlaneseq
      %v1573 = vshrl.u32 %v1572, 7
      %v1574 = vsub.s32 0, %v1573
      %v1575 = vrot.slane %v906, %v1574
      %v1576 = vlaneseq
      %v1577 = vshrl.u32 %v1576, 7
      %v1578 = vsub.s32 0, %v1577
      %v1579 = vrot.slane %v914, %v1578
      %v1580 = vlaneseq
      %v1581 = vshrl.u32 %v1580, 7
      %v1582 = vsub.s32 0, %v1581
      %v1583 = vrot.slane %v916, %v1582
      %v1584 = vlaneseq
      %v1585 = vshrl.u32 %v1584, 7
      %v1586 = vsub.s32 0, %v1585
      %v1587 = vrot.slane %v899, %v1586
      %v1588 = vlaneseq
      %v1589 = vshrl.u32 %v1588, 7
      %v1590 = vsub.s32 0, %v1589
      %v1591 = vrot.slane %v913, %v1590
      %v1592 = vlaneseq
      %v1593 = vshrl.u32 %v1592, 7
      %v1594 = vsub.s32 0, %v1593
      %v1595 = vrot.slane %v915, %v1594
      %v1596 = vlaneseq
      %v1597 = vshrl.u32 %v1596, 7
      %v1598 = vsub.s32 0, %v1597
      %v1599 = vrot.slane %v917, %v1598
      %v1600 = vlaneseq
      %v1601 = vshrl.u32 %v1600, 7
      %v1602 = vsub.s32 0, %v1601
      %v1603 = vrot.slane %v941, %v1602
      %v1604 = vlaneseq
      %v1605 = vshrl.u32 %v1604, 7
      %v1606 = vsub.s32 0, %v1605
      %v1607 = vrot.slane %v955, %v1606
      %v1608 = vlaneseq
      %v1609 = vshrl.u32 %v1608, 7
      %v1610 = vsub.s32 0, %v1609
      %v1611 = vrot.slane %v963, %v1610
      %v1612 = vlaneseq
      %v1613 = vshrl.u32 %v1612, 7
      %v1614 = vsub.s32 0, %v1613
      %v1615 = vrot.slane %v965, %v1614
      %v1616 = vlaneseq
      %v1617 = vshrl.u32 %v1616, 7
      %v1618 = vsub.s32 0, %v1617
      %v1619 = vrot.slane %v948, %v1618
      %v1620 = vlaneseq
      %v1621 = vshrl.u32 %v1620, 7
      %v1622 = vsub.s32 0, %v1621
      %v1623 = vrot.slane %v962, %v1622
      %v1624 = vlaneseq
      %v1625 = vshrl.u32 %v1624, 7
      %v1626 = vsub.s32 0, %v1625
      %v1627 = vrot.slane %v964, %v1626
      %v1628 = vlaneseq
      %v1629 = vshrl.u32 %v1628, 7
      %v1630 = vsub.s32 0, %v1629
      %v1631 = vrot.slane %v966, %v1630
      %v1632 = vlaneseq
      %v1633 = vshrl.u32 %v1632, 7
      %v1634 = vsub.s32 0, %v1633
      %v1635 = vrot.slane %v990, %v1634
      %v1636 = vlaneseq
      %v1637 = vshrl.u32 %v1636, 7
      %v1638 = vsub.s32 0, %v1637
      %v1639 = vrot.slane %v1004, %v1638
      %v1640 = vlaneseq
      %v1641 = vshrl.u32 %v1640, 7
      %v1642 = vsub.s32 0, %v1641
      %v1643 = vrot.slane %v1012, %v1642
      %v1644 = vlaneseq
      %v1645 = vshrl.u32 %v1644, 7
      %v1646 = vsub.s32 0, %v1645
      %v1647 = vrot.slane %v1014, %v1646
      %v1648 = vlaneseq
      %v1649 = vshrl.u32 %v1648, 7
      %v1650 = vsub.s32 0, %v1649
      %v1651 = vrot.slane %v997, %v1650
      %v1652 = vlaneseq
      %v1653 = vshrl.u32 %v1652, 7
      %v1654 = vsub.s32 0, %v1653
      %v1655 = vrot.slane %v1011, %v1654
      %v1656 = vlaneseq
      %v1657 = vshrl.u32 %v1656, 7
      %v1658 = vsub.s32 0, %v1657
      %v1659 = vrot.slane %v1013, %v1658
      %v1660 = vlaneseq
      %v1661 = vshrl.u32 %v1660, 7
      %v1662 = vsub.s32 0, %v1661
      %v1663 = vrot.slane %v1015, %v1662
      %v1664 = vlaneseq
      %v1665 = vshrl.u32 %v1664, 7
      %v1666 = vsub.s32 0, %v1665
      %v1667 = vrot.slane %v1039, %v1666
      %v1668 = vlaneseq
      %v1669 = vshrl.u32 %v1668, 7
      %v1670 = vsub.s32 0, %v1669
      %v1671 = vrot.slane %v1053, %v1670
      %v1672 = vlaneseq
      %v1673 = vshrl.u32 %v1672, 7
      %v1674 = vsub.s32 0, %v1673
      %v1675 = vrot.slane %v1061, %v1674
      %v1676 = vlaneseq
      %v1677 = vshrl.u32 %v1676, 7
      %v1678 = vsub.s32 0, %v1677
      %v1679 = vrot.slane %v1063, %v1678
      %v1680 = vlaneseq
      %v1681 = vshrl.u32 %v1680, 7
      %v1682 = vsub.s32 0, %v1681
      %v1683 = vrot.slane %v1046, %v1682
      %v1684 = vlaneseq
      %v1685 = vshrl.u32 %v1684, 7
      %v1686 = vsub.s32 0, %v1685
      %v1687 = vrot.slane %v1060, %v1686
      %v1688 = vlaneseq
      %v1689 = vshrl.u32 %v1688, 7
      %v1690 = vsub.s32 0, %v1689
      %v1691 = vrot.slane %v1062, %v1690
      %v1692 = vlaneseq
      %v1693 = vshrl.u32 %v1692, 7
      %v1694 = vsub.s32 0, %v1693
      %v1695 = vrot.slane %v1064, %v1694
      %v1696 = vlaneseq
      %v1697 = vshrl.u32 %v1696, 7
      %v1698 = vsub.s32 0, %v1697
      %v1699 = vrot.slane %v1088, %v1698
      %v1700 = vlaneseq
      %v1701 = vshrl.u32 %v1700, 7
      %v1702 = vsub.s32 0, %v1701
      %v1703 = vrot.slane %v1102, %v1702
      %v1704 = vlaneseq
      %v1705 = vshrl.u32 %v1704, 7
      %v1706 = vsub.s32 0, %v1705
      %v1707 = vrot.slane %v1110, %v1706
      %v1708 = vlaneseq
      %v1709 = vshrl.u32 %v1708, 7
      %v1710 = vsub.s32 0, %v1709
      %v1711 = vrot.slane %v1112, %v1710
      %v1712 = vlaneseq
      %v1713 = vshrl.u32 %v1712, 7
      %v1714 = vsub.s32 0, %v1713
      %v1715 = vrot.slane %v1095, %v1714
      %v1716 = vlaneseq
      %v1717 = vshrl.u32 %v1716, 7
      %v1718 = vsub.s32 0, %v1717
      %v1719 = vrot.slane %v1109, %v1718
      %v1720 = vlaneseq
      %v1721 = vshrl.u32 %v1720, 7
      %v1722 = vsub.s32 0, %v1721
      %v1723 = vrot.slane %v1111, %v1722
      %v1724 = vlaneseq
      %v1725 = vshrl.u32 %v1724, 7
      %v1726 = vsub.s32 0, %v1725
      %v1727 = vrot.slane %v1113, %v1726
      %v1728 = vlaneseq
      %v1729 = vshrl.u32 %v1728, 7
      %v1730 = vsub.s32 0, %v1729
      %v1731 = vrot.slane %v1137, %v1730
      %v1732 = vlaneseq
      %v1733 = vshrl.u32 %v1732, 7
      %v1734 = vsub.s32 0, %v1733
      %v1735 = vrot.slane %v1151, %v1734
      %v1736 = vlaneseq
      %v1737 = vshrl.u32 %v1736, 7
      %v1738 = vsub.s32 0, %v1737
      %v1739 = vrot.slane %v1159, %v1738
      %v1740 = vlaneseq
      %v1741 = vshrl.u32 %v1740, 7
      %v1742 = vsub.s32 0, %v1741
      %v1743 = vrot.slane %v1161, %v1742
      %v1744 = vlaneseq
      %v1745 = vshrl.u32 %v1744, 7
      %v1746 = vsub.s32 0, %v1745
      %v1747 = vrot.slane %v1144, %v1746
      %v1748 = vlaneseq
      %v1749 = vshrl.u32 %v1748, 7
      %v1750 = vsub.s32 0, %v1749
      %v1751 = vrot.slane %v1158, %v1750
      %v1752 = vlaneseq
      %v1753 = vshrl.u32 %v1752, 7
      %v1754 = vsub.s32 0, %v1753
      %v1755 = vrot.slane %v1160, %v1754
      %v1756 = vlaneseq
      %v1757 = vshrl.u32 %v1756, 7
      %v1758 = vsub.s32 0, %v1757
      %v1759 = vrot.slane %v1162, %v1758
      %v1760 = vlaneseq
      %v1761 = vshrl.u32 %v1760, 7
      %v1762 = vsub.s32 0, %v1761
      %v1763 = vrot.slane %v1186, %v1762
      %v1764 = vlaneseq
      %v1765 = vshrl.u32 %v1764, 7
      %v1766 = vsub.s32 0, %v1765
      %v1767 = vrot.slane %v1200, %v1766
      %v1768 = vlaneseq
      %v1769 = vshrl.u32 %v1768, 7
      %v1770 = vsub.s32 0, %v1769
      %v1771 = vrot.slane %v1208, %v1770
      %v1772 = vlaneseq
      %v1773 = vshrl.u32 %v1772, 7
      %v1774 = vsub.s32 0, %v1773
      %v1775 = vrot.slane %v1210, %v1774
      %v1776 = vlaneseq
      %v1777 = vshrl.u32 %v1776, 7
      %v1778 = vsub.s32 0, %v1777
      %v1779 = vrot.slane %v1193, %v1778
      %v1780 = vlaneseq
      %v1781 = vshrl.u32 %v1780, 7
      %v1782 = vsub.s32 0, %v1781
      %v1783 = vrot.slane %v1207, %v1782
      %v1784 = vlaneseq
      %v1785 = vshrl.u32 %v1784, 7
      %v1786 = vsub.s32 0, %v1785
      %v1787 = vrot.slane %v1209, %v1786
      %v1788 = vlaneseq
      %v1789 = vshrl.u32 %v1788, 7
      %v1790 = vsub.s32 0, %v1789
      %v1791 = vrot.slane %v1211, %v1790
      %v1792 = vlaneseq
      %v1793 = vshrl.u32 %v1792, 7
      %v1794 = vsub.s32 0, %v1793
      %v1795 = vrot.slane %v1235, %v1794
      %v1796 = vlaneseq
      %v1797 = vshrl.u32 %v1796, 7
      %v1798 = vsub.s32 0, %v1797
      %v1799 = vrot.slane %v1249, %v1798
      %v1800 = vlaneseq
      %v1801 = vshrl.u32 %v1800, 7
      %v1802 = vsub.s32 0, %v1801
      %v1803 = vrot.slane %v1257, %v1802
      %v1804 = vlaneseq
      %v1805 = vshrl.u32 %v1804, 7
      %v1806 = vsub.s32 0, %v1805
      %v1807 = vrot.slane %v1259, %v1806
      %v1808 = vlaneseq
      %v1809 = vshrl.u32 %v1808, 7
      %v1810 = vsub.s32 0, %v1809
      %v1811 = vrot.slane %v1242, %v1810
      %v1812 = vlaneseq
      %v1813 = vshrl.u32 %v1812, 7
      %v1814 = vsub.s32 0, %v1813
      %v1815 = vrot.slane %v1256, %v1814
      %v1816 = vlaneseq
      %v1817 = vshrl.u32 %v1816, 7
      %v1818 = vsub.s32 0, %v1817
      %v1819 = vrot.slane %v1258, %v1818
      %v1820 = vlaneseq
      %v1821 = vshrl.u32 %v1820, 7
      %v1822 = vsub.s32 0, %v1821
      %v1823 = vrot.slane %v1260, %v1822
      %v1824 = vlaneseq
      %v1825 = vshrl.u32 %v1824, 7
      %v1826 = vsub.s32 0, %v1825
      %v1827 = vrot.slane %v1284, %v1826
      %v1828 = vlaneseq
      %v1829 = vshrl.u32 %v1828, 7
      %v1830 = vsub.s32 0, %v1829
      %v1831 = vrot.slane %v1298, %v1830
      %v1832 = vlaneseq
      %v1833 = vshrl.u32 %v1832, 7
      %v1834 = vsub.s32 0, %v1833
      %v1835 = vrot.slane %v1306, %v1834
      %v1836 = vlaneseq
      %v1837 = vshrl.u32 %v1836, 7
      %v1838 = vsub.s32 0, %v1837
      %v1839 = vrot.slane %v1308, %v1838
      %v1840 = vlaneseq
      %v1841 = vshrl.u32 %v1840, 7
      %v1842 = vsub.s32 0, %v1841
      %v1843 = vrot.slane %v1291, %v1842
      %v1844 = vlaneseq
      %v1845 = vshrl.u32 %v1844, 7
      %v1846 = vsub.s32 0, %v1845
      %v1847 = vrot.slane %v1305, %v1846
      %v1848 = vlaneseq
      %v1849 = vshrl.u32 %v1848, 7
      %v1850 = vsub.s32 0, %v1849
      %v1851 = vrot.slane %v1307, %v1850
      %v1852 = vlaneseq
      %v1853 = vshrl.u32 %v1852, 7
      %v1854 = vsub.s32 0, %v1853
      %v1855 = vrot.slane %v1309, %v1854
      %v1856 = vlaneseq
      %v1857 = vshrl.u32 %v1856, 7
      %v1858 = vsub.s32 0, %v1857
      %v1859 = vrot.slane %v1333, %v1858
      %v1860 = vlaneseq
      %v1861 = vshrl.u32 %v1860, 7
      %v1862 = vsub.s32 0, %v1861
      %v1863 = vrot.slane %v1347, %v1862
      %v1864 = vlaneseq
      %v1865 = vshrl.u32 %v1864, 7
      %v1866 = vsub.s32 0, %v1865
      %v1867 = vrot.slane %v1355, %v1866
      %v1868 = vlaneseq
      %v1869 = vshrl.u32 %v1868, 7
      %v1870 = vsub.s32 0, %v1869
      %v1871 = vrot.slane %v1357, %v1870
      %v1872 = vlaneseq
      %v1873 = vshrl.u32 %v1872, 7
      %v1874 = vsub.s32 0, %v1873
      %v1875 = vrot.slane %v1340, %v1874
      %v1876 = vlaneseq
      %v1877 = vshrl.u32 %v1876, 7
      %v1878 = vsub.s32 0, %v1877
      %v1879 = vrot.slane %v1354, %v1878
      %v1880 = vlaneseq
      %v1881 = vshrl.u32 %v1880, 7
      %v1882 = vsub.s32 0, %v1881
      %v1883 = vrot.slane %v1356, %v1882
      %v1884 = vlaneseq
      %v1885 = vshrl.u32 %v1884, 7
      %v1886 = vsub.s32 0, %v1885
      %v1887 = vrot.slane %v1358, %v1886
      %v1888 = vlaneseq
      %v1889 = vshrl.u32 %v1888, 7
      %v1890 = vsub.s32 0, %v1889
      %v1891 = vrot.slane %v1382, %v1890
      %v1892 = vlaneseq
      %v1893 = vshrl.u32 %v1892, 7
      %v1894 = vsub.s32 0, %v1893
      %v1895 = vrot.slane %v1396, %v1894
      %v1896 = vlaneseq
      %v1897 = vshrl.u32 %v1896, 7
      %v1898 = vsub.s32 0, %v1897
      %v1899 = vrot.slane %v1404, %v1898
      %v1900 = vlaneseq
      %v1901 = vshrl.u32 %v1900, 7
      %v1902 = vsub.s32 0, %v1901
      %v1903 = vrot.slane %v1406, %v1902
      %v1904 = vlaneseq
      %v1905 = vshrl.u32 %v1904, 7
      %v1906 = vsub.s32 0, %v1905
      %v1907 = vrot.slane %v1389, %v1906
      %v1908 = vlaneseq
      %v1909 = vshrl.u32 %v1908, 7
      %v1910 = vsub.s32 0, %v1909
      %v1911 = vrot.slane %v1403, %v1910
      %v1912 = vlaneseq
      %v1913 = vshrl.u32 %v1912, 7
      %v1914 = vsub.s32 0, %v1913
      %v1915 = vrot.slane %v1405, %v1914
      %v1916 = vlaneseq
      %v1917 = vshrl.u32 %v1916, 7
      %v1918 = vsub.s32 0, %v1917
      %v1919 = vrot.slane %v1407, %v1918
      %v2048 = vmul.f32 %v281, %v1411
      %v2049 = vmul.f32 %v282, %v1415
      %v2050 = vmul.f32 %v283, %v1419
      %v2051 = vmul.f32 %v284, %v1423
      %v2052 = vmul.f32 %v285, %v1427
      %v2053 = vmul.f32 %v286, %v1431
      %v2054 = vmul.f32 %v287, %v1435
      %v2055 = vmul.f32 %v288, %v1439
      %v2056 = vmul.f32 %v289, %v1443
      %v2057 = vmul.f32 %v290, %v1447
      %v2058 = vmul.f32 %v291, %v1451
      %v2059 = vmul.f32 %v292, %v1455
      %v2060 = vmul.f32 %v293, %v1459
      %v2061 = vmul.f32 %v294, %v1463
      %v2062 = vmul.f32 %v295, %v1467
      %v2063 = vmul.f32 %v296, %v1471
      %v2064 = vmul.f32 %v297, %v1475
      %v2065 = vmul.f32 %v298, %v1479
      %v2066 = vmul.f32 %v299, %v1483
      %v2067 = vmul.f32 %v300, %v1487
      %v2068 = vmul.f32 %v301, %v1491
      %v2069 = vmul.f32 %v302, %v1495
      %v2070 = vmul.f32 %v303, %v1499
      %v2071 = vmul.f32 %v304, %v1503
      %v2072 = vmul.f32 %v305, %v1507
      %v2073 = vmul.f32 %v306, %v1511
      %v2074 = vmul.f32 %v307, %v1515
      %v2075 = vmul.f32 %v308, %v1519
      %v2076 = vmul.f32 %v309, %v1523
      %v2077 = vmul.f32 %v310, %v1527
      %v2078 = vmul.f32 %v311, %v1531
      %v2079 = vmul.f32 %v312, %v1535
      %v2080 = vmul.f32 %v313, %v1539
      %v2081 = vmul.f32 %v314, %v1543
      %v2082 = vmul.f32 %v315, %v1547
      %v2083 = vmul.f32 %v316, %v1551
      %v2084 = vmul.f32 %v317, %v1555
      %v2085 = vmul.f32 %v318, %v1559
      %v2086 = vmul.f32 %v319, %v1563
      %v2087 = vmul.f32 %v320, %v1567
      %v2088 = vmul.f32 %v321, %v1571
      %v2089 = vmul.f32 %v322, %v1575
      %v2090 = vmul.f32 %v323, %v1579
      %v2091 = vmul.f32 %v324, %v1583
      %v2092 = vmul.f32 %v325, %v1587
      %v2093 = vmul.f32 %v326, %v1591
      %v2094 = vmul.f32 %v327, %v1595
      %v2095 = vmul.f32 %v328, %v1599
      %v2096 = vmul.f32 %v329, %v1603
      %v2097 = vmul.f32 %v330, %v1607
      %v2098 = vmul.f32 %v331, %v1611
      %v2099 = vmul.f32 %v332, %v1615
      %v2100 = vmul.f32 %v333, %v1619
      %v2101 = vmul.f32 %v334, %v1623
      %v2102 = vmul.f32 %v335, %v1627
      %v2103 = vmul.f32 %v336, %v1631
      %v2104 = vmul.f32 %v337, %v1635
      %v2105 = vmul.f32 %v338, %v1639
      %v2106 = vmul.f32 %v339, %v1643
      %v2107 = vmul.f32 %v340, %v1647
      %v2108 = vmul.f32 %v341, %v1651
      %v2109 = vmul.f32 %v342, %v1655
      %v2110 = vmul.f32 %v343, %v1659
      %v2111 = vmul.f32 %v344, %v1663
      %v2112 = vmul.f32 %v345, %v1667
      %v2113 = vmul.f32 %v346, %v1671
      %v2114 = vmul.f32 %v347, %v1675
      %v2115 = vmul.f32 %v348, %v1679
      %v2116 = vmul.f32 %v349, %v1683
      %v2117 = vmul.f32 %v350, %v1687
      %v2118 = vmul.f32 %v351, %v1691
      %v2119 = vmul.f32 %v352, %v1695
      %v2120 = vmul.f32 %v353, %v1699
      %v2121 = vmul.f32 %v354, %v1703
      %v2122 = vmul.f32 %v355, %v1707
      %v2123 = vmul.f32 %v356, %v1711
      %v2124 = vmul.f32 %v357, %v1715
      %v2125 = vmul.f32 %v358, %v1719
      %v2126 = vmul.f32 %v359, %v1723
      %v2127 = vmul.f32 %v360, %v1727
      %v2128 = vmul.f32 %v361, %v1731
      %v2129 = vmul.f32 %v362, %v1735
      %v2130 = vmul.f32 %v363, %v1739
      %v2131 = vmul.f32 %v364, %v1743
      %v2132 = vmul.f32 %v365, %v1747
      %v2133 = vmul.f32 %v366, %v1751
      %v2134 = vmul.f32 %v367, %v1755
      %v2135 = vmul.f32 %v368, %v1759
      %v2136 = vmul.f32 %v369, %v1763
      %v2137 = vmul.f32 %v370, %v1767
      %v2138 = vmul.f32 %v371, %v1771
      %v2139 = vmul.f32 %v372, %v1775
      %v2140 = vmul.f32 %v373, %v1779
      %v2141 = vmul.f32 %v374, %v1783
      %v2142 = vmul.f32 %v375, %v1787
      %v2143 = vmul.f32 %v376, %v1791
      %v2144 = vmul.f32 %v377, %v1795
      %v2145 = vmul.f32 %v378, %v1799
      %v2146 = vmul.f32 %v379, %v1803
      %v2147 = vmul.f32 %v380, %v1807
      %v2148 = vmul.f32 %v381, %v1811
      %v2149 = vmul.f32 %v382, %v1815
      %v2150 = vmul.f32 %v383, %v1819
      %v2151 = vmul.f32 %v384, %v1823
      %v2152 = vmul.f32 %v385, %v1827
      %v2153 = vmul.f32 %v386, %v1831
      %v2154 = vmul.f32 %v387, %v1835
      %v2155 = vmul.f32 %v388, %v1839
      %v2156 = vmul.f32 %v389, %v1843
      %v2157 = vmul.f32 %v390, %v1847
      %v2158 = vmul.f32 %v391, %v1851
      %v2159 = vmul.f32 %v392, %v1855
      %v2160 = vmul.f32 %v393, %v1859
      %v2161 = vmul.f32 %v394, %v1863
      %v2162 = vmul.f32 %v395, %v1867
      %v2163 = vmul.f32 %v396, %v1871
      %v2164 = vmul.f32 %v397, %v1875
      %v2165 = vmul.f32 %v398, %v1879
      %v2166 = vmul.f32 %v399, %v1883
      %v2167 = vmul.f32 %v400, %v1887
      %v2168 = vmul.f32 %v401, %v1891
      %v2169 = vmul.f32 %v402, %v1895
      %v2170 = vmul.f32 %v403, %v1899
      %v2171 = vmul.f32 %v404, %v1903
      %v2172 = vmul.f32 %v405, %v1907
      %v2173 = vmul.f32 %v406, %v1911
      %v2174 = vmul.f32 %v407, %v1915
      %v2175 = vmul.f32 %v408, %v1919
      %v2176 = vsel %vm414, %v2048, 0.0
      %2177 = vadd.xlane.f32.xlu0 %v2176
      %v2178 = vpop.xlane.xlu0 %2177
      %v2179 = vsel %vm414, %v2049, 0.0
      %2180 = vadd.xlane.f32.xlu0 %v2179
      %v2181 = vpop.xlane.xlu0 %2180
      %v2182 = vsel %vm414, %v2050, 0.0
      %2183 = vadd.xlane.f32.xlu0 %v2182
      %v2184 = vpop.xlane.xlu0 %2183
      %v2185 = vsel %vm414, %v2051, 0.0
      %2186 = vadd.xlane.f32.xlu0 %v2185
      %v2187 = vpop.xlane.xlu0 %2186
      %v2188 = vsel %vm414, %v2052, 0.0
      %2189 = vadd.xlane.f32.xlu0 %v2188
      %v2190 = vpop.xlane.xlu0 %2189
      %v2191 = vsel %vm414, %v2053, 0.0
      %2192 = vadd.xlane.f32.xlu0 %v2191
      %v2193 = vpop.xlane.xlu0 %2192
      %v2194 = vsel %vm414, %v2054, 0.0
      %2195 = vadd.xlane.f32.xlu0 %v2194
      %v2196 = vpop.xlane.xlu0 %2195
      %v2197 = vsel %vm414, %v2055, 0.0
      %2198 = vadd.xlane.f32.xlu0 %v2197
      %v2199 = vpop.xlane.xlu0 %2198
      %v2200 = vsel %vm414, %v2056, 0.0
      %2201 = vadd.xlane.f32.xlu0 %v2200
      %v2202 = vpop.xlane.xlu0 %2201
      %v2203 = vsel %vm414, %v2057, 0.0
      %2204 = vadd.xlane.f32.xlu0 %v2203
      %v2205 = vpop.xlane.xlu0 %2204
      %v2206 = vsel %vm414, %v2058, 0.0
      %2207 = vadd.xlane.f32.xlu0 %v2206
      %v2208 = vpop.xlane.xlu0 %2207
      %v2209 = vsel %vm414, %v2059, 0.0
      %2210 = vadd.xlane.f32.xlu0 %v2209
      %v2211 = vpop.xlane.xlu0 %2210
      %v2212 = vsel %vm414, %v2060, 0.0
      %2213 = vadd.xlane.f32.xlu0 %v2212
      %v2214 = vpop.xlane.xlu0 %2213
      %v2215 = vsel %vm414, %v2061, 0.0
      %2216 = vadd.xlane.f32.xlu0 %v2215
      %v2217 = vpop.xlane.xlu0 %2216
      %v2218 = vsel %vm414, %v2062, 0.0
      %2219 = vadd.xlane.f32.xlu0 %v2218
      %v2220 = vpop.xlane.xlu0 %2219
      %v2221 = vsel %vm414, %v2063, 0.0
      %2222 = vadd.xlane.f32.xlu0 %v2221
      %v2223 = vpop.xlane.xlu0 %2222
      %v2224 = vsel %vm414, %v2064, 0.0
      %2225 = vadd.xlane.f32.xlu0 %v2224
      %v2226 = vpop.xlane.xlu0 %2225
      %v2227 = vsel %vm414, %v2065, 0.0
      %2228 = vadd.xlane.f32.xlu0 %v2227
      %v2229 = vpop.xlane.xlu0 %2228
      %v2230 = vsel %vm414, %v2066, 0.0
      %2231 = vadd.xlane.f32.xlu0 %v2230
      %v2232 = vpop.xlane.xlu0 %2231
      %v2233 = vsel %vm414, %v2067, 0.0
      %2234 = vadd.xlane.f32.xlu0 %v2233
      %v2235 = vpop.xlane.xlu0 %2234
      %v2236 = vsel %vm414, %v2068, 0.0
      %2237 = vadd.xlane.f32.xlu0 %v2236
      %v2238 = vpop.xlane.xlu0 %2237
      %v2239 = vsel %vm414, %v2069, 0.0
      %2240 = vadd.xlane.f32.xlu0 %v2239
      %v2241 = vpop.xlane.xlu0 %2240
      %v2242 = vsel %vm414, %v2070, 0.0
      %2243 = vadd.xlane.f32.xlu0 %v2242
      %v2244 = vpop.xlane.xlu0 %2243
      %v2245 = vsel %vm414, %v2071, 0.0
      %2246 = vadd.xlane.f32.xlu0 %v2245
      %v2247 = vpop.xlane.xlu0 %2246
      %v2248 = vsel %vm414, %v2072, 0.0
      %2249 = vadd.xlane.f32.xlu0 %v2248
      %v2250 = vpop.xlane.xlu0 %2249
      %v2251 = vsel %vm414, %v2073, 0.0
      %2252 = vadd.xlane.f32.xlu0 %v2251
      %v2253 = vpop.xlane.xlu0 %2252
      %v2254 = vsel %vm414, %v2074, 0.0
      %2255 = vadd.xlane.f32.xlu0 %v2254
      %v2256 = vpop.xlane.xlu0 %2255
      %v2257 = vsel %vm414, %v2075, 0.0
      %2258 = vadd.xlane.f32.xlu0 %v2257
      %v2259 = vpop.xlane.xlu0 %2258
      %v2260 = vsel %vm414, %v2076, 0.0
      %2261 = vadd.xlane.f32.xlu0 %v2260
      %v2262 = vpop.xlane.xlu0 %2261
      %v2263 = vsel %vm414, %v2077, 0.0
      %2264 = vadd.xlane.f32.xlu0 %v2263
      %v2265 = vpop.xlane.xlu0 %2264
      %v2266 = vsel %vm414, %v2078, 0.0
      %2267 = vadd.xlane.f32.xlu0 %v2266
      %v2268 = vpop.xlane.xlu0 %2267
      %v2269 = vsel %vm414, %v2079, 0.0
      %2270 = vadd.xlane.f32.xlu0 %v2269
      %v2271 = vpop.xlane.xlu0 %2270
      %v2272 = vsel %vm414, %v2080, 0.0
      %2273 = vadd.xlane.f32.xlu0 %v2272
      %v2274 = vpop.xlane.xlu0 %2273
      %v2275 = vsel %vm414, %v2081, 0.0
      %2276 = vadd.xlane.f32.xlu0 %v2275
      %v2277 = vpop.xlane.xlu0 %2276
      %v2278 = vsel %vm414, %v2082, 0.0
      %2279 = vadd.xlane.f32.xlu0 %v2278
      %v2280 = vpop.xlane.xlu0 %2279
      %v2281 = vsel %vm414, %v2083, 0.0
      %2282 = vadd.xlane.f32.xlu0 %v2281
      %v2283 = vpop.xlane.xlu0 %2282
      %v2284 = vsel %vm414, %v2084, 0.0
      %2285 = vadd.xlane.f32.xlu0 %v2284
      %v2286 = vpop.xlane.xlu0 %2285
      %v2287 = vsel %vm414, %v2085, 0.0
      %2288 = vadd.xlane.f32.xlu0 %v2287
      %v2289 = vpop.xlane.xlu0 %2288
      %v2290 = vsel %vm414, %v2086, 0.0
      %2291 = vadd.xlane.f32.xlu0 %v2290
      %v2292 = vpop.xlane.xlu0 %2291
      %v2293 = vsel %vm414, %v2087, 0.0
      %2294 = vadd.xlane.f32.xlu0 %v2293
      %v2295 = vpop.xlane.xlu0 %2294
      %v2296 = vsel %vm414, %v2088, 0.0
      %2297 = vadd.xlane.f32.xlu0 %v2296
      %v2298 = vpop.xlane.xlu0 %2297
      %v2299 = vsel %vm414, %v2089, 0.0
      %2300 = vadd.xlane.f32.xlu0 %v2299
      %v2301 = vpop.xlane.xlu0 %2300
      %v2302 = vsel %vm414, %v2090, 0.0
      %2303 = vadd.xlane.f32.xlu0 %v2302
      %v2304 = vpop.xlane.xlu0 %2303
      %v2305 = vsel %vm414, %v2091, 0.0
      %2306 = vadd.xlane.f32.xlu0 %v2305
      %v2307 = vpop.xlane.xlu0 %2306
      %v2308 = vsel %vm414, %v2092, 0.0
      %2309 = vadd.xlane.f32.xlu0 %v2308
      %v2310 = vpop.xlane.xlu0 %2309
      %v2311 = vsel %vm414, %v2093, 0.0
      %2312 = vadd.xlane.f32.xlu0 %v2311
      %v2313 = vpop.xlane.xlu0 %2312
      %v2314 = vsel %vm414, %v2094, 0.0
      %2315 = vadd.xlane.f32.xlu0 %v2314
      %v2316 = vpop.xlane.xlu0 %2315
      %v2317 = vsel %vm414, %v2095, 0.0
      %2318 = vadd.xlane.f32.xlu0 %v2317
      %v2319 = vpop.xlane.xlu0 %2318
      %v2320 = vsel %vm414, %v2096, 0.0
      %2321 = vadd.xlane.f32.xlu0 %v2320
      %v2322 = vpop.xlane.xlu0 %2321
      %v2323 = vsel %vm414, %v2097, 0.0
      %2324 = vadd.xlane.f32.xlu0 %v2323
      %v2325 = vpop.xlane.xlu0 %2324
      %v2326 = vsel %vm414, %v2098, 0.0
      %2327 = vadd.xlane.f32.xlu0 %v2326
      %v2328 = vpop.xlane.xlu0 %2327
      %v2329 = vsel %vm414, %v2099, 0.0
      %2330 = vadd.xlane.f32.xlu0 %v2329
      %v2331 = vpop.xlane.xlu0 %2330
      %v2332 = vsel %vm414, %v2100, 0.0
      %2333 = vadd.xlane.f32.xlu0 %v2332
      %v2334 = vpop.xlane.xlu0 %2333
      %v2335 = vsel %vm414, %v2101, 0.0
      %2336 = vadd.xlane.f32.xlu0 %v2335
      %v2337 = vpop.xlane.xlu0 %2336
      %v2338 = vsel %vm414, %v2102, 0.0
      %2339 = vadd.xlane.f32.xlu0 %v2338
      %v2340 = vpop.xlane.xlu0 %2339
      %v2341 = vsel %vm414, %v2103, 0.0
      %2342 = vadd.xlane.f32.xlu0 %v2341
      %v2343 = vpop.xlane.xlu0 %2342
      %v2344 = vsel %vm414, %v2104, 0.0
      %2345 = vadd.xlane.f32.xlu0 %v2344
      %v2346 = vpop.xlane.xlu0 %2345
      %v2347 = vsel %vm414, %v2105, 0.0
      %2348 = vadd.xlane.f32.xlu0 %v2347
      %v2349 = vpop.xlane.xlu0 %2348
      %v2350 = vsel %vm414, %v2106, 0.0
      %2351 = vadd.xlane.f32.xlu0 %v2350
      %v2352 = vpop.xlane.xlu0 %2351
      %v2353 = vsel %vm414, %v2107, 0.0
      %2354 = vadd.xlane.f32.xlu0 %v2353
      %v2355 = vpop.xlane.xlu0 %2354
      %v2356 = vsel %vm414, %v2108, 0.0
      %2357 = vadd.xlane.f32.xlu0 %v2356
      %v2358 = vpop.xlane.xlu0 %2357
      %v2359 = vsel %vm414, %v2109, 0.0
      %2360 = vadd.xlane.f32.xlu0 %v2359
      %v2361 = vpop.xlane.xlu0 %2360
      %v2362 = vsel %vm414, %v2110, 0.0
      %2363 = vadd.xlane.f32.xlu0 %v2362
      %v2364 = vpop.xlane.xlu0 %2363
      %v2365 = vsel %vm414, %v2111, 0.0
      %2366 = vadd.xlane.f32.xlu0 %v2365
      %v2367 = vpop.xlane.xlu0 %2366
      %v2368 = vsel %vm414, %v2112, 0.0
      %2369 = vadd.xlane.f32.xlu0 %v2368
      %v2370 = vpop.xlane.xlu0 %2369
      %v2371 = vsel %vm414, %v2113, 0.0
      %2372 = vadd.xlane.f32.xlu0 %v2371
      %v2373 = vpop.xlane.xlu0 %2372
      %v2374 = vsel %vm414, %v2114, 0.0
      %2375 = vadd.xlane.f32.xlu0 %v2374
      %v2376 = vpop.xlane.xlu0 %2375
      %v2377 = vsel %vm414, %v2115, 0.0
      %2378 = vadd.xlane.f32.xlu0 %v2377
      %v2379 = vpop.xlane.xlu0 %2378
      %v2380 = vsel %vm414, %v2116, 0.0
      %2381 = vadd.xlane.f32.xlu0 %v2380
      %v2382 = vpop.xlane.xlu0 %2381
      %v2383 = vsel %vm414, %v2117, 0.0
      %2384 = vadd.xlane.f32.xlu0 %v2383
      %v2385 = vpop.xlane.xlu0 %2384
      %v2386 = vsel %vm414, %v2118, 0.0
      %2387 = vadd.xlane.f32.xlu0 %v2386
      %v2388 = vpop.xlane.xlu0 %2387
      %v2389 = vsel %vm414, %v2119, 0.0
      %2390 = vadd.xlane.f32.xlu0 %v2389
      %v2391 = vpop.xlane.xlu0 %2390
      %v2392 = vsel %vm414, %v2120, 0.0
      %2393 = vadd.xlane.f32.xlu0 %v2392
      %v2394 = vpop.xlane.xlu0 %2393
      %v2395 = vsel %vm414, %v2121, 0.0
      %2396 = vadd.xlane.f32.xlu0 %v2395
      %v2397 = vpop.xlane.xlu0 %2396
      %v2398 = vsel %vm414, %v2122, 0.0
      %2399 = vadd.xlane.f32.xlu0 %v2398
      %v2400 = vpop.xlane.xlu0 %2399
      %v2401 = vsel %vm414, %v2123, 0.0
      %2402 = vadd.xlane.f32.xlu0 %v2401
      %v2403 = vpop.xlane.xlu0 %2402
      %v2404 = vsel %vm414, %v2124, 0.0
      %2405 = vadd.xlane.f32.xlu0 %v2404
      %v2406 = vpop.xlane.xlu0 %2405
      %v2407 = vsel %vm414, %v2125, 0.0
      %2408 = vadd.xlane.f32.xlu0 %v2407
      %v2409 = vpop.xlane.xlu0 %2408
      %v2410 = vsel %vm414, %v2126, 0.0
      %2411 = vadd.xlane.f32.xlu0 %v2410
      %v2412 = vpop.xlane.xlu0 %2411
      %v2413 = vsel %vm414, %v2127, 0.0
      %2414 = vadd.xlane.f32.xlu0 %v2413
      %v2415 = vpop.xlane.xlu0 %2414
      %v2416 = vsel %vm414, %v2128, 0.0
      %2417 = vadd.xlane.f32.xlu0 %v2416
      %v2418 = vpop.xlane.xlu0 %2417
      %v2419 = vsel %vm414, %v2129, 0.0
      %2420 = vadd.xlane.f32.xlu0 %v2419
      %v2421 = vpop.xlane.xlu0 %2420
      %v2422 = vsel %vm414, %v2130, 0.0
      %2423 = vadd.xlane.f32.xlu0 %v2422
      %v2424 = vpop.xlane.xlu0 %2423
      %v2425 = vsel %vm414, %v2131, 0.0
      %2426 = vadd.xlane.f32.xlu0 %v2425
      %v2427 = vpop.xlane.xlu0 %2426
      %v2428 = vsel %vm414, %v2132, 0.0
      %2429 = vadd.xlane.f32.xlu0 %v2428
      %v2430 = vpop.xlane.xlu0 %2429
      %v2431 = vsel %vm414, %v2133, 0.0
      %2432 = vadd.xlane.f32.xlu0 %v2431
      %v2433 = vpop.xlane.xlu0 %2432
      %v2434 = vsel %vm414, %v2134, 0.0
      %2435 = vadd.xlane.f32.xlu0 %v2434
      %v2436 = vpop.xlane.xlu0 %2435
      %v2437 = vsel %vm414, %v2135, 0.0
      %2438 = vadd.xlane.f32.xlu0 %v2437
      %v2439 = vpop.xlane.xlu0 %2438
      %v2440 = vsel %vm414, %v2136, 0.0
      %2441 = vadd.xlane.f32.xlu0 %v2440
      %v2442 = vpop.xlane.xlu0 %2441
      %v2443 = vsel %vm414, %v2137, 0.0
      %2444 = vadd.xlane.f32.xlu0 %v2443
      %v2445 = vpop.xlane.xlu0 %2444
      %v2446 = vsel %vm414, %v2138, 0.0
      %2447 = vadd.xlane.f32.xlu0 %v2446
      %v2448 = vpop.xlane.xlu0 %2447
      %v2449 = vsel %vm414, %v2139, 0.0
      %2450 = vadd.xlane.f32.xlu0 %v2449
      %v2451 = vpop.xlane.xlu0 %2450
      %v2452 = vsel %vm414, %v2140, 0.0
      %2453 = vadd.xlane.f32.xlu0 %v2452
      %v2454 = vpop.xlane.xlu0 %2453
      %v2455 = vsel %vm414, %v2141, 0.0
      %2456 = vadd.xlane.f32.xlu0 %v2455
      %v2457 = vpop.xlane.xlu0 %2456
      %v2458 = vsel %vm414, %v2142, 0.0
      %2459 = vadd.xlane.f32.xlu0 %v2458
      %v2460 = vpop.xlane.xlu0 %2459
      %v2461 = vsel %vm414, %v2143, 0.0
      %2462 = vadd.xlane.f32.xlu0 %v2461
      %v2463 = vpop.xlane.xlu0 %2462
      %v2464 = vsel %vm414, %v2144, 0.0
      %2465 = vadd.xlane.f32.xlu0 %v2464
      %v2466 = vpop.xlane.xlu0 %2465
      %v2467 = vsel %vm414, %v2145, 0.0
      %2468 = vadd.xlane.f32.xlu0 %v2467
      %v2469 = vpop.xlane.xlu0 %2468
      %v2470 = vsel %vm414, %v2146, 0.0
      %2471 = vadd.xlane.f32.xlu0 %v2470
      %v2472 = vpop.xlane.xlu0 %2471
      %v2473 = vsel %vm414, %v2147, 0.0
      %2474 = vadd.xlane.f32.xlu0 %v2473
      %v2475 = vpop.xlane.xlu0 %2474
      %v2476 = vsel %vm414, %v2148, 0.0
      %2477 = vadd.xlane.f32.xlu0 %v2476
      %v2478 = vpop.xlane.xlu0 %2477
      %v2479 = vsel %vm414, %v2149, 0.0
      %2480 = vadd.xlane.f32.xlu0 %v2479
      %v2481 = vpop.xlane.xlu0 %2480
      %v2482 = vsel %vm414, %v2150, 0.0
      %2483 = vadd.xlane.f32.xlu0 %v2482
      %v2484 = vpop.xlane.xlu0 %2483
      %v2485 = vsel %vm414, %v2151, 0.0
      %2486 = vadd.xlane.f32.xlu0 %v2485
      %v2487 = vpop.xlane.xlu0 %2486
      %v2488 = vsel %vm414, %v2152, 0.0
      %2489 = vadd.xlane.f32.xlu0 %v2488
      %v2490 = vpop.xlane.xlu0 %2489
      %v2491 = vsel %vm414, %v2153, 0.0
      %2492 = vadd.xlane.f32.xlu0 %v2491
      %v2493 = vpop.xlane.xlu0 %2492
      %v2494 = vsel %vm414, %v2154, 0.0
      %2495 = vadd.xlane.f32.xlu0 %v2494
      %v2496 = vpop.xlane.xlu0 %2495
      %v2497 = vsel %vm414, %v2155, 0.0
      %2498 = vadd.xlane.f32.xlu0 %v2497
      %v2499 = vpop.xlane.xlu0 %2498
      %v2500 = vsel %vm414, %v2156, 0.0
      %2501 = vadd.xlane.f32.xlu0 %v2500
      %v2502 = vpop.xlane.xlu0 %2501
      %v2503 = vsel %vm414, %v2157, 0.0
      %2504 = vadd.xlane.f32.xlu0 %v2503
      %v2505 = vpop.xlane.xlu0 %2504
      %v2506 = vsel %vm414, %v2158, 0.0
      %2507 = vadd.xlane.f32.xlu0 %v2506
      %v2508 = vpop.xlane.xlu0 %2507
      %v2509 = vsel %vm414, %v2159, 0.0
      %2510 = vadd.xlane.f32.xlu0 %v2509
      %v2511 = vpop.xlane.xlu0 %2510
      %v2512 = vsel %vm414, %v2160, 0.0
      %2513 = vadd.xlane.f32.xlu0 %v2512
      %v2514 = vpop.xlane.xlu0 %2513
      %v2515 = vsel %vm414, %v2161, 0.0
      %2516 = vadd.xlane.f32.xlu0 %v2515
      %v2517 = vpop.xlane.xlu0 %2516
      %v2518 = vsel %vm414, %v2162, 0.0
      %2519 = vadd.xlane.f32.xlu0 %v2518
      %v2520 = vpop.xlane.xlu0 %2519
      %v2521 = vsel %vm414, %v2163, 0.0
      %2522 = vadd.xlane.f32.xlu0 %v2521
      %v2523 = vpop.xlane.xlu0 %2522
      %v2524 = vsel %vm414, %v2164, 0.0
      %2525 = vadd.xlane.f32.xlu0 %v2524
      %v2526 = vpop.xlane.xlu0 %2525
      %v2527 = vsel %vm414, %v2165, 0.0
      %2528 = vadd.xlane.f32.xlu0 %v2527
      %v2529 = vpop.xlane.xlu0 %2528
      %v2530 = vsel %vm414, %v2166, 0.0
      %2531 = vadd.xlane.f32.xlu0 %v2530
      %v2532 = vpop.xlane.xlu0 %2531
      %v2533 = vsel %vm414, %v2167, 0.0
      %2534 = vadd.xlane.f32.xlu0 %v2533
      %v2535 = vpop.xlane.xlu0 %2534
      %v2536 = vsel %vm414, %v2168, 0.0
      %2537 = vadd.xlane.f32.xlu0 %v2536
      %v2538 = vpop.xlane.xlu0 %2537
      %v2539 = vsel %vm414, %v2169, 0.0
      %2540 = vadd.xlane.f32.xlu0 %v2539
      %v2541 = vpop.xlane.xlu0 %2540
      %v2542 = vsel %vm414, %v2170, 0.0
      %2543 = vadd.xlane.f32.xlu0 %v2542
      %v2544 = vpop.xlane.xlu0 %2543
      %v2545 = vsel %vm414, %v2171, 0.0
      %2546 = vadd.xlane.f32.xlu0 %v2545
      %v2547 = vpop.xlane.xlu0 %2546
      %v2548 = vsel %vm414, %v2172, 0.0
      %2549 = vadd.xlane.f32.xlu0 %v2548
      %v2550 = vpop.xlane.xlu0 %2549
      %v2551 = vsel %vm414, %v2173, 0.0
      %2552 = vadd.xlane.f32.xlu0 %v2551
      %v2553 = vpop.xlane.xlu0 %2552
      %v2554 = vsel %vm414, %v2174, 0.0
      %2555 = vadd.xlane.f32.xlu0 %v2554
      %v2556 = vpop.xlane.xlu0 %2555
      %v2557 = vsel %vm414, %v2175, 0.0
      %2558 = vadd.xlane.f32.xlu0 %v2557
      %v2559 = vpop.xlane.xlu0 %2558
      %v2560 = vstv %s413
      %v2561 = vadd.f32 %v2178, %v2560
      %v2562 = vadd.f32 %v2181, %v2560
      %v2563 = vadd.f32 %v2184, %v2560
      %v2564 = vadd.f32 %v2187, %v2560
      %v2565 = vadd.f32 %v2190, %v2560
      %v2566 = vadd.f32 %v2193, %v2560
      %v2567 = vadd.f32 %v2196, %v2560
      %v2568 = vadd.f32 %v2199, %v2560
      %v2569 = vadd.f32 %v2202, %v2560
      %v2570 = vadd.f32 %v2205, %v2560
      %v2571 = vadd.f32 %v2208, %v2560
      %v2572 = vadd.f32 %v2211, %v2560
      %v2573 = vadd.f32 %v2214, %v2560
      %v2574 = vadd.f32 %v2217, %v2560
      %v2575 = vadd.f32 %v2220, %v2560
      %v2576 = vadd.f32 %v2223, %v2560
      %v2577 = vadd.f32 %v2226, %v2560
      %v2578 = vadd.f32 %v2229, %v2560
      %v2579 = vadd.f32 %v2232, %v2560
      %v2580 = vadd.f32 %v2235, %v2560
      %v2581 = vadd.f32 %v2238, %v2560
      %v2582 = vadd.f32 %v2241, %v2560
      %v2583 = vadd.f32 %v2244, %v2560
      %v2584 = vadd.f32 %v2247, %v2560
      %v2585 = vadd.f32 %v2250, %v2560
      %v2586 = vadd.f32 %v2253, %v2560
      %v2587 = vadd.f32 %v2256, %v2560
      %v2588 = vadd.f32 %v2259, %v2560
      %v2589 = vadd.f32 %v2262, %v2560
      %v2590 = vadd.f32 %v2265, %v2560
      %v2591 = vadd.f32 %v2268, %v2560
      %v2592 = vadd.f32 %v2271, %v2560
      %v2593 = vadd.f32 %v2274, %v2560
      %v2594 = vadd.f32 %v2277, %v2560
      %v2595 = vadd.f32 %v2280, %v2560
      %v2596 = vadd.f32 %v2283, %v2560
      %v2597 = vadd.f32 %v2286, %v2560
      %v2598 = vadd.f32 %v2289, %v2560
      %v2599 = vadd.f32 %v2292, %v2560
      %v2600 = vadd.f32 %v2295, %v2560
      %v2601 = vadd.f32 %v2298, %v2560
      %v2602 = vadd.f32 %v2301, %v2560
      %v2603 = vadd.f32 %v2304, %v2560
      %v2604 = vadd.f32 %v2307, %v2560
      %v2605 = vadd.f32 %v2310, %v2560
      %v2606 = vadd.f32 %v2313, %v2560
      %v2607 = vadd.f32 %v2316, %v2560
      %v2608 = vadd.f32 %v2319, %v2560
      %v2609 = vadd.f32 %v2322, %v2560
      %v2610 = vadd.f32 %v2325, %v2560
      %v2611 = vadd.f32 %v2328, %v2560
      %v2612 = vadd.f32 %v2331, %v2560
      %v2613 = vadd.f32 %v2334, %v2560
      %v2614 = vadd.f32 %v2337, %v2560
      %v2615 = vadd.f32 %v2340, %v2560
      %v2616 = vadd.f32 %v2343, %v2560
      %v2617 = vadd.f32 %v2346, %v2560
      %v2618 = vadd.f32 %v2349, %v2560
      %v2619 = vadd.f32 %v2352, %v2560
      %v2620 = vadd.f32 %v2355, %v2560
      %v2621 = vadd.f32 %v2358, %v2560
      %v2622 = vadd.f32 %v2361, %v2560
      %v2623 = vadd.f32 %v2364, %v2560
      %v2624 = vadd.f32 %v2367, %v2560
      %v2625 = vadd.f32 %v2370, %v2560
      %v2626 = vadd.f32 %v2373, %v2560
      %v2627 = vadd.f32 %v2376, %v2560
      %v2628 = vadd.f32 %v2379, %v2560
      %v2629 = vadd.f32 %v2382, %v2560
      %v2630 = vadd.f32 %v2385, %v2560
      %v2631 = vadd.f32 %v2388, %v2560
      %v2632 = vadd.f32 %v2391, %v2560
      %v2633 = vadd.f32 %v2394, %v2560
      %v2634 = vadd.f32 %v2397, %v2560
      %v2635 = vadd.f32 %v2400, %v2560
      %v2636 = vadd.f32 %v2403, %v2560
      %v2637 = vadd.f32 %v2406, %v2560
      %v2638 = vadd.f32 %v2409, %v2560
      %v2639 = vadd.f32 %v2412, %v2560
      %v2640 = vadd.f32 %v2415, %v2560
      %v2641 = vadd.f32 %v2418, %v2560
      %v2642 = vadd.f32 %v2421, %v2560
      %v2643 = vadd.f32 %v2424, %v2560
      %v2644 = vadd.f32 %v2427, %v2560
      %v2645 = vadd.f32 %v2430, %v2560
      %v2646 = vadd.f32 %v2433, %v2560
      %v2647 = vadd.f32 %v2436, %v2560
      %v2648 = vadd.f32 %v2439, %v2560
      %v2649 = vadd.f32 %v2442, %v2560
      %v2650 = vadd.f32 %v2445, %v2560
      %v2651 = vadd.f32 %v2448, %v2560
      %v2652 = vadd.f32 %v2451, %v2560
      %v2653 = vadd.f32 %v2454, %v2560
      %v2654 = vadd.f32 %v2457, %v2560
      %v2655 = vadd.f32 %v2460, %v2560
      %v2656 = vadd.f32 %v2463, %v2560
      %v2657 = vadd.f32 %v2466, %v2560
      %v2658 = vadd.f32 %v2469, %v2560
      %v2659 = vadd.f32 %v2472, %v2560
      %v2660 = vadd.f32 %v2475, %v2560
      %v2661 = vadd.f32 %v2478, %v2560
      %v2662 = vadd.f32 %v2481, %v2560
      %v2663 = vadd.f32 %v2484, %v2560
      %v2664 = vadd.f32 %v2487, %v2560
      %v2665 = vadd.f32 %v2490, %v2560
      %v2666 = vadd.f32 %v2493, %v2560
      %v2667 = vadd.f32 %v2496, %v2560
      %v2668 = vadd.f32 %v2499, %v2560
      %v2669 = vadd.f32 %v2502, %v2560
      %v2670 = vadd.f32 %v2505, %v2560
      %v2671 = vadd.f32 %v2508, %v2560
      %v2672 = vadd.f32 %v2511, %v2560
      %v2673 = vadd.f32 %v2514, %v2560
      %v2674 = vadd.f32 %v2517, %v2560
      %v2675 = vadd.f32 %v2520, %v2560
      %v2676 = vadd.f32 %v2523, %v2560
      %v2677 = vadd.f32 %v2526, %v2560
      %v2678 = vadd.f32 %v2529, %v2560
      %v2679 = vadd.f32 %v2532, %v2560
      %v2680 = vadd.f32 %v2535, %v2560
      %v2681 = vadd.f32 %v2538, %v2560
      %v2682 = vadd.f32 %v2541, %v2560
      %v2683 = vadd.f32 %v2544, %v2560
      %v2684 = vadd.f32 %v2547, %v2560
      %v2685 = vadd.f32 %v2550, %v2560
      %v2686 = vadd.f32 %v2553, %v2560
      %v2687 = vadd.f32 %v2556, %v2560
      %v2688 = vadd.f32 %v2559, %v2560
      %v2689 = vsub.f32 %v2561, %v2561
      %v2690 = vsub.f32 %v2562, %v2562
      %v2691 = vsub.f32 %v2563, %v2563
      %v2692 = vsub.f32 %v2564, %v2564
      %v2693 = vsub.f32 %v2565, %v2565
      %v2694 = vsub.f32 %v2566, %v2566
      %v2695 = vsub.f32 %v2567, %v2567
      %v2696 = vsub.f32 %v2568, %v2568
      %v2697 = vsub.f32 %v2569, %v2569
      %v2698 = vsub.f32 %v2570, %v2570
      %v2699 = vsub.f32 %v2571, %v2571
      %v2700 = vsub.f32 %v2572, %v2572
      %v2701 = vsub.f32 %v2573, %v2573
      %v2702 = vsub.f32 %v2574, %v2574
      %v2703 = vsub.f32 %v2575, %v2575
      %v2704 = vsub.f32 %v2576, %v2576
      %v2705 = vsub.f32 %v2577, %v2577
      %v2706 = vsub.f32 %v2578, %v2578
      %v2707 = vsub.f32 %v2579, %v2579
      %v2708 = vsub.f32 %v2580, %v2580
      %v2709 = vsub.f32 %v2581, %v2581
      %v2710 = vsub.f32 %v2582, %v2582
      %v2711 = vsub.f32 %v2583, %v2583
      %v2712 = vsub.f32 %v2584, %v2584
      %v2713 = vsub.f32 %v2585, %v2585
      %v2714 = vsub.f32 %v2586, %v2586
      %v2715 = vsub.f32 %v2587, %v2587
      %v2716 = vsub.f32 %v2588, %v2588
      %v2717 = vsub.f32 %v2589, %v2589
      %v2718 = vsub.f32 %v2590, %v2590
      %v2719 = vsub.f32 %v2591, %v2591
      %v2720 = vsub.f32 %v2592, %v2592
      %v2721 = vsub.f32 %v2593, %v2593
      %v2722 = vsub.f32 %v2594, %v2594
      %v2723 = vsub.f32 %v2595, %v2595
      %v2724 = vsub.f32 %v2596, %v2596
      %v2725 = vsub.f32 %v2597, %v2597
      %v2726 = vsub.f32 %v2598, %v2598
      %v2727 = vsub.f32 %v2599, %v2599
      %v2728 = vsub.f32 %v2600, %v2600
      %v2729 = vsub.f32 %v2601, %v2601
      %v2730 = vsub.f32 %v2602, %v2602
      %v2731 = vsub.f32 %v2603, %v2603
      %v2732 = vsub.f32 %v2604, %v2604
      %v2733 = vsub.f32 %v2605, %v2605
      %v2734 = vsub.f32 %v2606, %v2606
      %v2735 = vsub.f32 %v2607, %v2607
      %v2736 = vsub.f32 %v2608, %v2608
      %v2737 = vsub.f32 %v2609, %v2609
      %v2738 = vsub.f32 %v2610, %v2610
      %v2739 = vsub.f32 %v2611, %v2611
      %v2740 = vsub.f32 %v2612, %v2612
      %v2741 = vsub.f32 %v2613, %v2613
      %v2742 = vsub.f32 %v2614, %v2614
      %v2743 = vsub.f32 %v2615, %v2615
      %v2744 = vsub.f32 %v2616, %v2616
      %v2745 = vsub.f32 %v2617, %v2617
      %v2746 = vsub.f32 %v2618, %v2618
      %v2747 = vsub.f32 %v2619, %v2619
      %v2748 = vsub.f32 %v2620, %v2620
      %v2749 = vsub.f32 %v2621, %v2621
      %v2750 = vsub.f32 %v2622, %v2622
      %v2751 = vsub.f32 %v2623, %v2623
      %v2752 = vsub.f32 %v2624, %v2624
      %v2753 = vsub.f32 %v2625, %v2625
      %v2754 = vsub.f32 %v2626, %v2626
      %v2755 = vsub.f32 %v2627, %v2627
      %v2756 = vsub.f32 %v2628, %v2628
      %v2757 = vsub.f32 %v2629, %v2629
      %v2758 = vsub.f32 %v2630, %v2630
      %v2759 = vsub.f32 %v2631, %v2631
      %v2760 = vsub.f32 %v2632, %v2632
      %v2761 = vsub.f32 %v2633, %v2633
      %v2762 = vsub.f32 %v2634, %v2634
      %v2763 = vsub.f32 %v2635, %v2635
      %v2764 = vsub.f32 %v2636, %v2636
      %v2765 = vsub.f32 %v2637, %v2637
      %v2766 = vsub.f32 %v2638, %v2638
      %v2767 = vsub.f32 %v2639, %v2639
      %v2768 = vsub.f32 %v2640, %v2640
      %v2769 = vsub.f32 %v2641, %v2641
      %v2770 = vsub.f32 %v2642, %v2642
      %v2771 = vsub.f32 %v2643, %v2643
      %v2772 = vsub.f32 %v2644, %v2644
      %v2773 = vsub.f32 %v2645, %v2645
      %v2774 = vsub.f32 %v2646, %v2646
      %v2775 = vsub.f32 %v2647, %v2647
      %v2776 = vsub.f32 %v2648, %v2648
      %v2777 = vsub.f32 %v2649, %v2649
      %v2778 = vsub.f32 %v2650, %v2650
      %v2779 = vsub.f32 %v2651, %v2651
      %v2780 = vsub.f32 %v2652, %v2652
      %v2781 = vsub.f32 %v2653, %v2653
      %v2782 = vsub.f32 %v2654, %v2654
      %v2783 = vsub.f32 %v2655, %v2655
      %v2784 = vsub.f32 %v2656, %v2656
      %v2785 = vsub.f32 %v2657, %v2657
      %v2786 = vsub.f32 %v2658, %v2658
      %v2787 = vsub.f32 %v2659, %v2659
      %v2788 = vsub.f32 %v2660, %v2660
      %v2789 = vsub.f32 %v2661, %v2661
      %v2790 = vsub.f32 %v2662, %v2662
      %v2791 = vsub.f32 %v2663, %v2663
      %v2792 = vsub.f32 %v2664, %v2664
      %v2793 = vsub.f32 %v2665, %v2665
      %v2794 = vsub.f32 %v2666, %v2666
      %v2795 = vsub.f32 %v2667, %v2667
      %v2796 = vsub.f32 %v2668, %v2668
      %v2797 = vsub.f32 %v2669, %v2669
      %v2798 = vsub.f32 %v2670, %v2670
      %v2799 = vsub.f32 %v2671, %v2671
      %v2800 = vsub.f32 %v2672, %v2672
      %v2801 = vsub.f32 %v2673, %v2673
      %v2802 = vsub.f32 %v2674, %v2674
      %v2803 = vsub.f32 %v2675, %v2675
      %v2804 = vsub.f32 %v2676, %v2676
      %v2805 = vsub.f32 %v2677, %v2677
      %v2806 = vsub.f32 %v2678, %v2678
      %v2807 = vsub.f32 %v2679, %v2679
      %v2808 = vsub.f32 %v2680, %v2680
      %v2809 = vsub.f32 %v2681, %v2681
      %v2810 = vsub.f32 %v2682, %v2682
      %v2811 = vsub.f32 %v2683, %v2683
      %v2812 = vsub.f32 %v2684, %v2684
      %v2813 = vsub.f32 %v2685, %v2685
      %v2814 = vsub.f32 %v2686, %v2686
      %v2815 = vsub.f32 %v2687, %v2687
      %v2816 = vsub.f32 %v2688, %v2688
      %v2817 = vmul.f32 %v2689, 1.442695
      %v2818 = vpow.pop %v2817
      %v2819 = vmul.f32 %v2690, 1.442695
      %v2820 = vpow.pop %v2819
      %v2821 = vmul.f32 %v2691, 1.442695
      %v2822 = vpow.pop %v2821
      %v2823 = vmul.f32 %v2692, 1.442695
      %v2824 = vpow.pop %v2823
      %v2825 = vmul.f32 %v2693, 1.442695
      %v2826 = vpow.pop %v2825
      %v2827 = vmul.f32 %v2694, 1.442695
      %v2828 = vpow.pop %v2827
      %v2829 = vmul.f32 %v2695, 1.442695
      %v2830 = vpow.pop %v2829
      %v2831 = vmul.f32 %v2696, 1.442695
      %v2832 = vpow.pop %v2831
      %v2833 = vmul.f32 %v2697, 1.442695
      %v2834 = vpow.pop %v2833
      %v2835 = vmul.f32 %v2698, 1.442695
      %v2836 = vpow.pop %v2835
      %v2837 = vmul.f32 %v2699, 1.442695
      %v2838 = vpow.pop %v2837
      %v2839 = vmul.f32 %v2700, 1.442695
      %v2840 = vpow.pop %v2839
      %v2841 = vmul.f32 %v2701, 1.442695
      %v2842 = vpow.pop %v2841
      %v2843 = vmul.f32 %v2702, 1.442695
      %v2844 = vpow.pop %v2843
      %v2845 = vmul.f32 %v2703, 1.442695
      %v2846 = vpow.pop %v2845
      %v2847 = vmul.f32 %v2704, 1.442695
      %v2848 = vpow.pop %v2847
      %v2849 = vmul.f32 %v2705, 1.442695
      %v2850 = vpow.pop %v2849
      %v2851 = vmul.f32 %v2706, 1.442695
      %v2852 = vpow.pop %v2851
      %v2853 = vmul.f32 %v2707, 1.442695
      %v2854 = vpow.pop %v2853
      %v2855 = vmul.f32 %v2708, 1.442695
      %v2856 = vpow.pop %v2855
      %v2857 = vmul.f32 %v2709, 1.442695
      %v2858 = vpow.pop %v2857
      %v2859 = vmul.f32 %v2710, 1.442695
      %v2860 = vpow.pop %v2859
      %v2861 = vmul.f32 %v2711, 1.442695
      %v2862 = vpow.pop %v2861
      %v2863 = vmul.f32 %v2712, 1.442695
      %v2864 = vpow.pop %v2863
      %v2865 = vmul.f32 %v2713, 1.442695
      %v2866 = vpow.pop %v2865
      %v2867 = vmul.f32 %v2714, 1.442695
      %v2868 = vpow.pop %v2867
      %v2869 = vmul.f32 %v2715, 1.442695
      %v2870 = vpow.pop %v2869
      %v2871 = vmul.f32 %v2716, 1.442695
      %v2872 = vpow.pop %v2871
      %v2873 = vmul.f32 %v2717, 1.442695
      %v2874 = vpow.pop %v2873
      %v2875 = vmul.f32 %v2718, 1.442695
      %v2876 = vpow.pop %v2875
      %v2877 = vmul.f32 %v2719, 1.442695
      %v2878 = vpow.pop %v2877
      %v2879 = vmul.f32 %v2720, 1.442695
      %v2880 = vpow.pop %v2879
      %v2881 = vmul.f32 %v2721, 1.442695
      %v2882 = vpow.pop %v2881
      %v2883 = vmul.f32 %v2722, 1.442695
      %v2884 = vpow.pop %v2883
      %v2885 = vmul.f32 %v2723, 1.442695
      %v2886 = vpow.pop %v2885
      %v2887 = vmul.f32 %v2724, 1.442695
      %v2888 = vpow.pop %v2887
      %v2889 = vmul.f32 %v2725, 1.442695
      %v2890 = vpow.pop %v2889
      %v2891 = vmul.f32 %v2726, 1.442695
      %v2892 = vpow.pop %v2891
      %v2893 = vmul.f32 %v2727, 1.442695
      %v2894 = vpow.pop %v2893
      %v2895 = vmul.f32 %v2728, 1.442695
      %v2896 = vpow.pop %v2895
      %v2897 = vmul.f32 %v2729, 1.442695
      %v2898 = vpow.pop %v2897
      %v2899 = vmul.f32 %v2730, 1.442695
      %v2900 = vpow.pop %v2899
      %v2901 = vmul.f32 %v2731, 1.442695
      %v2902 = vpow.pop %v2901
      %v2903 = vmul.f32 %v2732, 1.442695
      %v2904 = vpow.pop %v2903
      %v2905 = vmul.f32 %v2733, 1.442695
      %v2906 = vpow.pop %v2905
      %v2907 = vmul.f32 %v2734, 1.442695
      %v2908 = vpow.pop %v2907
      %v2909 = vmul.f32 %v2735, 1.442695
      %v2910 = vpow.pop %v2909
      %v2911 = vmul.f32 %v2736, 1.442695
      %v2912 = vpow.pop %v2911
      %v2913 = vmul.f32 %v2737, 1.442695
      %v2914 = vpow.pop %v2913
      %v2915 = vmul.f32 %v2738, 1.442695
      %v2916 = vpow.pop %v2915
      %v2917 = vmul.f32 %v2739, 1.442695
      %v2918 = vpow.pop %v2917
      %v2919 = vmul.f32 %v2740, 1.442695
      %v2920 = vpow.pop %v2919
      %v2921 = vmul.f32 %v2741, 1.442695
      %v2922 = vpow.pop %v2921
      %v2923 = vmul.f32 %v2742, 1.442695
      %v2924 = vpow.pop %v2923
      %v2925 = vmul.f32 %v2743, 1.442695
      %v2926 = vpow.pop %v2925
      %v2927 = vmul.f32 %v2744, 1.442695
      %v2928 = vpow.pop %v2927
      %v2929 = vmul.f32 %v2745, 1.442695
      %v2930 = vpow.pop %v2929
      %v2931 = vmul.f32 %v2746, 1.442695
      %v2932 = vpow.pop %v2931
      %v2933 = vmul.f32 %v2747, 1.442695
      %v2934 = vpow.pop %v2933
      %v2935 = vmul.f32 %v2748, 1.442695
      %v2936 = vpow.pop %v2935
      %v2937 = vmul.f32 %v2749, 1.442695
      %v2938 = vpow.pop %v2937
      %v2939 = vmul.f32 %v2750, 1.442695
      %v2940 = vpow.pop %v2939
      %v2941 = vmul.f32 %v2751, 1.442695
      %v2942 = vpow.pop %v2941
      %v2943 = vmul.f32 %v2752, 1.442695
      %v2944 = vpow.pop %v2943
      %v2945 = vmul.f32 %v2753, 1.442695
      %v2946 = vpow.pop %v2945
      %v2947 = vmul.f32 %v2754, 1.442695
      %v2948 = vpow.pop %v2947
      %v2949 = vmul.f32 %v2755, 1.442695
      %v2950 = vpow.pop %v2949
      %v2951 = vmul.f32 %v2756, 1.442695
      %v2952 = vpow.pop %v2951
      %v2953 = vmul.f32 %v2757, 1.442695
      %v2954 = vpow.pop %v2953
      %v2955 = vmul.f32 %v2758, 1.442695
      %v2956 = vpow.pop %v2955
      %v2957 = vmul.f32 %v2759, 1.442695
      %v2958 = vpow.pop %v2957
      %v2959 = vmul.f32 %v2760, 1.442695
      %v2960 = vpow.pop %v2959
      %v2961 = vmul.f32 %v2761, 1.442695
      %v2962 = vpow.pop %v2961
      %v2963 = vmul.f32 %v2762, 1.442695
      %v2964 = vpow.pop %v2963
      %v2965 = vmul.f32 %v2763, 1.442695
      %v2966 = vpow.pop %v2965
      %v2967 = vmul.f32 %v2764, 1.442695
      %v2968 = vpow.pop %v2967
      %v2969 = vmul.f32 %v2765, 1.442695
      %v2970 = vpow.pop %v2969
      %v2971 = vmul.f32 %v2766, 1.442695
      %v2972 = vpow.pop %v2971
      %v2973 = vmul.f32 %v2767, 1.442695
      %v2974 = vpow.pop %v2973
      %v2975 = vmul.f32 %v2768, 1.442695
      %v2976 = vpow.pop %v2975
      %v2977 = vmul.f32 %v2769, 1.442695
      %v2978 = vpow.pop %v2977
      %v2979 = vmul.f32 %v2770, 1.442695
      %v2980 = vpow.pop %v2979
      %v2981 = vmul.f32 %v2771, 1.442695
      %v2982 = vpow.pop %v2981
      %v2983 = vmul.f32 %v2772, 1.442695
      %v2984 = vpow.pop %v2983
      %v2985 = vmul.f32 %v2773, 1.442695
      %v2986 = vpow.pop %v2985
      %v2987 = vmul.f32 %v2774, 1.442695
      %v2988 = vpow.pop %v2987
      %v2989 = vmul.f32 %v2775, 1.442695
      %v2990 = vpow.pop %v2989
      %v2991 = vmul.f32 %v2776, 1.442695
      %v2992 = vpow.pop %v2991
      %v2993 = vmul.f32 %v2777, 1.442695
      %v2994 = vpow.pop %v2993
      %v2995 = vmul.f32 %v2778, 1.442695
      %v2996 = vpow.pop %v2995
      %v2997 = vmul.f32 %v2779, 1.442695
      %v2998 = vpow.pop %v2997
      %v2999 = vmul.f32 %v2780, 1.442695
      %v3000 = vpow.pop %v2999
      %v3001 = vmul.f32 %v2781, 1.442695
      %v3002 = vpow.pop %v3001
      %v3003 = vmul.f32 %v2782, 1.442695
      %v3004 = vpow.pop %v3003
      %v3005 = vmul.f32 %v2783, 1.442695
      %v3006 = vpow.pop %v3005
      %v3007 = vmul.f32 %v2784, 1.442695
      %v3008 = vpow.pop %v3007
      %v3009 = vmul.f32 %v2785, 1.442695
      %v3010 = vpow.pop %v3009
      %v3011 = vmul.f32 %v2786, 1.442695
      %v3012 = vpow.pop %v3011
      %v3013 = vmul.f32 %v2787, 1.442695
      %v3014 = vpow.pop %v3013
      %v3015 = vmul.f32 %v2788, 1.442695
      %v3016 = vpow.pop %v3015
      %v3017 = vmul.f32 %v2789, 1.442695
      %v3018 = vpow.pop %v3017
      %v3019 = vmul.f32 %v2790, 1.442695
      %v3020 = vpow.pop %v3019
      %v3021 = vmul.f32 %v2791, 1.442695
      %v3022 = vpow.pop %v3021
      %v3023 = vmul.f32 %v2792, 1.442695
      %v3024 = vpow.pop %v3023
      %v3025 = vmul.f32 %v2793, 1.442695
      %v3026 = vpow.pop %v3025
      %v3027 = vmul.f32 %v2794, 1.442695
      %v3028 = vpow.pop %v3027
      %v3029 = vmul.f32 %v2795, 1.442695
      %v3030 = vpow.pop %v3029
      %v3031 = vmul.f32 %v2796, 1.442695
      %v3032 = vpow.pop %v3031
      %v3033 = vmul.f32 %v2797, 1.442695
      %v3034 = vpow.pop %v3033
      %v3035 = vmul.f32 %v2798, 1.442695
      %v3036 = vpow.pop %v3035
      %v3037 = vmul.f32 %v2799, 1.442695
      %v3038 = vpow.pop %v3037
      %v3039 = vmul.f32 %v2800, 1.442695
      %v3040 = vpow.pop %v3039
      %v3041 = vmul.f32 %v2801, 1.442695
      %v3042 = vpow.pop %v3041
      %v3043 = vmul.f32 %v2802, 1.442695
      %v3044 = vpow.pop %v3043
      %v3045 = vmul.f32 %v2803, 1.442695
      %v3046 = vpow.pop %v3045
      %v3047 = vmul.f32 %v2804, 1.442695
      %v3048 = vpow.pop %v3047
      %v3049 = vmul.f32 %v2805, 1.442695
      %v3050 = vpow.pop %v3049
      %v3051 = vmul.f32 %v2806, 1.442695
      %v3052 = vpow.pop %v3051
      %v3053 = vmul.f32 %v2807, 1.442695
      %v3054 = vpow.pop %v3053
      %v3055 = vmul.f32 %v2808, 1.442695
      %v3056 = vpow.pop %v3055
      %v3057 = vmul.f32 %v2809, 1.442695
      %v3058 = vpow.pop %v3057
      %v3059 = vmul.f32 %v2810, 1.442695
      %v3060 = vpow.pop %v3059
      %v3061 = vmul.f32 %v2811, 1.442695
      %v3062 = vpow.pop %v3061
      %v3063 = vmul.f32 %v2812, 1.442695
      %v3064 = vpow.pop %v3063
      %v3065 = vmul.f32 %v2813, 1.442695
      %v3066 = vpow.pop %v3065
      %v3067 = vmul.f32 %v2814, 1.442695
      %v3068 = vpow.pop %v3067
      %v3069 = vmul.f32 %v2815, 1.442695
      %v3070 = vpow.pop %v3069
      %v3071 = vmul.f32 %v2816, 1.442695
      %v3072 = vpow.pop %v3071
      %v3073 = vmul.f32 %v2818, %v281
      %v3074 = vmul.f32 %v2820, %v282
      %v3075 = vmul.f32 %v2822, %v283
      %v3076 = vmul.f32 %v2824, %v284
      %v3077 = vmul.f32 %v2826, %v285
      %v3078 = vmul.f32 %v2828, %v286
      %v3079 = vmul.f32 %v2830, %v287
      %v3080 = vmul.f32 %v2832, %v288
      %v3081 = vmul.f32 %v2834, %v289
      %v3082 = vmul.f32 %v2836, %v290
      %v3083 = vmul.f32 %v2838, %v291
      %v3084 = vmul.f32 %v2840, %v292
      %v3085 = vmul.f32 %v2842, %v293
      %v3086 = vmul.f32 %v2844, %v294
      %v3087 = vmul.f32 %v2846, %v295
      %v3088 = vmul.f32 %v2848, %v296
      %v3089 = vmul.f32 %v2850, %v297
      %v3090 = vmul.f32 %v2852, %v298
      %v3091 = vmul.f32 %v2854, %v299
      %v3092 = vmul.f32 %v2856, %v300
      %v3093 = vmul.f32 %v2858, %v301
      %v3094 = vmul.f32 %v2860, %v302
      %v3095 = vmul.f32 %v2862, %v303
      %v3096 = vmul.f32 %v2864, %v304
      %v3097 = vmul.f32 %v2866, %v305
      %v3098 = vmul.f32 %v2868, %v306
      %v3099 = vmul.f32 %v2870, %v307
      %v3100 = vmul.f32 %v2872, %v308
      %v3101 = vmul.f32 %v2874, %v309
      %v3102 = vmul.f32 %v2876, %v310
      %v3103 = vmul.f32 %v2878, %v311
      %v3104 = vmul.f32 %v2880, %v312
      %v3105 = vmul.f32 %v2882, %v313
      %v3106 = vmul.f32 %v2884, %v314
      %v3107 = vmul.f32 %v2886, %v315
      %v3108 = vmul.f32 %v2888, %v316
      %v3109 = vmul.f32 %v2890, %v317
      %v3110 = vmul.f32 %v2892, %v318
      %v3111 = vmul.f32 %v2894, %v319
      %v3112 = vmul.f32 %v2896, %v320
      %v3113 = vmul.f32 %v2898, %v321
      %v3114 = vmul.f32 %v2900, %v322
      %v3115 = vmul.f32 %v2902, %v323
      %v3116 = vmul.f32 %v2904, %v324
      %v3117 = vmul.f32 %v2906, %v325
      %v3118 = vmul.f32 %v2908, %v326
      %v3119 = vmul.f32 %v2910, %v327
      %v3120 = vmul.f32 %v2912, %v328
      %v3121 = vmul.f32 %v2914, %v329
      %v3122 = vmul.f32 %v2916, %v330
      %v3123 = vmul.f32 %v2918, %v331
      %v3124 = vmul.f32 %v2920, %v332
      %v3125 = vmul.f32 %v2922, %v333
      %v3126 = vmul.f32 %v2924, %v334
      %v3127 = vmul.f32 %v2926, %v335
      %v3128 = vmul.f32 %v2928, %v336
      %v3129 = vmul.f32 %v2930, %v337
      %v3130 = vmul.f32 %v2932, %v338
      %v3131 = vmul.f32 %v2934, %v339
      %v3132 = vmul.f32 %v2936, %v340
      %v3133 = vmul.f32 %v2938, %v341
      %v3134 = vmul.f32 %v2940, %v342
      %v3135 = vmul.f32 %v2942, %v343
      %v3136 = vmul.f32 %v2944, %v344
      %v3137 = vmul.f32 %v2946, %v345
      %v3138 = vmul.f32 %v2948, %v346
      %v3139 = vmul.f32 %v2950, %v347
      %v3140 = vmul.f32 %v2952, %v348
      %v3141 = vmul.f32 %v2954, %v349
      %v3142 = vmul.f32 %v2956, %v350
      %v3143 = vmul.f32 %v2958, %v351
      %v3144 = vmul.f32 %v2960, %v352
      %v3145 = vmul.f32 %v2962, %v353
      %v3146 = vmul.f32 %v2964, %v354
      %v3147 = vmul.f32 %v2966, %v355
      %v3148 = vmul.f32 %v2968, %v356
      %v3149 = vmul.f32 %v2970, %v357
      %v3150 = vmul.f32 %v2972, %v358
      %v3151 = vmul.f32 %v2974, %v359
      %v3152 = vmul.f32 %v2976, %v360
      %v3153 = vmul.f32 %v2978, %v361
      %v3154 = vmul.f32 %v2980, %v362
      %v3155 = vmul.f32 %v2982, %v363
      %v3156 = vmul.f32 %v2984, %v364
      %v3157 = vmul.f32 %v2986, %v365
      %v3158 = vmul.f32 %v2988, %v366
      %v3159 = vmul.f32 %v2990, %v367
      %v3160 = vmul.f32 %v2992, %v368
      %v3161 = vmul.f32 %v2994, %v369
      %v3162 = vmul.f32 %v2996, %v370
      %v3163 = vmul.f32 %v2998, %v371
      %v3164 = vmul.f32 %v3000, %v372
      %v3165 = vmul.f32 %v3002, %v373
      %v3166 = vmul.f32 %v3004, %v374
      %v3167 = vmul.f32 %v3006, %v375
      %v3168 = vmul.f32 %v3008, %v376
      %v3169 = vmul.f32 %v3010, %v377
      %v3170 = vmul.f32 %v3012, %v378
      %v3171 = vmul.f32 %v3014, %v379
      %v3172 = vmul.f32 %v3016, %v380
      %v3173 = vmul.f32 %v3018, %v381
      %v3174 = vmul.f32 %v3020, %v382
      %v3175 = vmul.f32 %v3022, %v383
      %v3176 = vmul.f32 %v3024, %v384
      %v3177 = vmul.f32 %v3026, %v385
      %v3178 = vmul.f32 %v3028, %v386
      %v3179 = vmul.f32 %v3030, %v387
      %v3180 = vmul.f32 %v3032, %v388
      %v3181 = vmul.f32 %v3034, %v389
      %v3182 = vmul.f32 %v3036, %v390
      %v3183 = vmul.f32 %v3038, %v391
      %v3184 = vmul.f32 %v3040, %v392
      %v3185 = vmul.f32 %v3042, %v393
      %v3186 = vmul.f32 %v3044, %v394
      %v3187 = vmul.f32 %v3046, %v395
      %v3188 = vmul.f32 %v3048, %v396
      %v3189 = vmul.f32 %v3050, %v397
      %v3190 = vmul.f32 %v3052, %v398
      %v3191 = vmul.f32 %v3054, %v399
      %v3192 = vmul.f32 %v3056, %v400
      %v3193 = vmul.f32 %v3058, %v401
      %v3194 = vmul.f32 %v3060, %v402
      %v3195 = vmul.f32 %v3062, %v403
      %v3196 = vmul.f32 %v3064, %v404
      %v3197 = vmul.f32 %v3066, %v405
      %v3198 = vmul.f32 %v3068, %v406
      %v3199 = vmul.f32 %v3070, %v407
      %v3200 = vmul.f32 %v3072, %v408
      %v3201 = vsel %vm414, %v3073, 0.0
      %v3202 = vrot.slane %v3201, 4
      %v3203 = vadd.f32 %v3201, %v3202
      %v3204 = vrot.slane %v3203, 2
      %v3205 = vadd.f32 %v3203, %v3204
      %v3206 = vrot.slane %v3205, 1
      %v3207 = vadd.f32 %v3205, %v3206
      %v3208 = vsel %vm414, %v3074, 0.0
      %v3209 = vrot.slane %v3208, 4
      %v3210 = vadd.f32 %v3208, %v3209
      %v3211 = vrot.slane %v3210, 2
      %v3212 = vadd.f32 %v3210, %v3211
      %v3213 = vrot.slane %v3212, 1
      %v3214 = vadd.f32 %v3212, %v3213
      %v3215 = vsel %vm414, %v3075, 0.0
      %v3216 = vrot.slane %v3215, 4
      %v3217 = vadd.f32 %v3215, %v3216
      %v3218 = vrot.slane %v3217, 2
      %v3219 = vadd.f32 %v3217, %v3218
      %v3220 = vrot.slane %v3219, 1
      %v3221 = vadd.f32 %v3219, %v3220
      %v3222 = vsel %vm414, %v3076, 0.0
      %v3223 = vrot.slane %v3222, 4
      %v3224 = vadd.f32 %v3222, %v3223
      %v3225 = vrot.slane %v3224, 2
      %v3226 = vadd.f32 %v3224, %v3225
      %v3227 = vrot.slane %v3226, 1
      %v3228 = vadd.f32 %v3226, %v3227
      %v3229 = vsel %vm414, %v3077, 0.0
      %v3230 = vrot.slane %v3229, 4
      %v3231 = vadd.f32 %v3229, %v3230
      %v3232 = vrot.slane %v3231, 2
      %v3233 = vadd.f32 %v3231, %v3232
      %v3234 = vrot.slane %v3233, 1
      %v3235 = vadd.f32 %v3233, %v3234
      %v3236 = vsel %vm414, %v3078, 0.0
      %v3237 = vrot.slane %v3236, 4
      %v3238 = vadd.f32 %v3236, %v3237
      %v3239 = vrot.slane %v3238, 2
      %v3240 = vadd.f32 %v3238, %v3239
      %v3241 = vrot.slane %v3240, 1
      %v3242 = vadd.f32 %v3240, %v3241
      %v3243 = vsel %vm414, %v3079, 0.0
      %v3244 = vrot.slane %v3243, 4
      %v3245 = vadd.f32 %v3243, %v3244
      %v3246 = vrot.slane %v3245, 2
      %v3247 = vadd.f32 %v3245, %v3246
      %v3248 = vrot.slane %v3247, 1
      %v3249 = vadd.f32 %v3247, %v3248
      %v3250 = vsel %vm414, %v3080, 0.0
      %v3251 = vrot.slane %v3250, 4
      %v3252 = vadd.f32 %v3250, %v3251
      %v3253 = vrot.slane %v3252, 2
      %v3254 = vadd.f32 %v3252, %v3253
      %v3255 = vrot.slane %v3254, 1
      %v3256 = vadd.f32 %v3254, %v3255
      %v3257 = vsel %vm414, %v3081, 0.0
      %v3258 = vrot.slane %v3257, 4
      %v3259 = vadd.f32 %v3257, %v3258
      %v3260 = vrot.slane %v3259, 2
      %v3261 = vadd.f32 %v3259, %v3260
      %v3262 = vrot.slane %v3261, 1
      %v3263 = vadd.f32 %v3261, %v3262
      %v3264 = vsel %vm414, %v3082, 0.0
      %v3265 = vrot.slane %v3264, 4
      %v3266 = vadd.f32 %v3264, %v3265
      %v3267 = vrot.slane %v3266, 2
      %v3268 = vadd.f32 %v3266, %v3267
      %v3269 = vrot.slane %v3268, 1
      %v3270 = vadd.f32 %v3268, %v3269
      %v3271 = vsel %vm414, %v3083, 0.0
      %v3272 = vrot.slane %v3271, 4
      %v3273 = vadd.f32 %v3271, %v3272
      %v3274 = vrot.slane %v3273, 2
      %v3275 = vadd.f32 %v3273, %v3274
      %v3276 = vrot.slane %v3275, 1
      %v3277 = vadd.f32 %v3275, %v3276
      %v3278 = vsel %vm414, %v3084, 0.0
      %v3279 = vrot.slane %v3278, 4
      %v3280 = vadd.f32 %v3278, %v3279
      %v3281 = vrot.slane %v3280, 2
      %v3282 = vadd.f32 %v3280, %v3281
      %v3283 = vrot.slane %v3282, 1
      %v3284 = vadd.f32 %v3282, %v3283
      %v3285 = vsel %vm414, %v3085, 0.0
      %v3286 = vrot.slane %v3285, 4
      %v3287 = vadd.f32 %v3285, %v3286
      %v3288 = vrot.slane %v3287, 2
      %v3289 = vadd.f32 %v3287, %v3288
      %v3290 = vrot.slane %v3289, 1
      %v3291 = vadd.f32 %v3289, %v3290
      %v3292 = vsel %vm414, %v3086, 0.0
      %v3293 = vrot.slane %v3292, 4
      %v3294 = vadd.f32 %v3292, %v3293
      %v3295 = vrot.slane %v3294, 2
      %v3296 = vadd.f32 %v3294, %v3295
      %v3297 = vrot.slane %v3296, 1
      %v3298 = vadd.f32 %v3296, %v3297
      %v3299 = vsel %vm414, %v3087, 0.0
      %v3300 = vrot.slane %v3299, 4
      %v3301 = vadd.f32 %v3299, %v3300
      %v3302 = vrot.slane %v3301, 2
      %v3303 = vadd.f32 %v3301, %v3302
      %v3304 = vrot.slane %v3303, 1
      %v3305 = vadd.f32 %v3303, %v3304
      %v3306 = vsel %vm414, %v3088, 0.0
      %v3307 = vrot.slane %v3306, 4
      %v3308 = vadd.f32 %v3306, %v3307
      %v3309 = vrot.slane %v3308, 2
      %v3310 = vadd.f32 %v3308, %v3309
      %v3311 = vrot.slane %v3310, 1
      %v3312 = vadd.f32 %v3310, %v3311
      %v3313 = vsel %vm414, %v3089, 0.0
      %v3314 = vrot.slane %v3313, 4
      %v3315 = vadd.f32 %v3313, %v3314
      %v3316 = vrot.slane %v3315, 2
      %v3317 = vadd.f32 %v3315, %v3316
      %v3318 = vrot.slane %v3317, 1
      %v3319 = vadd.f32 %v3317, %v3318
      %v3320 = vsel %vm414, %v3090, 0.0
      %v3321 = vrot.slane %v3320, 4
      %v3322 = vadd.f32 %v3320, %v3321
      %v3323 = vrot.slane %v3322, 2
      %v3324 = vadd.f32 %v3322, %v3323
      %v3325 = vrot.slane %v3324, 1
      %v3326 = vadd.f32 %v3324, %v3325
      %v3327 = vsel %vm414, %v3091, 0.0
      %v3328 = vrot.slane %v3327, 4
      %v3329 = vadd.f32 %v3327, %v3328
      %v3330 = vrot.slane %v3329, 2
      %v3331 = vadd.f32 %v3329, %v3330
      %v3332 = vrot.slane %v3331, 1
      %v3333 = vadd.f32 %v3331, %v3332
      %v3334 = vsel %vm414, %v3092, 0.0
      %v3335 = vrot.slane %v3334, 4
      %v3336 = vadd.f32 %v3334, %v3335
      %v3337 = vrot.slane %v3336, 2
      %v3338 = vadd.f32 %v3336, %v3337
      %v3339 = vrot.slane %v3338, 1
      %v3340 = vadd.f32 %v3338, %v3339
      %v3341 = vsel %vm414, %v3093, 0.0
      %v3342 = vrot.slane %v3341, 4
      %v3343 = vadd.f32 %v3341, %v3342
      %v3344 = vrot.slane %v3343, 2
      %v3345 = vadd.f32 %v3343, %v3344
      %v3346 = vrot.slane %v3345, 1
      %v3347 = vadd.f32 %v3345, %v3346
      %v3348 = vsel %vm414, %v3094, 0.0
      %v3349 = vrot.slane %v3348, 4
      %v3350 = vadd.f32 %v3348, %v3349
      %v3351 = vrot.slane %v3350, 2
      %v3352 = vadd.f32 %v3350, %v3351
      %v3353 = vrot.slane %v3352, 1
      %v3354 = vadd.f32 %v3352, %v3353
      %v3355 = vsel %vm414, %v3095, 0.0
      %v3356 = vrot.slane %v3355, 4
      %v3357 = vadd.f32 %v3355, %v3356
      %v3358 = vrot.slane %v3357, 2
      %v3359 = vadd.f32 %v3357, %v3358
      %v3360 = vrot.slane %v3359, 1
      %v3361 = vadd.f32 %v3359, %v3360
      %v3362 = vsel %vm414, %v3096, 0.0
      %v3363 = vrot.slane %v3362, 4
      %v3364 = vadd.f32 %v3362, %v3363
      %v3365 = vrot.slane %v3364, 2
      %v3366 = vadd.f32 %v3364, %v3365
      %v3367 = vrot.slane %v3366, 1
      %v3368 = vadd.f32 %v3366, %v3367
      %v3369 = vsel %vm414, %v3097, 0.0
      %v3370 = vrot.slane %v3369, 4
      %v3371 = vadd.f32 %v3369, %v3370
      %v3372 = vrot.slane %v3371, 2
      %v3373 = vadd.f32 %v3371, %v3372
      %v3374 = vrot.slane %v3373, 1
      %v3375 = vadd.f32 %v3373, %v3374
      %v3376 = vsel %vm414, %v3098, 0.0
      %v3377 = vrot.slane %v3376, 4
      %v3378 = vadd.f32 %v3376, %v3377
      %v3379 = vrot.slane %v3378, 2
      %v3380 = vadd.f32 %v3378, %v3379
      %v3381 = vrot.slane %v3380, 1
      %v3382 = vadd.f32 %v3380, %v3381
      %v3383 = vsel %vm414, %v3099, 0.0
      %v3384 = vrot.slane %v3383, 4
      %v3385 = vadd.f32 %v3383, %v3384
      %v3386 = vrot.slane %v3385, 2
      %v3387 = vadd.f32 %v3385, %v3386
      %v3388 = vrot.slane %v3387, 1
      %v3389 = vadd.f32 %v3387, %v3388
      %v3390 = vsel %vm414, %v3100, 0.0
      %v3391 = vrot.slane %v3390, 4
      %v3392 = vadd.f32 %v3390, %v3391
      %v3393 = vrot.slane %v3392, 2
      %v3394 = vadd.f32 %v3392, %v3393
      %v3395 = vrot.slane %v3394, 1
      %v3396 = vadd.f32 %v3394, %v3395
      %v3397 = vsel %vm414, %v3101, 0.0
      %v3398 = vrot.slane %v3397, 4
      %v3399 = vadd.f32 %v3397, %v3398
      %v3400 = vrot.slane %v3399, 2
      %v3401 = vadd.f32 %v3399, %v3400
      %v3402 = vrot.slane %v3401, 1
      %v3403 = vadd.f32 %v3401, %v3402
      %v3404 = vsel %vm414, %v3102, 0.0
      %v3405 = vrot.slane %v3404, 4
      %v3406 = vadd.f32 %v3404, %v3405
      %v3407 = vrot.slane %v3406, 2
      %v3408 = vadd.f32 %v3406, %v3407
      %v3409 = vrot.slane %v3408, 1
      %v3410 = vadd.f32 %v3408, %v3409
      %v3411 = vsel %vm414, %v3103, 0.0
      %v3412 = vrot.slane %v3411, 4
      %v3413 = vadd.f32 %v3411, %v3412
      %v3414 = vrot.slane %v3413, 2
      %v3415 = vadd.f32 %v3413, %v3414
      %v3416 = vrot.slane %v3415, 1
      %v3417 = vadd.f32 %v3415, %v3416
      %v3418 = vsel %vm414, %v3104, 0.0
      %v3419 = vrot.slane %v3418, 4
      %v3420 = vadd.f32 %v3418, %v3419
      %v3421 = vrot.slane %v3420, 2
      %v3422 = vadd.f32 %v3420, %v3421
      %v3423 = vrot.slane %v3422, 1
      %v3424 = vadd.f32 %v3422, %v3423
      %v3425 = vsel %vm414, %v3105, 0.0
      %v3426 = vrot.slane %v3425, 4
      %v3427 = vadd.f32 %v3425, %v3426
      %v3428 = vrot.slane %v3427, 2
      %v3429 = vadd.f32 %v3427, %v3428
      %v3430 = vrot.slane %v3429, 1
      %v3431 = vadd.f32 %v3429, %v3430
      %v3432 = vsel %vm414, %v3106, 0.0
      %v3433 = vrot.slane %v3432, 4
      %v3434 = vadd.f32 %v3432, %v3433
      %v3435 = vrot.slane %v3434, 2
      %v3436 = vadd.f32 %v3434, %v3435
      %v3437 = vrot.slane %v3436, 1
      %v3438 = vadd.f32 %v3436, %v3437
      %v3439 = vsel %vm414, %v3107, 0.0
      %v3440 = vrot.slane %v3439, 4
      %v3441 = vadd.f32 %v3439, %v3440
      %v3442 = vrot.slane %v3441, 2
      %v3443 = vadd.f32 %v3441, %v3442
      %v3444 = vrot.slane %v3443, 1
      %v3445 = vadd.f32 %v3443, %v3444
      %v3446 = vsel %vm414, %v3108, 0.0
      %v3447 = vrot.slane %v3446, 4
      %v3448 = vadd.f32 %v3446, %v3447
      %v3449 = vrot.slane %v3448, 2
      %v3450 = vadd.f32 %v3448, %v3449
      %v3451 = vrot.slane %v3450, 1
      %v3452 = vadd.f32 %v3450, %v3451
      %v3453 = vsel %vm414, %v3109, 0.0
      %v3454 = vrot.slane %v3453, 4
      %v3455 = vadd.f32 %v3453, %v3454
      %v3456 = vrot.slane %v3455, 2
      %v3457 = vadd.f32 %v3455, %v3456
      %v3458 = vrot.slane %v3457, 1
      %v3459 = vadd.f32 %v3457, %v3458
      %v3460 = vsel %vm414, %v3110, 0.0
      %v3461 = vrot.slane %v3460, 4
      %v3462 = vadd.f32 %v3460, %v3461
      %v3463 = vrot.slane %v3462, 2
      %v3464 = vadd.f32 %v3462, %v3463
      %v3465 = vrot.slane %v3464, 1
      %v3466 = vadd.f32 %v3464, %v3465
      %v3467 = vsel %vm414, %v3111, 0.0
      %v3468 = vrot.slane %v3467, 4
      %v3469 = vadd.f32 %v3467, %v3468
      %v3470 = vrot.slane %v3469, 2
      %v3471 = vadd.f32 %v3469, %v3470
      %v3472 = vrot.slane %v3471, 1
      %v3473 = vadd.f32 %v3471, %v3472
      %v3474 = vsel %vm414, %v3112, 0.0
      %v3475 = vrot.slane %v3474, 4
      %v3476 = vadd.f32 %v3474, %v3475
      %v3477 = vrot.slane %v3476, 2
      %v3478 = vadd.f32 %v3476, %v3477
      %v3479 = vrot.slane %v3478, 1
      %v3480 = vadd.f32 %v3478, %v3479
      %v3481 = vsel %vm414, %v3113, 0.0
      %v3482 = vrot.slane %v3481, 4
      %v3483 = vadd.f32 %v3481, %v3482
      %v3484 = vrot.slane %v3483, 2
      %v3485 = vadd.f32 %v3483, %v3484
      %v3486 = vrot.slane %v3485, 1
      %v3487 = vadd.f32 %v3485, %v3486
      %v3488 = vsel %vm414, %v3114, 0.0
      %v3489 = vrot.slane %v3488, 4
      %v3490 = vadd.f32 %v3488, %v3489
      %v3491 = vrot.slane %v3490, 2
      %v3492 = vadd.f32 %v3490, %v3491
      %v3493 = vrot.slane %v3492, 1
      %v3494 = vadd.f32 %v3492, %v3493
      %v3495 = vsel %vm414, %v3115, 0.0
      %v3496 = vrot.slane %v3495, 4
      %v3497 = vadd.f32 %v3495, %v3496
      %v3498 = vrot.slane %v3497, 2
      %v3499 = vadd.f32 %v3497, %v3498
      %v3500 = vrot.slane %v3499, 1
      %v3501 = vadd.f32 %v3499, %v3500
      %v3502 = vsel %vm414, %v3116, 0.0
      %v3503 = vrot.slane %v3502, 4
      %v3504 = vadd.f32 %v3502, %v3503
      %v3505 = vrot.slane %v3504, 2
      %v3506 = vadd.f32 %v3504, %v3505
      %v3507 = vrot.slane %v3506, 1
      %v3508 = vadd.f32 %v3506, %v3507
      %v3509 = vsel %vm414, %v3117, 0.0
      %v3510 = vrot.slane %v3509, 4
      %v3511 = vadd.f32 %v3509, %v3510
      %v3512 = vrot.slane %v3511, 2
      %v3513 = vadd.f32 %v3511, %v3512
      %v3514 = vrot.slane %v3513, 1
      %v3515 = vadd.f32 %v3513, %v3514
      %v3516 = vsel %vm414, %v3118, 0.0
      %v3517 = vrot.slane %v3516, 4
      %v3518 = vadd.f32 %v3516, %v3517
      %v3519 = vrot.slane %v3518, 2
      %v3520 = vadd.f32 %v3518, %v3519
      %v3521 = vrot.slane %v3520, 1
      %v3522 = vadd.f32 %v3520, %v3521
      %v3523 = vsel %vm414, %v3119, 0.0
      %v3524 = vrot.slane %v3523, 4
      %v3525 = vadd.f32 %v3523, %v3524
      %v3526 = vrot.slane %v3525, 2
      %v3527 = vadd.f32 %v3525, %v3526
      %v3528 = vrot.slane %v3527, 1
      %v3529 = vadd.f32 %v3527, %v3528
      %v3530 = vsel %vm414, %v3120, 0.0
      %v3531 = vrot.slane %v3530, 4
      %v3532 = vadd.f32 %v3530, %v3531
      %v3533 = vrot.slane %v3532, 2
      %v3534 = vadd.f32 %v3532, %v3533
      %v3535 = vrot.slane %v3534, 1
      %v3536 = vadd.f32 %v3534, %v3535
      %v3537 = vsel %vm414, %v3121, 0.0
      %v3538 = vrot.slane %v3537, 4
      %v3539 = vadd.f32 %v3537, %v3538
      %v3540 = vrot.slane %v3539, 2
      %v3541 = vadd.f32 %v3539, %v3540
      %v3542 = vrot.slane %v3541, 1
      %v3543 = vadd.f32 %v3541, %v3542
      %v3544 = vsel %vm414, %v3122, 0.0
      %v3545 = vrot.slane %v3544, 4
      %v3546 = vadd.f32 %v3544, %v3545
      %v3547 = vrot.slane %v3546, 2
      %v3548 = vadd.f32 %v3546, %v3547
      %v3549 = vrot.slane %v3548, 1
      %v3550 = vadd.f32 %v3548, %v3549
      %v3551 = vsel %vm414, %v3123, 0.0
      %v3552 = vrot.slane %v3551, 4
      %v3553 = vadd.f32 %v3551, %v3552
      %v3554 = vrot.slane %v3553, 2
      %v3555 = vadd.f32 %v3553, %v3554
      %v3556 = vrot.slane %v3555, 1
      %v3557 = vadd.f32 %v3555, %v3556
      %v3558 = vsel %vm414, %v3124, 0.0
      %v3559 = vrot.slane %v3558, 4
      %v3560 = vadd.f32 %v3558, %v3559
      %v3561 = vrot.slane %v3560, 2
      %v3562 = vadd.f32 %v3560, %v3561
      %v3563 = vrot.slane %v3562, 1
      %v3564 = vadd.f32 %v3562, %v3563
      %v3565 = vsel %vm414, %v3125, 0.0
      %v3566 = vrot.slane %v3565, 4
      %v3567 = vadd.f32 %v3565, %v3566
      %v3568 = vrot.slane %v3567, 2
      %v3569 = vadd.f32 %v3567, %v3568
      %v3570 = vrot.slane %v3569, 1
      %v3571 = vadd.f32 %v3569, %v3570
      %v3572 = vsel %vm414, %v3126, 0.0
      %v3573 = vrot.slane %v3572, 4
      %v3574 = vadd.f32 %v3572, %v3573
      %v3575 = vrot.slane %v3574, 2
      %v3576 = vadd.f32 %v3574, %v3575
      %v3577 = vrot.slane %v3576, 1
      %v3578 = vadd.f32 %v3576, %v3577
      %v3579 = vsel %vm414, %v3127, 0.0
      %v3580 = vrot.slane %v3579, 4
      %v3581 = vadd.f32 %v3579, %v3580
      %v3582 = vrot.slane %v3581, 2
      %v3583 = vadd.f32 %v3581, %v3582
      %v3584 = vrot.slane %v3583, 1
      %v3585 = vadd.f32 %v3583, %v3584
      %v3586 = vsel %vm414, %v3128, 0.0
      %v3587 = vrot.slane %v3586, 4
      %v3588 = vadd.f32 %v3586, %v3587
      %v3589 = vrot.slane %v3588, 2
      %v3590 = vadd.f32 %v3588, %v3589
      %v3591 = vrot.slane %v3590, 1
      %v3592 = vadd.f32 %v3590, %v3591
      %v3593 = vsel %vm414, %v3129, 0.0
      %v3594 = vrot.slane %v3593, 4
      %v3595 = vadd.f32 %v3593, %v3594
      %v3596 = vrot.slane %v3595, 2
      %v3597 = vadd.f32 %v3595, %v3596
      %v3598 = vrot.slane %v3597, 1
      %v3599 = vadd.f32 %v3597, %v3598
      %v3600 = vsel %vm414, %v3130, 0.0
      %v3601 = vrot.slane %v3600, 4
      %v3602 = vadd.f32 %v3600, %v3601
      %v3603 = vrot.slane %v3602, 2
      %v3604 = vadd.f32 %v3602, %v3603
      %v3605 = vrot.slane %v3604, 1
      %v3606 = vadd.f32 %v3604, %v3605
      %v3607 = vsel %vm414, %v3131, 0.0
      %v3608 = vrot.slane %v3607, 4
      %v3609 = vadd.f32 %v3607, %v3608
      %v3610 = vrot.slane %v3609, 2
      %v3611 = vadd.f32 %v3609, %v3610
      %v3612 = vrot.slane %v3611, 1
      %v3613 = vadd.f32 %v3611, %v3612
      %v3614 = vsel %vm414, %v3132, 0.0
      %v3615 = vrot.slane %v3614, 4
      %v3616 = vadd.f32 %v3614, %v3615
      %v3617 = vrot.slane %v3616, 2
      %v3618 = vadd.f32 %v3616, %v3617
      %v3619 = vrot.slane %v3618, 1
      %v3620 = vadd.f32 %v3618, %v3619
      %v3621 = vsel %vm414, %v3133, 0.0
      %v3622 = vrot.slane %v3621, 4
      %v3623 = vadd.f32 %v3621, %v3622
      %v3624 = vrot.slane %v3623, 2
      %v3625 = vadd.f32 %v3623, %v3624
      %v3626 = vrot.slane %v3625, 1
      %v3627 = vadd.f32 %v3625, %v3626
      %v3628 = vsel %vm414, %v3134, 0.0
      %v3629 = vrot.slane %v3628, 4
      %v3630 = vadd.f32 %v3628, %v3629
      %v3631 = vrot.slane %v3630, 2
      %v3632 = vadd.f32 %v3630, %v3631
      %v3633 = vrot.slane %v3632, 1
      %v3634 = vadd.f32 %v3632, %v3633
      %v3635 = vsel %vm414, %v3135, 0.0
      %v3636 = vrot.slane %v3635, 4
      %v3637 = vadd.f32 %v3635, %v3636
      %v3638 = vrot.slane %v3637, 2
      %v3639 = vadd.f32 %v3637, %v3638
      %v3640 = vrot.slane %v3639, 1
      %v3641 = vadd.f32 %v3639, %v3640
      %v3642 = vsel %vm414, %v3136, 0.0
      %v3643 = vrot.slane %v3642, 4
      %v3644 = vadd.f32 %v3642, %v3643
      %v3645 = vrot.slane %v3644, 2
      %v3646 = vadd.f32 %v3644, %v3645
      %v3647 = vrot.slane %v3646, 1
      %v3648 = vadd.f32 %v3646, %v3647
      %v3649 = vsel %vm414, %v3137, 0.0
      %v3650 = vrot.slane %v3649, 4
      %v3651 = vadd.f32 %v3649, %v3650
      %v3652 = vrot.slane %v3651, 2
      %v3653 = vadd.f32 %v3651, %v3652
      %v3654 = vrot.slane %v3653, 1
      %v3655 = vadd.f32 %v3653, %v3654
      %v3656 = vsel %vm414, %v3138, 0.0
      %v3657 = vrot.slane %v3656, 4
      %v3658 = vadd.f32 %v3656, %v3657
      %v3659 = vrot.slane %v3658, 2
      %v3660 = vadd.f32 %v3658, %v3659
      %v3661 = vrot.slane %v3660, 1
      %v3662 = vadd.f32 %v3660, %v3661
      %v3663 = vsel %vm414, %v3139, 0.0
      %v3664 = vrot.slane %v3663, 4
      %v3665 = vadd.f32 %v3663, %v3664
      %v3666 = vrot.slane %v3665, 2
      %v3667 = vadd.f32 %v3665, %v3666
      %v3668 = vrot.slane %v3667, 1
      %v3669 = vadd.f32 %v3667, %v3668
      %v3670 = vsel %vm414, %v3140, 0.0
      %v3671 = vrot.slane %v3670, 4
      %v3672 = vadd.f32 %v3670, %v3671
      %v3673 = vrot.slane %v3672, 2
      %v3674 = vadd.f32 %v3672, %v3673
      %v3675 = vrot.slane %v3674, 1
      %v3676 = vadd.f32 %v3674, %v3675
      %v3677 = vsel %vm414, %v3141, 0.0
      %v3678 = vrot.slane %v3677, 4
      %v3679 = vadd.f32 %v3677, %v3678
      %v3680 = vrot.slane %v3679, 2
      %v3681 = vadd.f32 %v3679, %v3680
      %v3682 = vrot.slane %v3681, 1
      %v3683 = vadd.f32 %v3681, %v3682
      %v3684 = vsel %vm414, %v3142, 0.0
      %v3685 = vrot.slane %v3684, 4
      %v3686 = vadd.f32 %v3684, %v3685
      %v3687 = vrot.slane %v3686, 2
      %v3688 = vadd.f32 %v3686, %v3687
      %v3689 = vrot.slane %v3688, 1
      %v3690 = vadd.f32 %v3688, %v3689
      %v3691 = vsel %vm414, %v3143, 0.0
      %v3692 = vrot.slane %v3691, 4
      %v3693 = vadd.f32 %v3691, %v3692
      %v3694 = vrot.slane %v3693, 2
      %v3695 = vadd.f32 %v3693, %v3694
      %v3696 = vrot.slane %v3695, 1
      %v3697 = vadd.f32 %v3695, %v3696
      %v3698 = vsel %vm414, %v3144, 0.0
      %v3699 = vrot.slane %v3698, 4
      %v3700 = vadd.f32 %v3698, %v3699
      %v3701 = vrot.slane %v3700, 2
      %v3702 = vadd.f32 %v3700, %v3701
      %v3703 = vrot.slane %v3702, 1
      %v3704 = vadd.f32 %v3702, %v3703
      %v3705 = vsel %vm414, %v3145, 0.0
      %v3706 = vrot.slane %v3705, 4
      %v3707 = vadd.f32 %v3705, %v3706
      %v3708 = vrot.slane %v3707, 2
      %v3709 = vadd.f32 %v3707, %v3708
      %v3710 = vrot.slane %v3709, 1
      %v3711 = vadd.f32 %v3709, %v3710
      %v3712 = vsel %vm414, %v3146, 0.0
      %v3713 = vrot.slane %v3712, 4
      %v3714 = vadd.f32 %v3712, %v3713
      %v3715 = vrot.slane %v3714, 2
      %v3716 = vadd.f32 %v3714, %v3715
      %v3717 = vrot.slane %v3716, 1
      %v3718 = vadd.f32 %v3716, %v3717
      %v3719 = vsel %vm414, %v3147, 0.0
      %v3720 = vrot.slane %v3719, 4
      %v3721 = vadd.f32 %v3719, %v3720
      %v3722 = vrot.slane %v3721, 2
      %v3723 = vadd.f32 %v3721, %v3722
      %v3724 = vrot.slane %v3723, 1
      %v3725 = vadd.f32 %v3723, %v3724
      %v3726 = vsel %vm414, %v3148, 0.0
      %v3727 = vrot.slane %v3726, 4
      %v3728 = vadd.f32 %v3726, %v3727
      %v3729 = vrot.slane %v3728, 2
      %v3730 = vadd.f32 %v3728, %v3729
      %v3731 = vrot.slane %v3730, 1
      %v3732 = vadd.f32 %v3730, %v3731
      %v3733 = vsel %vm414, %v3149, 0.0
      %v3734 = vrot.slane %v3733, 4
      %v3735 = vadd.f32 %v3733, %v3734
      %v3736 = vrot.slane %v3735, 2
      %v3737 = vadd.f32 %v3735, %v3736
      %v3738 = vrot.slane %v3737, 1
      %v3739 = vadd.f32 %v3737, %v3738
      %v3740 = vsel %vm414, %v3150, 0.0
      %v3741 = vrot.slane %v3740, 4
      %v3742 = vadd.f32 %v3740, %v3741
      %v3743 = vrot.slane %v3742, 2
      %v3744 = vadd.f32 %v3742, %v3743
      %v3745 = vrot.slane %v3744, 1
      %v3746 = vadd.f32 %v3744, %v3745
      %v3747 = vsel %vm414, %v3151, 0.0
      %v3748 = vrot.slane %v3747, 4
      %v3749 = vadd.f32 %v3747, %v3748
      %v3750 = vrot.slane %v3749, 2
      %v3751 = vadd.f32 %v3749, %v3750
      %v3752 = vrot.slane %v3751, 1
      %v3753 = vadd.f32 %v3751, %v3752
      %v3754 = vsel %vm414, %v3152, 0.0
      %v3755 = vrot.slane %v3754, 4
      %v3756 = vadd.f32 %v3754, %v3755
      %v3757 = vrot.slane %v3756, 2
      %v3758 = vadd.f32 %v3756, %v3757
      %v3759 = vrot.slane %v3758, 1
      %v3760 = vadd.f32 %v3758, %v3759
      %v3761 = vsel %vm414, %v3153, 0.0
      %v3762 = vrot.slane %v3761, 4
      %v3763 = vadd.f32 %v3761, %v3762
      %v3764 = vrot.slane %v3763, 2
      %v3765 = vadd.f32 %v3763, %v3764
      %v3766 = vrot.slane %v3765, 1
      %v3767 = vadd.f32 %v3765, %v3766
      %v3768 = vsel %vm414, %v3154, 0.0
      %v3769 = vrot.slane %v3768, 4
      %v3770 = vadd.f32 %v3768, %v3769
      %v3771 = vrot.slane %v3770, 2
      %v3772 = vadd.f32 %v3770, %v3771
      %v3773 = vrot.slane %v3772, 1
      %v3774 = vadd.f32 %v3772, %v3773
      %v3775 = vsel %vm414, %v3155, 0.0
      %v3776 = vrot.slane %v3775, 4
      %v3777 = vadd.f32 %v3775, %v3776
      %v3778 = vrot.slane %v3777, 2
      %v3779 = vadd.f32 %v3777, %v3778
      %v3780 = vrot.slane %v3779, 1
      %v3781 = vadd.f32 %v3779, %v3780
      %v3782 = vsel %vm414, %v3156, 0.0
      %v3783 = vrot.slane %v3782, 4
      %v3784 = vadd.f32 %v3782, %v3783
      %v3785 = vrot.slane %v3784, 2
      %v3786 = vadd.f32 %v3784, %v3785
      %v3787 = vrot.slane %v3786, 1
      %v3788 = vadd.f32 %v3786, %v3787
      %v3789 = vsel %vm414, %v3157, 0.0
      %v3790 = vrot.slane %v3789, 4
      %v3791 = vadd.f32 %v3789, %v3790
      %v3792 = vrot.slane %v3791, 2
      %v3793 = vadd.f32 %v3791, %v3792
      %v3794 = vrot.slane %v3793, 1
      %v3795 = vadd.f32 %v3793, %v3794
      %v3796 = vsel %vm414, %v3158, 0.0
      %v3797 = vrot.slane %v3796, 4
      %v3798 = vadd.f32 %v3796, %v3797
      %v3799 = vrot.slane %v3798, 2
      %v3800 = vadd.f32 %v3798, %v3799
      %v3801 = vrot.slane %v3800, 1
      %v3802 = vadd.f32 %v3800, %v3801
      %v3803 = vsel %vm414, %v3159, 0.0
      %v3804 = vrot.slane %v3803, 4
      %v3805 = vadd.f32 %v3803, %v3804
      %v3806 = vrot.slane %v3805, 2
      %v3807 = vadd.f32 %v3805, %v3806
      %v3808 = vrot.slane %v3807, 1
      %v3809 = vadd.f32 %v3807, %v3808
      %v3810 = vsel %vm414, %v3160, 0.0
      %v3811 = vrot.slane %v3810, 4
      %v3812 = vadd.f32 %v3810, %v3811
      %v3813 = vrot.slane %v3812, 2
      %v3814 = vadd.f32 %v3812, %v3813
      %v3815 = vrot.slane %v3814, 1
      %v3816 = vadd.f32 %v3814, %v3815
      %v3817 = vsel %vm414, %v3161, 0.0
      %v3818 = vrot.slane %v3817, 4
      %v3819 = vadd.f32 %v3817, %v3818
      %v3820 = vrot.slane %v3819, 2
      %v3821 = vadd.f32 %v3819, %v3820
      %v3822 = vrot.slane %v3821, 1
      %v3823 = vadd.f32 %v3821, %v3822
      %v3824 = vsel %vm414, %v3162, 0.0
      %v3825 = vrot.slane %v3824, 4
      %v3826 = vadd.f32 %v3824, %v3825
      %v3827 = vrot.slane %v3826, 2
      %v3828 = vadd.f32 %v3826, %v3827
      %v3829 = vrot.slane %v3828, 1
      %v3830 = vadd.f32 %v3828, %v3829
      %v3831 = vsel %vm414, %v3163, 0.0
      %v3832 = vrot.slane %v3831, 4
      %v3833 = vadd.f32 %v3831, %v3832
      %v3834 = vrot.slane %v3833, 2
      %v3835 = vadd.f32 %v3833, %v3834
      %v3836 = vrot.slane %v3835, 1
      %v3837 = vadd.f32 %v3835, %v3836
      %v3838 = vsel %vm414, %v3164, 0.0
      %v3839 = vrot.slane %v3838, 4
      %v3840 = vadd.f32 %v3838, %v3839
      %v3841 = vrot.slane %v3840, 2
      %v3842 = vadd.f32 %v3840, %v3841
      %v3843 = vrot.slane %v3842, 1
      %v3844 = vadd.f32 %v3842, %v3843
      %v3845 = vsel %vm414, %v3165, 0.0
      %v3846 = vrot.slane %v3845, 4
      %v3847 = vadd.f32 %v3845, %v3846
      %v3848 = vrot.slane %v3847, 2
      %v3849 = vadd.f32 %v3847, %v3848
      %v3850 = vrot.slane %v3849, 1
      %v3851 = vadd.f32 %v3849, %v3850
      %v3852 = vsel %vm414, %v3166, 0.0
      %v3853 = vrot.slane %v3852, 4
      %v3854 = vadd.f32 %v3852, %v3853
      %v3855 = vrot.slane %v3854, 2
      %v3856 = vadd.f32 %v3854, %v3855
      %v3857 = vrot.slane %v3856, 1
      %v3858 = vadd.f32 %v3856, %v3857
      %v3859 = vsel %vm414, %v3167, 0.0
      %v3860 = vrot.slane %v3859, 4
      %v3861 = vadd.f32 %v3859, %v3860
      %v3862 = vrot.slane %v3861, 2
      %v3863 = vadd.f32 %v3861, %v3862
      %v3864 = vrot.slane %v3863, 1
      %v3865 = vadd.f32 %v3863, %v3864
      %v3866 = vsel %vm414, %v3168, 0.0
      %v3867 = vrot.slane %v3866, 4
      %v3868 = vadd.f32 %v3866, %v3867
      %v3869 = vrot.slane %v3868, 2
      %v3870 = vadd.f32 %v3868, %v3869
      %v3871 = vrot.slane %v3870, 1
      %v3872 = vadd.f32 %v3870, %v3871
      %v3873 = vsel %vm414, %v3169, 0.0
      %v3874 = vrot.slane %v3873, 4
      %v3875 = vadd.f32 %v3873, %v3874
      %v3876 = vrot.slane %v3875, 2
      %v3877 = vadd.f32 %v3875, %v3876
      %v3878 = vrot.slane %v3877, 1
      %v3879 = vadd.f32 %v3877, %v3878
      %v3880 = vsel %vm414, %v3170, 0.0
      %v3881 = vrot.slane %v3880, 4
      %v3882 = vadd.f32 %v3880, %v3881
      %v3883 = vrot.slane %v3882, 2
      %v3884 = vadd.f32 %v3882, %v3883
      %v3885 = vrot.slane %v3884, 1
      %v3886 = vadd.f32 %v3884, %v3885
      %v3887 = vsel %vm414, %v3171, 0.0
      %v3888 = vrot.slane %v3887, 4
      %v3889 = vadd.f32 %v3887, %v3888
      %v3890 = vrot.slane %v3889, 2
      %v3891 = vadd.f32 %v3889, %v3890
      %v3892 = vrot.slane %v3891, 1
      %v3893 = vadd.f32 %v3891, %v3892
      %v3894 = vsel %vm414, %v3172, 0.0
      %v3895 = vrot.slane %v3894, 4
      %v3896 = vadd.f32 %v3894, %v3895
      %v3897 = vrot.slane %v3896, 2
      %v3898 = vadd.f32 %v3896, %v3897
      %v3899 = vrot.slane %v3898, 1
      %v3900 = vadd.f32 %v3898, %v3899
      %v3901 = vsel %vm414, %v3173, 0.0
      %v3902 = vrot.slane %v3901, 4
      %v3903 = vadd.f32 %v3901, %v3902
      %v3904 = vrot.slane %v3903, 2
      %v3905 = vadd.f32 %v3903, %v3904
      %v3906 = vrot.slane %v3905, 1
      %v3907 = vadd.f32 %v3905, %v3906
      %v3908 = vsel %vm414, %v3174, 0.0
      %v3909 = vrot.slane %v3908, 4
      %v3910 = vadd.f32 %v3908, %v3909
      %v3911 = vrot.slane %v3910, 2
      %v3912 = vadd.f32 %v3910, %v3911
      %v3913 = vrot.slane %v3912, 1
      %v3914 = vadd.f32 %v3912, %v3913
      %v3915 = vsel %vm414, %v3175, 0.0
      %v3916 = vrot.slane %v3915, 4
      %v3917 = vadd.f32 %v3915, %v3916
      %v3918 = vrot.slane %v3917, 2
      %v3919 = vadd.f32 %v3917, %v3918
      %v3920 = vrot.slane %v3919, 1
      %v3921 = vadd.f32 %v3919, %v3920
      %v3922 = vsel %vm414, %v3176, 0.0
      %v3923 = vrot.slane %v3922, 4
      %v3924 = vadd.f32 %v3922, %v3923
      %v3925 = vrot.slane %v3924, 2
      %v3926 = vadd.f32 %v3924, %v3925
      %v3927 = vrot.slane %v3926, 1
      %v3928 = vadd.f32 %v3926, %v3927
      %v3929 = vsel %vm414, %v3177, 0.0
      %v3930 = vrot.slane %v3929, 4
      %v3931 = vadd.f32 %v3929, %v3930
      %v3932 = vrot.slane %v3931, 2
      %v3933 = vadd.f32 %v3931, %v3932
      %v3934 = vrot.slane %v3933, 1
      %v3935 = vadd.f32 %v3933, %v3934
      %v3936 = vsel %vm414, %v3178, 0.0
      %v3937 = vrot.slane %v3936, 4
      %v3938 = vadd.f32 %v3936, %v3937
      %v3939 = vrot.slane %v3938, 2
      %v3940 = vadd.f32 %v3938, %v3939
      %v3941 = vrot.slane %v3940, 1
      %v3942 = vadd.f32 %v3940, %v3941
      %v3943 = vsel %vm414, %v3179, 0.0
      %v3944 = vrot.slane %v3943, 4
      %v3945 = vadd.f32 %v3943, %v3944
      %v3946 = vrot.slane %v3945, 2
      %v3947 = vadd.f32 %v3945, %v3946
      %v3948 = vrot.slane %v3947, 1
      %v3949 = vadd.f32 %v3947, %v3948
      %v3950 = vsel %vm414, %v3180, 0.0
      %v3951 = vrot.slane %v3950, 4
      %v3952 = vadd.f32 %v3950, %v3951
      %v3953 = vrot.slane %v3952, 2
      %v3954 = vadd.f32 %v3952, %v3953
      %v3955 = vrot.slane %v3954, 1
      %v3956 = vadd.f32 %v3954, %v3955
      %v3957 = vsel %vm414, %v3181, 0.0
      %v3958 = vrot.slane %v3957, 4
      %v3959 = vadd.f32 %v3957, %v3958
      %v3960 = vrot.slane %v3959, 2
      %v3961 = vadd.f32 %v3959, %v3960
      %v3962 = vrot.slane %v3961, 1
      %v3963 = vadd.f32 %v3961, %v3962
      %v3964 = vsel %vm414, %v3182, 0.0
      %v3965 = vrot.slane %v3964, 4
      %v3966 = vadd.f32 %v3964, %v3965
      %v3967 = vrot.slane %v3966, 2
      %v3968 = vadd.f32 %v3966, %v3967
      %v3969 = vrot.slane %v3968, 1
      %v3970 = vadd.f32 %v3968, %v3969
      %v3971 = vsel %vm414, %v3183, 0.0
      %v3972 = vrot.slane %v3971, 4
      %v3973 = vadd.f32 %v3971, %v3972
      %v3974 = vrot.slane %v3973, 2
      %v3975 = vadd.f32 %v3973, %v3974
      %v3976 = vrot.slane %v3975, 1
      %v3977 = vadd.f32 %v3975, %v3976
      %v3978 = vsel %vm414, %v3184, 0.0
      %v3979 = vrot.slane %v3978, 4
      %v3980 = vadd.f32 %v3978, %v3979
      %v3981 = vrot.slane %v3980, 2
      %v3982 = vadd.f32 %v3980, %v3981
      %v3983 = vrot.slane %v3982, 1
      %v3984 = vadd.f32 %v3982, %v3983
      %v3985 = vsel %vm414, %v3185, 0.0
      %v3986 = vrot.slane %v3985, 4
      %v3987 = vadd.f32 %v3985, %v3986
      %v3988 = vrot.slane %v3987, 2
      %v3989 = vadd.f32 %v3987, %v3988
      %v3990 = vrot.slane %v3989, 1
      %v3991 = vadd.f32 %v3989, %v3990
      %v3992 = vsel %vm414, %v3186, 0.0
      %v3993 = vrot.slane %v3992, 4
      %v3994 = vadd.f32 %v3992, %v3993
      %v3995 = vrot.slane %v3994, 2
      %v3996 = vadd.f32 %v3994, %v3995
      %v3997 = vrot.slane %v3996, 1
      %v3998 = vadd.f32 %v3996, %v3997
      %v3999 = vsel %vm414, %v3187, 0.0
      %v4000 = vrot.slane %v3999, 4
      %v4001 = vadd.f32 %v3999, %v4000
      %v4002 = vrot.slane %v4001, 2
      %v4003 = vadd.f32 %v4001, %v4002
      %v4004 = vrot.slane %v4003, 1
      %v4005 = vadd.f32 %v4003, %v4004
      %v4006 = vsel %vm414, %v3188, 0.0
      %v4007 = vrot.slane %v4006, 4
      %v4008 = vadd.f32 %v4006, %v4007
      %v4009 = vrot.slane %v4008, 2
      %v4010 = vadd.f32 %v4008, %v4009
      %v4011 = vrot.slane %v4010, 1
      %v4012 = vadd.f32 %v4010, %v4011
      %v4013 = vsel %vm414, %v3189, 0.0
      %v4014 = vrot.slane %v4013, 4
      %v4015 = vadd.f32 %v4013, %v4014
      %v4016 = vrot.slane %v4015, 2
      %v4017 = vadd.f32 %v4015, %v4016
      %v4018 = vrot.slane %v4017, 1
      %v4019 = vadd.f32 %v4017, %v4018
      %v4020 = vsel %vm414, %v3190, 0.0
      %v4021 = vrot.slane %v4020, 4
      %v4022 = vadd.f32 %v4020, %v4021
      %v4023 = vrot.slane %v4022, 2
      %v4024 = vadd.f32 %v4022, %v4023
      %v4025 = vrot.slane %v4024, 1
      %v4026 = vadd.f32 %v4024, %v4025
      %v4027 = vsel %vm414, %v3191, 0.0
      %v4028 = vrot.slane %v4027, 4
      %v4029 = vadd.f32 %v4027, %v4028
      %v4030 = vrot.slane %v4029, 2
      %v4031 = vadd.f32 %v4029, %v4030
      %v4032 = vrot.slane %v4031, 1
      %v4033 = vadd.f32 %v4031, %v4032
      %v4034 = vsel %vm414, %v3192, 0.0
      %v4035 = vrot.slane %v4034, 4
      %v4036 = vadd.f32 %v4034, %v4035
      %v4037 = vrot.slane %v4036, 2
      %v4038 = vadd.f32 %v4036, %v4037
      %v4039 = vrot.slane %v4038, 1
      %v4040 = vadd.f32 %v4038, %v4039
      %v4041 = vsel %vm414, %v3193, 0.0
      %v4042 = vrot.slane %v4041, 4
      %v4043 = vadd.f32 %v4041, %v4042
      %v4044 = vrot.slane %v4043, 2
      %v4045 = vadd.f32 %v4043, %v4044
      %v4046 = vrot.slane %v4045, 1
      %v4047 = vadd.f32 %v4045, %v4046
      %v4048 = vsel %vm414, %v3194, 0.0
      %v4049 = vrot.slane %v4048, 4
      %v4050 = vadd.f32 %v4048, %v4049
      %v4051 = vrot.slane %v4050, 2
      %v4052 = vadd.f32 %v4050, %v4051
      %v4053 = vrot.slane %v4052, 1
      %v4054 = vadd.f32 %v4052, %v4053
      %v4055 = vsel %vm414, %v3195, 0.0
      %v4056 = vrot.slane %v4055, 4
      %v4057 = vadd.f32 %v4055, %v4056
      %v4058 = vrot.slane %v4057, 2
      %v4059 = vadd.f32 %v4057, %v4058
      %v4060 = vrot.slane %v4059, 1
      %v4061 = vadd.f32 %v4059, %v4060
      %v4062 = vsel %vm414, %v3196, 0.0
      %v4063 = vrot.slane %v4062, 4
      %v4064 = vadd.f32 %v4062, %v4063
      %v4065 = vrot.slane %v4064, 2
      %v4066 = vadd.f32 %v4064, %v4065
      %v4067 = vrot.slane %v4066, 1
      %v4068 = vadd.f32 %v4066, %v4067
      %v4069 = vsel %vm414, %v3197, 0.0
      %v4070 = vrot.slane %v4069, 4
      %v4071 = vadd.f32 %v4069, %v4070
      %v4072 = vrot.slane %v4071, 2
      %v4073 = vadd.f32 %v4071, %v4072
      %v4074 = vrot.slane %v4073, 1
      %v4075 = vadd.f32 %v4073, %v4074
      %v4076 = vsel %vm414, %v3198, 0.0
      %v4077 = vrot.slane %v4076, 4
      %v4078 = vadd.f32 %v4076, %v4077
      %v4079 = vrot.slane %v4078, 2
      %v4080 = vadd.f32 %v4078, %v4079
      %v4081 = vrot.slane %v4080, 1
      %v4082 = vadd.f32 %v4080, %v4081
      %v4083 = vsel %vm414, %v3199, 0.0
      %v4084 = vrot.slane %v4083, 4
      %v4085 = vadd.f32 %v4083, %v4084
      %v4086 = vrot.slane %v4085, 2
      %v4087 = vadd.f32 %v4085, %v4086
      %v4088 = vrot.slane %v4087, 1
      %v4089 = vadd.f32 %v4087, %v4088
      %v4090 = vsel %vm414, %v3200, 0.0
      %v4091 = vrot.slane %v4090, 4
      %v4092 = vadd.f32 %v4090, %v4091
      %v4093 = vrot.slane %v4092, 2
      %v4094 = vadd.f32 %v4092, %v4093
      %v4095 = vrot.slane %v4094, 1
      %v4096 = vadd.f32 %v4094, %v4095
      %v4225 = vlaneseq
      %v4226 = vand.u32 %v4225, 127
      %v4227 = vlaneseq
      %v4228 = vshrl.u32 %v4227, 7
      %v4229 = vsub.s32 %v4226, %v4228
      %v4230 = vrot.slane %v2818, %v4229
      %v4231 = vlaneseq
      %v4232 = vshrl.u32 %v4231, 7
      %v4233 = vsub.s32 %v4226, %v4232
      %v4234 = vrot.slane %v2820, %v4233
      %v4235 = vlaneseq
      %v4236 = vshrl.u32 %v4235, 7
      %v4237 = vsub.s32 %v4226, %v4236
      %v4238 = vrot.slane %v2822, %v4237
      %v4239 = vlaneseq
      %v4240 = vshrl.u32 %v4239, 7
      %v4241 = vsub.s32 %v4226, %v4240
      %v4242 = vrot.slane %v2824, %v4241
      %v4243 = vlaneseq
      %v4244 = vshrl.u32 %v4243, 7
      %v4245 = vsub.s32 %v4226, %v4244
      %v4246 = vrot.slane %v2826, %v4245
      %v4247 = vlaneseq
      %v4248 = vshrl.u32 %v4247, 7
      %v4249 = vsub.s32 %v4226, %v4248
      %v4250 = vrot.slane %v2828, %v4249
      %v4251 = vlaneseq
      %v4252 = vshrl.u32 %v4251, 7
      %v4253 = vsub.s32 %v4226, %v4252
      %v4254 = vrot.slane %v2830, %v4253
      %v4255 = vlaneseq
      %v4256 = vshrl.u32 %v4255, 7
      %v4257 = vsub.s32 %v4226, %v4256
      %v4258 = vrot.slane %v2832, %v4257
      %v4259 = vlaneseq
      %v4260 = vshrl.u32 %v4259, 7
      %v4261 = vsub.s32 %v4226, %v4260
      %v4262 = vrot.slane %v2834, %v4261
      %v4263 = vlaneseq
      %v4264 = vshrl.u32 %v4263, 7
      %v4265 = vsub.s32 %v4226, %v4264
      %v4266 = vrot.slane %v2836, %v4265
      %v4267 = vlaneseq
      %v4268 = vshrl.u32 %v4267, 7
      %v4269 = vsub.s32 %v4226, %v4268
      %v4270 = vrot.slane %v2838, %v4269
      %v4271 = vlaneseq
      %v4272 = vshrl.u32 %v4271, 7
      %v4273 = vsub.s32 %v4226, %v4272
      %v4274 = vrot.slane %v2840, %v4273
      %v4275 = vlaneseq
      %v4276 = vshrl.u32 %v4275, 7
      %v4277 = vsub.s32 %v4226, %v4276
      %v4278 = vrot.slane %v2842, %v4277
      %v4279 = vlaneseq
      %v4280 = vshrl.u32 %v4279, 7
      %v4281 = vsub.s32 %v4226, %v4280
      %v4282 = vrot.slane %v2844, %v4281
      %v4283 = vlaneseq
      %v4284 = vshrl.u32 %v4283, 7
      %v4285 = vsub.s32 %v4226, %v4284
      %v4286 = vrot.slane %v2846, %v4285
      %v4287 = vlaneseq
      %v4288 = vshrl.u32 %v4287, 7
      %v4289 = vsub.s32 %v4226, %v4288
      %v4290 = vrot.slane %v2848, %v4289
      %v4291 = vlaneseq
      %v4292 = vshrl.u32 %v4291, 7
      %v4293 = vsub.s32 %v4226, %v4292
      %v4294 = vrot.slane %v2850, %v4293
      %v4295 = vlaneseq
      %v4296 = vshrl.u32 %v4295, 7
      %v4297 = vsub.s32 %v4226, %v4296
      %v4298 = vrot.slane %v2852, %v4297
      %v4299 = vlaneseq
      %v4300 = vshrl.u32 %v4299, 7
      %v4301 = vsub.s32 %v4226, %v4300
      %v4302 = vrot.slane %v2854, %v4301
      %v4303 = vlaneseq
      %v4304 = vshrl.u32 %v4303, 7
      %v4305 = vsub.s32 %v4226, %v4304
      %v4306 = vrot.slane %v2856, %v4305
      %v4307 = vlaneseq
      %v4308 = vshrl.u32 %v4307, 7
      %v4309 = vsub.s32 %v4226, %v4308
      %v4310 = vrot.slane %v2858, %v4309
      %v4311 = vlaneseq
      %v4312 = vshrl.u32 %v4311, 7
      %v4313 = vsub.s32 %v4226, %v4312
      %v4314 = vrot.slane %v2860, %v4313
      %v4315 = vlaneseq
      %v4316 = vshrl.u32 %v4315, 7
      %v4317 = vsub.s32 %v4226, %v4316
      %v4318 = vrot.slane %v2862, %v4317
      %v4319 = vlaneseq
      %v4320 = vshrl.u32 %v4319, 7
      %v4321 = vsub.s32 %v4226, %v4320
      %v4322 = vrot.slane %v2864, %v4321
      %v4323 = vlaneseq
      %v4324 = vshrl.u32 %v4323, 7
      %v4325 = vsub.s32 %v4226, %v4324
      %v4326 = vrot.slane %v2866, %v4325
      %v4327 = vlaneseq
      %v4328 = vshrl.u32 %v4327, 7
      %v4329 = vsub.s32 %v4226, %v4328
      %v4330 = vrot.slane %v2868, %v4329
      %v4331 = vlaneseq
      %v4332 = vshrl.u32 %v4331, 7
      %v4333 = vsub.s32 %v4226, %v4332
      %v4334 = vrot.slane %v2870, %v4333
      %v4335 = vlaneseq
      %v4336 = vshrl.u32 %v4335, 7
      %v4337 = vsub.s32 %v4226, %v4336
      %v4338 = vrot.slane %v2872, %v4337
      %v4339 = vlaneseq
      %v4340 = vshrl.u32 %v4339, 7
      %v4341 = vsub.s32 %v4226, %v4340
      %v4342 = vrot.slane %v2874, %v4341
      %v4343 = vlaneseq
      %v4344 = vshrl.u32 %v4343, 7
      %v4345 = vsub.s32 %v4226, %v4344
      %v4346 = vrot.slane %v2876, %v4345
      %v4347 = vlaneseq
      %v4348 = vshrl.u32 %v4347, 7
      %v4349 = vsub.s32 %v4226, %v4348
      %v4350 = vrot.slane %v2878, %v4349
      %v4351 = vlaneseq
      %v4352 = vshrl.u32 %v4351, 7
      %v4353 = vsub.s32 %v4226, %v4352
      %v4354 = vrot.slane %v2880, %v4353
      %v4355 = vlaneseq
      %v4356 = vshrl.u32 %v4355, 7
      %v4357 = vsub.s32 %v4226, %v4356
      %v4358 = vrot.slane %v2882, %v4357
      %v4359 = vlaneseq
      %v4360 = vshrl.u32 %v4359, 7
      %v4361 = vsub.s32 %v4226, %v4360
      %v4362 = vrot.slane %v2884, %v4361
      %v4363 = vlaneseq
      %v4364 = vshrl.u32 %v4363, 7
      %v4365 = vsub.s32 %v4226, %v4364
      %v4366 = vrot.slane %v2886, %v4365
      %v4367 = vlaneseq
      %v4368 = vshrl.u32 %v4367, 7
      %v4369 = vsub.s32 %v4226, %v4368
      %v4370 = vrot.slane %v2888, %v4369
      %v4371 = vlaneseq
      %v4372 = vshrl.u32 %v4371, 7
      %v4373 = vsub.s32 %v4226, %v4372
      %v4374 = vrot.slane %v2890, %v4373
      %v4375 = vlaneseq
      %v4376 = vshrl.u32 %v4375, 7
      %v4377 = vsub.s32 %v4226, %v4376
      %v4378 = vrot.slane %v2892, %v4377
      %v4379 = vlaneseq
      %v4380 = vshrl.u32 %v4379, 7
      %v4381 = vsub.s32 %v4226, %v4380
      %v4382 = vrot.slane %v2894, %v4381
      %v4383 = vlaneseq
      %v4384 = vshrl.u32 %v4383, 7
      %v4385 = vsub.s32 %v4226, %v4384
      %v4386 = vrot.slane %v2896, %v4385
      %v4387 = vlaneseq
      %v4388 = vshrl.u32 %v4387, 7
      %v4389 = vsub.s32 %v4226, %v4388
      %v4390 = vrot.slane %v2898, %v4389
      %v4391 = vlaneseq
      %v4392 = vshrl.u32 %v4391, 7
      %v4393 = vsub.s32 %v4226, %v4392
      %v4394 = vrot.slane %v2900, %v4393
      %v4395 = vlaneseq
      %v4396 = vshrl.u32 %v4395, 7
      %v4397 = vsub.s32 %v4226, %v4396
      %v4398 = vrot.slane %v2902, %v4397
      %v4399 = vlaneseq
      %v4400 = vshrl.u32 %v4399, 7
      %v4401 = vsub.s32 %v4226, %v4400
      %v4402 = vrot.slane %v2904, %v4401
      %v4403 = vlaneseq
      %v4404 = vshrl.u32 %v4403, 7
      %v4405 = vsub.s32 %v4226, %v4404
      %v4406 = vrot.slane %v2906, %v4405
      %v4407 = vlaneseq
      %v4408 = vshrl.u32 %v4407, 7
      %v4409 = vsub.s32 %v4226, %v4408
      %v4410 = vrot.slane %v2908, %v4409
      %v4411 = vlaneseq
      %v4412 = vshrl.u32 %v4411, 7
      %v4413 = vsub.s32 %v4226, %v4412
      %v4414 = vrot.slane %v2910, %v4413
      %v4415 = vlaneseq
      %v4416 = vshrl.u32 %v4415, 7
      %v4417 = vsub.s32 %v4226, %v4416
      %v4418 = vrot.slane %v2912, %v4417
      %v4419 = vlaneseq
      %v4420 = vshrl.u32 %v4419, 7
      %v4421 = vsub.s32 %v4226, %v4420
      %v4422 = vrot.slane %v2914, %v4421
      %v4423 = vlaneseq
      %v4424 = vshrl.u32 %v4423, 7
      %v4425 = vsub.s32 %v4226, %v4424
      %v4426 = vrot.slane %v2916, %v4425
      %v4427 = vlaneseq
      %v4428 = vshrl.u32 %v4427, 7
      %v4429 = vsub.s32 %v4226, %v4428
      %v4430 = vrot.slane %v2918, %v4429
      %v4431 = vlaneseq
      %v4432 = vshrl.u32 %v4431, 7
      %v4433 = vsub.s32 %v4226, %v4432
      %v4434 = vrot.slane %v2920, %v4433
      %v4435 = vlaneseq
      %v4436 = vshrl.u32 %v4435, 7
      %v4437 = vsub.s32 %v4226, %v4436
      %v4438 = vrot.slane %v2922, %v4437
      %v4439 = vlaneseq
      %v4440 = vshrl.u32 %v4439, 7
      %v4441 = vsub.s32 %v4226, %v4440
      %v4442 = vrot.slane %v2924, %v4441
      %v4443 = vlaneseq
      %v4444 = vshrl.u32 %v4443, 7
      %v4445 = vsub.s32 %v4226, %v4444
      %v4446 = vrot.slane %v2926, %v4445
      %v4447 = vlaneseq
      %v4448 = vshrl.u32 %v4447, 7
      %v4449 = vsub.s32 %v4226, %v4448
      %v4450 = vrot.slane %v2928, %v4449
      %v4451 = vlaneseq
      %v4452 = vshrl.u32 %v4451, 7
      %v4453 = vsub.s32 %v4226, %v4452
      %v4454 = vrot.slane %v2930, %v4453
      %v4455 = vlaneseq
      %v4456 = vshrl.u32 %v4455, 7
      %v4457 = vsub.s32 %v4226, %v4456
      %v4458 = vrot.slane %v2932, %v4457
      %v4459 = vlaneseq
      %v4460 = vshrl.u32 %v4459, 7
      %v4461 = vsub.s32 %v4226, %v4460
      %v4462 = vrot.slane %v2934, %v4461
      %v4463 = vlaneseq
      %v4464 = vshrl.u32 %v4463, 7
      %v4465 = vsub.s32 %v4226, %v4464
      %v4466 = vrot.slane %v2936, %v4465
      %v4467 = vlaneseq
      %v4468 = vshrl.u32 %v4467, 7
      %v4469 = vsub.s32 %v4226, %v4468
      %v4470 = vrot.slane %v2938, %v4469
      %v4471 = vlaneseq
      %v4472 = vshrl.u32 %v4471, 7
      %v4473 = vsub.s32 %v4226, %v4472
      %v4474 = vrot.slane %v2940, %v4473
      %v4475 = vlaneseq
      %v4476 = vshrl.u32 %v4475, 7
      %v4477 = vsub.s32 %v4226, %v4476
      %v4478 = vrot.slane %v2942, %v4477
      %v4479 = vlaneseq
      %v4480 = vshrl.u32 %v4479, 7
      %v4481 = vsub.s32 %v4226, %v4480
      %v4482 = vrot.slane %v2944, %v4481
      %v4483 = vlaneseq
      %v4484 = vshrl.u32 %v4483, 7
      %v4485 = vsub.s32 %v4226, %v4484
      %v4486 = vrot.slane %v2946, %v4485
      %v4487 = vlaneseq
      %v4488 = vshrl.u32 %v4487, 7
      %v4489 = vsub.s32 %v4226, %v4488
      %v4490 = vrot.slane %v2948, %v4489
      %v4491 = vlaneseq
      %v4492 = vshrl.u32 %v4491, 7
      %v4493 = vsub.s32 %v4226, %v4492
      %v4494 = vrot.slane %v2950, %v4493
      %v4495 = vlaneseq
      %v4496 = vshrl.u32 %v4495, 7
      %v4497 = vsub.s32 %v4226, %v4496
      %v4498 = vrot.slane %v2952, %v4497
      %v4499 = vlaneseq
      %v4500 = vshrl.u32 %v4499, 7
      %v4501 = vsub.s32 %v4226, %v4500
      %v4502 = vrot.slane %v2954, %v4501
      %v4503 = vlaneseq
      %v4504 = vshrl.u32 %v4503, 7
      %v4505 = vsub.s32 %v4226, %v4504
      %v4506 = vrot.slane %v2956, %v4505
      %v4507 = vlaneseq
      %v4508 = vshrl.u32 %v4507, 7
      %v4509 = vsub.s32 %v4226, %v4508
      %v4510 = vrot.slane %v2958, %v4509
      %v4511 = vlaneseq
      %v4512 = vshrl.u32 %v4511, 7
      %v4513 = vsub.s32 %v4226, %v4512
      %v4514 = vrot.slane %v2960, %v4513
      %v4515 = vlaneseq
      %v4516 = vshrl.u32 %v4515, 7
      %v4517 = vsub.s32 %v4226, %v4516
      %v4518 = vrot.slane %v2962, %v4517
      %v4519 = vlaneseq
      %v4520 = vshrl.u32 %v4519, 7
      %v4521 = vsub.s32 %v4226, %v4520
      %v4522 = vrot.slane %v2964, %v4521
      %v4523 = vlaneseq
      %v4524 = vshrl.u32 %v4523, 7
      %v4525 = vsub.s32 %v4226, %v4524
      %v4526 = vrot.slane %v2966, %v4525
      %v4527 = vlaneseq
      %v4528 = vshrl.u32 %v4527, 7
      %v4529 = vsub.s32 %v4226, %v4528
      %v4530 = vrot.slane %v2968, %v4529
      %v4531 = vlaneseq
      %v4532 = vshrl.u32 %v4531, 7
      %v4533 = vsub.s32 %v4226, %v4532
      %v4534 = vrot.slane %v2970, %v4533
      %v4535 = vlaneseq
      %v4536 = vshrl.u32 %v4535, 7
      %v4537 = vsub.s32 %v4226, %v4536
      %v4538 = vrot.slane %v2972, %v4537
      %v4539 = vlaneseq
      %v4540 = vshrl.u32 %v4539, 7
      %v4541 = vsub.s32 %v4226, %v4540
      %v4542 = vrot.slane %v2974, %v4541
      %v4543 = vlaneseq
      %v4544 = vshrl.u32 %v4543, 7
      %v4545 = vsub.s32 %v4226, %v4544
      %v4546 = vrot.slane %v2976, %v4545
      %v4547 = vlaneseq
      %v4548 = vshrl.u32 %v4547, 7
      %v4549 = vsub.s32 %v4226, %v4548
      %v4550 = vrot.slane %v2978, %v4549
      %v4551 = vlaneseq
      %v4552 = vshrl.u32 %v4551, 7
      %v4553 = vsub.s32 %v4226, %v4552
      %v4554 = vrot.slane %v2980, %v4553
      %v4555 = vlaneseq
      %v4556 = vshrl.u32 %v4555, 7
      %v4557 = vsub.s32 %v4226, %v4556
      %v4558 = vrot.slane %v2982, %v4557
      %v4559 = vlaneseq
      %v4560 = vshrl.u32 %v4559, 7
      %v4561 = vsub.s32 %v4226, %v4560
      %v4562 = vrot.slane %v2984, %v4561
      %v4563 = vlaneseq
      %v4564 = vshrl.u32 %v4563, 7
      %v4565 = vsub.s32 %v4226, %v4564
      %v4566 = vrot.slane %v2986, %v4565
      %v4567 = vlaneseq
      %v4568 = vshrl.u32 %v4567, 7
      %v4569 = vsub.s32 %v4226, %v4568
      %v4570 = vrot.slane %v2988, %v4569
      %v4571 = vlaneseq
      %v4572 = vshrl.u32 %v4571, 7
      %v4573 = vsub.s32 %v4226, %v4572
      %v4574 = vrot.slane %v2990, %v4573
      %v4575 = vlaneseq
      %v4576 = vshrl.u32 %v4575, 7
      %v4577 = vsub.s32 %v4226, %v4576
      %v4578 = vrot.slane %v2992, %v4577
      %v4579 = vlaneseq
      %v4580 = vshrl.u32 %v4579, 7
      %v4581 = vsub.s32 %v4226, %v4580
      %v4582 = vrot.slane %v2994, %v4581
      %v4583 = vlaneseq
      %v4584 = vshrl.u32 %v4583, 7
      %v4585 = vsub.s32 %v4226, %v4584
      %v4586 = vrot.slane %v2996, %v4585
      %v4587 = vlaneseq
      %v4588 = vshrl.u32 %v4587, 7
      %v4589 = vsub.s32 %v4226, %v4588
      %v4590 = vrot.slane %v2998, %v4589
      %v4591 = vlaneseq
      %v4592 = vshrl.u32 %v4591, 7
      %v4593 = vsub.s32 %v4226, %v4592
      %v4594 = vrot.slane %v3000, %v4593
      %v4595 = vlaneseq
      %v4596 = vshrl.u32 %v4595, 7
      %v4597 = vsub.s32 %v4226, %v4596
      %v4598 = vrot.slane %v3002, %v4597
      %v4599 = vlaneseq
      %v4600 = vshrl.u32 %v4599, 7
      %v4601 = vsub.s32 %v4226, %v4600
      %v4602 = vrot.slane %v3004, %v4601
      %v4603 = vlaneseq
      %v4604 = vshrl.u32 %v4603, 7
      %v4605 = vsub.s32 %v4226, %v4604
      %v4606 = vrot.slane %v3006, %v4605
      %v4607 = vlaneseq
      %v4608 = vshrl.u32 %v4607, 7
      %v4609 = vsub.s32 %v4226, %v4608
      %v4610 = vrot.slane %v3008, %v4609
      %v4611 = vlaneseq
      %v4612 = vshrl.u32 %v4611, 7
      %v4613 = vsub.s32 %v4226, %v4612
      %v4614 = vrot.slane %v3010, %v4613
      %v4615 = vlaneseq
      %v4616 = vshrl.u32 %v4615, 7
      %v4617 = vsub.s32 %v4226, %v4616
      %v4618 = vrot.slane %v3012, %v4617
      %v4619 = vlaneseq
      %v4620 = vshrl.u32 %v4619, 7
      %v4621 = vsub.s32 %v4226, %v4620
      %v4622 = vrot.slane %v3014, %v4621
      %v4623 = vlaneseq
      %v4624 = vshrl.u32 %v4623, 7
      %v4625 = vsub.s32 %v4226, %v4624
      %v4626 = vrot.slane %v3016, %v4625
      %v4627 = vlaneseq
      %v4628 = vshrl.u32 %v4627, 7
      %v4629 = vsub.s32 %v4226, %v4628
      %v4630 = vrot.slane %v3018, %v4629
      %v4631 = vlaneseq
      %v4632 = vshrl.u32 %v4631, 7
      %v4633 = vsub.s32 %v4226, %v4632
      %v4634 = vrot.slane %v3020, %v4633
      %v4635 = vlaneseq
      %v4636 = vshrl.u32 %v4635, 7
      %v4637 = vsub.s32 %v4226, %v4636
      %v4638 = vrot.slane %v3022, %v4637
      %v4639 = vlaneseq
      %v4640 = vshrl.u32 %v4639, 7
      %v4641 = vsub.s32 %v4226, %v4640
      %v4642 = vrot.slane %v3024, %v4641
      %v4643 = vlaneseq
      %v4644 = vshrl.u32 %v4643, 7
      %v4645 = vsub.s32 %v4226, %v4644
      %v4646 = vrot.slane %v3026, %v4645
      %v4647 = vlaneseq
      %v4648 = vshrl.u32 %v4647, 7
      %v4649 = vsub.s32 %v4226, %v4648
      %v4650 = vrot.slane %v3028, %v4649
      %v4651 = vlaneseq
      %v4652 = vshrl.u32 %v4651, 7
      %v4653 = vsub.s32 %v4226, %v4652
      %v4654 = vrot.slane %v3030, %v4653
      %v4655 = vlaneseq
      %v4656 = vshrl.u32 %v4655, 7
      %v4657 = vsub.s32 %v4226, %v4656
      %v4658 = vrot.slane %v3032, %v4657
      %v4659 = vlaneseq
      %v4660 = vshrl.u32 %v4659, 7
      %v4661 = vsub.s32 %v4226, %v4660
      %v4662 = vrot.slane %v3034, %v4661
      %v4663 = vlaneseq
      %v4664 = vshrl.u32 %v4663, 7
      %v4665 = vsub.s32 %v4226, %v4664
      %v4666 = vrot.slane %v3036, %v4665
      %v4667 = vlaneseq
      %v4668 = vshrl.u32 %v4667, 7
      %v4669 = vsub.s32 %v4226, %v4668
      %v4670 = vrot.slane %v3038, %v4669
      %v4671 = vlaneseq
      %v4672 = vshrl.u32 %v4671, 7
      %v4673 = vsub.s32 %v4226, %v4672
      %v4674 = vrot.slane %v3040, %v4673
      %v4675 = vlaneseq
      %v4676 = vshrl.u32 %v4675, 7
      %v4677 = vsub.s32 %v4226, %v4676
      %v4678 = vrot.slane %v3042, %v4677
      %v4679 = vlaneseq
      %v4680 = vshrl.u32 %v4679, 7
      %v4681 = vsub.s32 %v4226, %v4680
      %v4682 = vrot.slane %v3044, %v4681
      %v4683 = vlaneseq
      %v4684 = vshrl.u32 %v4683, 7
      %v4685 = vsub.s32 %v4226, %v4684
      %v4686 = vrot.slane %v3046, %v4685
      %v4687 = vlaneseq
      %v4688 = vshrl.u32 %v4687, 7
      %v4689 = vsub.s32 %v4226, %v4688
      %v4690 = vrot.slane %v3048, %v4689
      %v4691 = vlaneseq
      %v4692 = vshrl.u32 %v4691, 7
      %v4693 = vsub.s32 %v4226, %v4692
      %v4694 = vrot.slane %v3050, %v4693
      %v4695 = vlaneseq
      %v4696 = vshrl.u32 %v4695, 7
      %v4697 = vsub.s32 %v4226, %v4696
      %v4698 = vrot.slane %v3052, %v4697
      %v4699 = vlaneseq
      %v4700 = vshrl.u32 %v4699, 7
      %v4701 = vsub.s32 %v4226, %v4700
      %v4702 = vrot.slane %v3054, %v4701
      %v4703 = vlaneseq
      %v4704 = vshrl.u32 %v4703, 7
      %v4705 = vsub.s32 %v4226, %v4704
      %v4706 = vrot.slane %v3056, %v4705
      %v4707 = vlaneseq
      %v4708 = vshrl.u32 %v4707, 7
      %v4709 = vsub.s32 %v4226, %v4708
      %v4710 = vrot.slane %v3058, %v4709
      %v4711 = vlaneseq
      %v4712 = vshrl.u32 %v4711, 7
      %v4713 = vsub.s32 %v4226, %v4712
      %v4714 = vrot.slane %v3060, %v4713
      %v4715 = vlaneseq
      %v4716 = vshrl.u32 %v4715, 7
      %v4717 = vsub.s32 %v4226, %v4716
      %v4718 = vrot.slane %v3062, %v4717
      %v4719 = vlaneseq
      %v4720 = vshrl.u32 %v4719, 7
      %v4721 = vsub.s32 %v4226, %v4720
      %v4722 = vrot.slane %v3064, %v4721
      %v4723 = vlaneseq
      %v4724 = vshrl.u32 %v4723, 7
      %v4725 = vsub.s32 %v4226, %v4724
      %v4726 = vrot.slane %v3066, %v4725
      %v4727 = vlaneseq
      %v4728 = vshrl.u32 %v4727, 7
      %v4729 = vsub.s32 %v4226, %v4728
      %v4730 = vrot.slane %v3068, %v4729
      %v4731 = vlaneseq
      %v4732 = vshrl.u32 %v4731, 7
      %v4733 = vsub.s32 %v4226, %v4732
      %v4734 = vrot.slane %v3070, %v4733
      %v4735 = vlaneseq
      %v4736 = vshrl.u32 %v4735, 7
      %v4737 = vsub.s32 %v4226, %v4736
      %v4738 = vrot.slane %v3072, %v4737
      %vm4739 = vcmask 1041409
      %v4740 = vsel %vm4739, %v4234, %v4230
      %vm4741 = vcmask 1042434
      %v4742 = vsel %vm4741, %v4238, %v4740
      %vm4743 = vcmask 1043459
      %v4744 = vsel %vm4743, %v4242, %v4742
      %vm4745 = vcmask 1044484
      %v4746 = vsel %vm4745, %v4246, %v4744
      %vm4747 = vcmask 1045509
      %v4748 = vsel %vm4747, %v4250, %v4746
      %vm4749 = vcmask 1046534
      %v4750 = vsel %vm4749, %v4254, %v4748
      %vm4751 = vcmask 1047559
      %v4752 = vsel %vm4751, %v4258, %v4750
      %v4753 = vsel %vm4739, %v4266, %v4262
      %v4754 = vsel %vm4741, %v4270, %v4753
      %v4755 = vsel %vm4743, %v4274, %v4754
      %v4756 = vsel %vm4745, %v4278, %v4755
      %v4757 = vsel %vm4747, %v4282, %v4756
      %v4758 = vsel %vm4749, %v4286, %v4757
      %v4759 = vsel %vm4751, %v4290, %v4758
      %v4760 = vsel %vm4739, %v4298, %v4294
      %v4761 = vsel %vm4741, %v4302, %v4760
      %v4762 = vsel %vm4743, %v4306, %v4761
      %v4763 = vsel %vm4745, %v4310, %v4762
      %v4764 = vsel %vm4747, %v4314, %v4763
      %v4765 = vsel %vm4749, %v4318, %v4764
      %v4766 = vsel %vm4751, %v4322, %v4765
      %v4767 = vsel %vm4739, %v4330, %v4326
      %v4768 = vsel %vm4741, %v4334, %v4767
      %v4769 = vsel %vm4743, %v4338, %v4768
      %v4770 = vsel %vm4745, %v4342, %v4769
      %v4771 = vsel %vm4747, %v4346, %v4770
      %v4772 = vsel %vm4749, %v4350, %v4771
      %v4773 = vsel %vm4751, %v4354, %v4772
      %v4774 = vsel %vm4739, %v4362, %v4358
      %v4775 = vsel %vm4741, %v4366, %v4774
      %v4776 = vsel %vm4743, %v4370, %v4775
      %v4777 = vsel %vm4745, %v4374, %v4776
      %v4778 = vsel %vm4747, %v4378, %v4777
      %v4779 = vsel %vm4749, %v4382, %v4778
      %v4780 = vsel %vm4751, %v4386, %v4779
      %v4781 = vsel %vm4739, %v4394, %v4390
      %v4782 = vsel %vm4741, %v4398, %v4781
      %v4783 = vsel %vm4743, %v4402, %v4782
      %v4784 = vsel %vm4745, %v4406, %v4783
      %v4785 = vsel %vm4747, %v4410, %v4784
      %v4786 = vsel %vm4749, %v4414, %v4785
      %v4787 = vsel %vm4751, %v4418, %v4786
      %v4788 = vsel %vm4739, %v4426, %v4422
      %v4789 = vsel %vm4741, %v4430, %v4788
      %v4790 = vsel %vm4743, %v4434, %v4789
      %v4791 = vsel %vm4745, %v4438, %v4790
      %v4792 = vsel %vm4747, %v4442, %v4791
      %v4793 = vsel %vm4749, %v4446, %v4792
      %v4794 = vsel %vm4751, %v4450, %v4793
      %v4795 = vsel %vm4739, %v4458, %v4454
      %v4796 = vsel %vm4741, %v4462, %v4795
      %v4797 = vsel %vm4743, %v4466, %v4796
      %v4798 = vsel %vm4745, %v4470, %v4797
      %v4799 = vsel %vm4747, %v4474, %v4798
      %v4800 = vsel %vm4749, %v4478, %v4799
      %v4801 = vsel %vm4751, %v4482, %v4800
      %v4802 = vsel %vm4739, %v4490, %v4486
      %v4803 = vsel %vm4741, %v4494, %v4802
      %v4804 = vsel %vm4743, %v4498, %v4803
      %v4805 = vsel %vm4745, %v4502, %v4804
      %v4806 = vsel %vm4747, %v4506, %v4805
      %v4807 = vsel %vm4749, %v4510, %v4806
      %v4808 = vsel %vm4751, %v4514, %v4807
      %v4809 = vsel %vm4739, %v4522, %v4518
      %v4810 = vsel %vm4741, %v4526, %v4809
      %v4811 = vsel %vm4743, %v4530, %v4810
      %v4812 = vsel %vm4745, %v4534, %v4811
      %v4813 = vsel %vm4747, %v4538, %v4812
      %v4814 = vsel %vm4749, %v4542, %v4813
      %v4815 = vsel %vm4751, %v4546, %v4814
      %v4816 = vsel %vm4739, %v4554, %v4550
      %v4817 = vsel %vm4741, %v4558, %v4816
      %v4818 = vsel %vm4743, %v4562, %v4817
      %v4819 = vsel %vm4745, %v4566, %v4818
      %v4820 = vsel %vm4747, %v4570, %v4819
      %v4821 = vsel %vm4749, %v4574, %v4820
      %v4822 = vsel %vm4751, %v4578, %v4821
      %v4823 = vsel %vm4739, %v4586, %v4582
      %v4824 = vsel %vm4741, %v4590, %v4823
      %v4825 = vsel %vm4743, %v4594, %v4824
      %v4826 = vsel %vm4745, %v4598, %v4825
      %v4827 = vsel %vm4747, %v4602, %v4826
      %v4828 = vsel %vm4749, %v4606, %v4827
      %v4829 = vsel %vm4751, %v4610, %v4828
      %v4830 = vsel %vm4739, %v4618, %v4614
      %v4831 = vsel %vm4741, %v4622, %v4830
      %v4832 = vsel %vm4743, %v4626, %v4831
      %v4833 = vsel %vm4745, %v4630, %v4832
      %v4834 = vsel %vm4747, %v4634, %v4833
      %v4835 = vsel %vm4749, %v4638, %v4834
      %v4836 = vsel %vm4751, %v4642, %v4835
      %v4837 = vsel %vm4739, %v4650, %v4646
      %v4838 = vsel %vm4741, %v4654, %v4837
      %v4839 = vsel %vm4743, %v4658, %v4838
      %v4840 = vsel %vm4745, %v4662, %v4839
      %v4841 = vsel %vm4747, %v4666, %v4840
      %v4842 = vsel %vm4749, %v4670, %v4841
      %v4843 = vsel %vm4751, %v4674, %v4842
      %v4844 = vsel %vm4739, %v4682, %v4678
      %v4845 = vsel %vm4741, %v4686, %v4844
      %v4846 = vsel %vm4743, %v4690, %v4845
      %v4847 = vsel %vm4745, %v4694, %v4846
      %v4848 = vsel %vm4747, %v4698, %v4847
      %v4849 = vsel %vm4749, %v4702, %v4848
      %v4850 = vsel %vm4751, %v4706, %v4849
      %v4851 = vsel %vm4739, %v4714, %v4710
      %v4852 = vsel %vm4741, %v4718, %v4851
      %v4853 = vsel %vm4743, %v4722, %v4852
      %v4854 = vsel %vm4745, %v4726, %v4853
      %v4855 = vsel %vm4747, %v4730, %v4854
      %v4856 = vsel %vm4749, %v4734, %v4855
      %v4857 = vsel %vm4751, %v4738, %v4856
      %vm4874 = vcmask 64512
      %4875 = vst.msk [vmem:[%s257] sm:$0xff] %vm4874, %v4752
      %4876 = vst.msk [vmem:[%s257 + $0x8] sm:$0xff] %vm4874, %v4759
      %4877 = vst.msk [vmem:[%s257 + $0x10] sm:$0xff] %vm4874, %v4766
      %4878 = vst.msk [vmem:[%s257 + $0x18] sm:$0xff] %vm4874, %v4773
      %4879 = vst.msk [vmem:[%s257 + $0x20] sm:$0xff] %vm4874, %v4780
      %4880 = vst.msk [vmem:[%s257 + $0x28] sm:$0xff] %vm4874, %v4787
      %4881 = vst.msk [vmem:[%s257 + $0x30] sm:$0xff] %vm4874, %v4794
      %4882 = vst.msk [vmem:[%s257 + $0x38] sm:$0xff] %vm4874, %v4801
      %4883 = vst.msk [vmem:[%s257 + $0x40] sm:$0xff] %vm4874, %v4808
      %4884 = vst.msk [vmem:[%s257 + $0x48] sm:$0xff] %vm4874, %v4815
      %4885 = vst.msk [vmem:[%s257 + $0x50] sm:$0xff] %vm4874, %v4822
      %4886 = vst.msk [vmem:[%s257 + $0x58] sm:$0xff] %vm4874, %v4829
      %4887 = vst.msk [vmem:[%s257 + $0x60] sm:$0xff] %vm4874, %v4836
      %4888 = vst.msk [vmem:[%s257 + $0x68] sm:$0xff] %vm4874, %v4843
      %4889 = vst.msk [vmem:[%s257 + $0x70] sm:$0xff] %vm4874, %v4850
      %4890 = vst.msk [vmem:[%s257 + $0x78] sm:$0xff] %vm4874, %v4857
      %v5019 = vsel %vm4739, %v3214, %v3207
      %v5020 = vsel %vm4741, %v3221, %v5019
      %v5021 = vsel %vm4743, %v3228, %v5020
      %v5022 = vsel %vm4745, %v3235, %v5021
      %v5023 = vsel %vm4747, %v3242, %v5022
      %v5024 = vsel %vm4749, %v3249, %v5023
      %v5025 = vsel %vm4751, %v3256, %v5024
      %v5026 = vsel %vm4739, %v3270, %v3263
      %v5027 = vsel %vm4741, %v3277, %v5026
      %v5028 = vsel %vm4743, %v3284, %v5027
      %v5029 = vsel %vm4745, %v3291, %v5028
      %v5030 = vsel %vm4747, %v3298, %v5029
      %v5031 = vsel %vm4749, %v3305, %v5030
      %v5032 = vsel %vm4751, %v3312, %v5031
      %v5033 = vsel %vm4739, %v3326, %v3319
      %v5034 = vsel %vm4741, %v3333, %v5033
      %v5035 = vsel %vm4743, %v3340, %v5034
      %v5036 = vsel %vm4745, %v3347, %v5035
      %v5037 = vsel %vm4747, %v3354, %v5036
      %v5038 = vsel %vm4749, %v3361, %v5037
      %v5039 = vsel %vm4751, %v3368, %v5038
      %v5040 = vsel %vm4739, %v3382, %v3375
      %v5041 = vsel %vm4741, %v3389, %v5040
      %v5042 = vsel %vm4743, %v3396, %v5041
      %v5043 = vsel %vm4745, %v3403, %v5042
      %v5044 = vsel %vm4747, %v3410, %v5043
      %v5045 = vsel %vm4749, %v3417, %v5044
      %v5046 = vsel %vm4751, %v3424, %v5045
      %v5047 = vsel %vm4739, %v3438, %v3431
      %v5048 = vsel %vm4741, %v3445, %v5047
      %v5049 = vsel %vm4743, %v3452, %v5048
      %v5050 = vsel %vm4745, %v3459, %v5049
      %v5051 = vsel %vm4747, %v3466, %v5050
      %v5052 = vsel %vm4749, %v3473, %v5051
      %v5053 = vsel %vm4751, %v3480, %v5052
      %v5054 = vsel %vm4739, %v3494, %v3487
      %v5055 = vsel %vm4741, %v3501, %v5054
      %v5056 = vsel %vm4743, %v3508, %v5055
      %v5057 = vsel %vm4745, %v3515, %v5056
      %v5058 = vsel %vm4747, %v3522, %v5057
      %v5059 = vsel %vm4749, %v3529, %v5058
      %v5060 = vsel %vm4751, %v3536, %v5059
      %v5061 = vsel %vm4739, %v3550, %v3543
      %v5062 = vsel %vm4741, %v3557, %v5061
      %v5063 = vsel %vm4743, %v3564, %v5062
      %v5064 = vsel %vm4745, %v3571, %v5063
      %v5065 = vsel %vm4747, %v3578, %v5064
      %v5066 = vsel %vm4749, %v3585, %v5065
      %v5067 = vsel %vm4751, %v3592, %v5066
      %v5068 = vsel %vm4739, %v3606, %v3599
      %v5069 = vsel %vm4741, %v3613, %v5068
      %v5070 = vsel %vm4743, %v3620, %v5069
      %v5071 = vsel %vm4745, %v3627, %v5070
      %v5072 = vsel %vm4747, %v3634, %v5071
      %v5073 = vsel %vm4749, %v3641, %v5072
      %v5074 = vsel %vm4751, %v3648, %v5073
      %v5075 = vsel %vm4739, %v3662, %v3655
      %v5076 = vsel %vm4741, %v3669, %v5075
      %v5077 = vsel %vm4743, %v3676, %v5076
      %v5078 = vsel %vm4745, %v3683, %v5077
      %v5079 = vsel %vm4747, %v3690, %v5078
      %v5080 = vsel %vm4749, %v3697, %v5079
      %v5081 = vsel %vm4751, %v3704, %v5080
      %v5082 = vsel %vm4739, %v3718, %v3711
      %v5083 = vsel %vm4741, %v3725, %v5082
      %v5084 = vsel %vm4743, %v3732, %v5083
      %v5085 = vsel %vm4745, %v3739, %v5084
      %v5086 = vsel %vm4747, %v3746, %v5085
      %v5087 = vsel %vm4749, %v3753, %v5086
      %v5088 = vsel %vm4751, %v3760, %v5087
      %v5089 = vsel %vm4739, %v3774, %v3767
      %v5090 = vsel %vm4741, %v3781, %v5089
      %v5091 = vsel %vm4743, %v3788, %v5090
      %v5092 = vsel %vm4745, %v3795, %v5091
      %v5093 = vsel %vm4747, %v3802, %v5092
      %v5094 = vsel %vm4749, %v3809, %v5093
      %v5095 = vsel %vm4751, %v3816, %v5094
      %v5096 = vsel %vm4739, %v3830, %v3823
      %v5097 = vsel %vm4741, %v3837, %v5096
      %v5098 = vsel %vm4743, %v3844, %v5097
      %v5099 = vsel %vm4745, %v3851, %v5098
      %v5100 = vsel %vm4747, %v3858, %v5099
      %v5101 = vsel %vm4749, %v3865, %v5100
      %v5102 = vsel %vm4751, %v3872, %v5101
      %v5103 = vsel %vm4739, %v3886, %v3879
      %v5104 = vsel %vm4741, %v3893, %v5103
      %v5105 = vsel %vm4743, %v3900, %v5104
      %v5106 = vsel %vm4745, %v3907, %v5105
      %v5107 = vsel %vm4747, %v3914, %v5106
      %v5108 = vsel %vm4749, %v3921, %v5107
      %v5109 = vsel %vm4751, %v3928, %v5108
      %v5110 = vsel %vm4739, %v3942, %v3935
      %v5111 = vsel %vm4741, %v3949, %v5110
      %v5112 = vsel %vm4743, %v3956, %v5111
      %v5113 = vsel %vm4745, %v3963, %v5112
      %v5114 = vsel %vm4747, %v3970, %v5113
      %v5115 = vsel %vm4749, %v3977, %v5114
      %v5116 = vsel %vm4751, %v3984, %v5115
      %v5117 = vsel %vm4739, %v3998, %v3991
      %v5118 = vsel %vm4741, %v4005, %v5117
      %v5119 = vsel %vm4743, %v4012, %v5118
      %v5120 = vsel %vm4745, %v4019, %v5119
      %v5121 = vsel %vm4747, %v4026, %v5120
      %v5122 = vsel %vm4749, %v4033, %v5121
      %v5123 = vsel %vm4751, %v4040, %v5122
      %v5124 = vsel %vm4739, %v4054, %v4047
      %v5125 = vsel %vm4741, %v4061, %v5124
      %v5126 = vsel %vm4743, %v4068, %v5125
      %v5127 = vsel %vm4745, %v4075, %v5126
      %v5128 = vsel %vm4747, %v4082, %v5127
      %v5129 = vsel %vm4749, %v4089, %v5128
      %v5130 = vsel %vm4751, %v4096, %v5129
      %5147 = vst.msk [vmem:[%s263] sm:$0xff] %vm414, %v5025
      %5148 = vst.msk [vmem:[%s263 + $0x8] sm:$0xff] %vm414, %v5032
      %5149 = vst.msk [vmem:[%s263 + $0x10] sm:$0xff] %vm414, %v5039
      %5150 = vst.msk [vmem:[%s263 + $0x18] sm:$0xff] %vm414, %v5046
      %5151 = vst.msk [vmem:[%s263 + $0x20] sm:$0xff] %vm414, %v5053
      %5152 = vst.msk [vmem:[%s263 + $0x28] sm:$0xff] %vm414, %v5060
      %5153 = vst.msk [vmem:[%s263 + $0x30] sm:$0xff] %vm414, %v5067
      %5154 = vst.msk [vmem:[%s263 + $0x38] sm:$0xff] %vm414, %v5074
      %5155 = vst.msk [vmem:[%s263 + $0x40] sm:$0xff] %vm414, %v5081
      %5156 = vst.msk [vmem:[%s263 + $0x48] sm:$0xff] %vm414, %v5088
      %5157 = vst.msk [vmem:[%s263 + $0x50] sm:$0xff] %vm414, %v5095
      %5158 = vst.msk [vmem:[%s263 + $0x58] sm:$0xff] %vm414, %v5102
      %5159 = vst.msk [vmem:[%s263 + $0x60] sm:$0xff] %vm414, %v5109
      %5160 = vst.msk [vmem:[%s263 + $0x68] sm:$0xff] %vm414, %v5116
      %5161 = vst.msk [vmem:[%s263 + $0x70] sm:$0xff] %vm414, %v5123
      %5162 = vst.msk [vmem:[%s263 + $0x78] sm:$0xff] %vm414, %v5130
      %s5163 = smul.u32 16, %s18
      %p5164 = scmp.lt.s32.totalorder %s5163, 31
      %s5165 = scalar_select %p5164, %s5163, 31
      %s5166 = smul.addr %s5165, 8
      %s5167 = scalar_lea.vmem %s4, %s5166
      %s5168 = smul.u32 16, %s18
      %p5169 = scmp.lt.s32.totalorder %s5168, 31
      %s5170 = scalar_select %p5169, %s5168, 31
      %s5171 = smul.addr %s5170, 8
      %s5172 = scalar_lea.vmem %s5, %s5171
      // Predicated region
      $region37: #{tpu_custom_call.1} parent=35 // pred_check
        %p5173 = pneg %p130
      $region38: #{tpu_custom_call.1} parent=35 // pred_check_branch
        %5175 = sbr.rel (%p5173) target = $region40
      $region39: #{tpu_custom_call.1} parent=35 // pred_region
        %s5176 = smul.u32 16, %s18
      $region40: #{tpu_custom_call.1} parent=35 // pred_fallthru
        _
      // Predicated region
      $region41: #{tpu_custom_call.1} parent=35 // pred_check
        %p5177 = pneg %p156
      $region42: #{tpu_custom_call.1} parent=35 // pred_check_branch
        %5179 = sbr.rel (%p5177) target = $region44
      $region43: #{tpu_custom_call.1} parent=35 // pred_region
        %s5180 = smul.u32 16, %s18
      $region44: #{tpu_custom_call.1} parent=35 // pred_fallthru
        _
    $region36: #{tpu_custom_call.1} parent=5 // pred_fallthru
      _
    %p5181 = scmp.le.s32.totalorder 2, %s13
    // Predicated region
    $region45: #{tpu_custom_call.1} parent=5 // pred_check
      %p5182 = pneg %p5181
    $region46: #{tpu_custom_call.1} parent=5 // pred_check_branch
      %5184 = sbr.rel (%p5182) target = $region48
    $region47: #{tpu_custom_call.1} parent=5 // pred_region
      %s5185 = ssub.s32 %s13, 2
      // Predicated region
      $region49: #{tpu_custom_call.1} parent=47 // pred_check
        %p5186 = pneg %p136
      $region50: #{tpu_custom_call.1} parent=47 // pred_check_branch
        %5188 = sbr.rel (%p5186) target = $region52
      $region51: #{tpu_custom_call.1} parent=47 // pred_region
        %s5189 = smul.u32 16, %s19
        %p5190 = scmp.lt.s32.totalorder %s5189, 31
        %s5191 = scalar_select %p5190, %s5189, 31
        %s5192 = smul.addr %s5191, 8
        %s5193 = scalar_lea.vmem %s4, %s5192
      $region52: #{tpu_custom_call.1} parent=47 // pred_fallthru
        _
      // Predicated region
      $region53: #{tpu_custom_call.1} parent=47 // pred_check
        %p5194 = pneg %p162
      $region54: #{tpu_custom_call.1} parent=47 // pred_check_branch
        %5196 = sbr.rel (%p5194) target = $region56
      $region55: #{tpu_custom_call.1} parent=47 // pred_region
        %s5197 = smul.u32 16, %s19
        %p5198 = scmp.lt.s32.totalorder %s5197, 31
        %s5199 = scalar_select %p5198, %s5197, 31
        %s5200 = smul.addr %s5199, 8
        %s5201 = scalar_lea.vmem %s5, %s5200
      $region56: #{tpu_custom_call.1} parent=47 // pred_fallthru
        _
    $region48: #{tpu_custom_call.1} parent=5 // pred_fallthru
      _
  $region6: #{tpu_custom_call.1} parent=0 // loop_footer
    %s17 = sadd.s32 1, %s13
  $region7: #{tpu_custom_call.1} parent=0 // loop_footer_branch
    %12 = sbr.rel target = $region3
  $region8: #{tpu_custom_call.1} parent=0 // loop_exit
    _

</llo_original>
